<compile_context>
chip_gen: v6e
topology: v6e:2x2x1
jax: 0.10.0
libtpu: 0.0.40
codegen_flags: <defaults>
</compile_context>

<pallas_src>
import math
import functools

import jax
import jax.numpy as jnp
from jax import lax
from jax.experimental import pallas as pl
from jax.experimental.pallas import tpu as pltpu


# ----------------------------------------------------------------------------
# Small in-kernel helpers (traced inside the fused stack kernels)
# ----------------------------------------------------------------------------
def _ln(y, g, b, eps):
    mu = jnp.mean(y, axis=-1, keepdims=True)
    var = jnp.mean(jnp.square(y - mu), axis=-1, keepdims=True)
    return (y - mu) * lax.rsqrt(var + eps) * g + b


def _softmax_rows(s):
    s = s - jnp.max(s, axis=-1, keepdims=True)
    p = jnp.exp(s)
    return p * pl.reciprocal(jnp.sum(p, axis=-1, keepdims=True), approx=True)


def _mha(q, k, v, wo, bo, n_head, n_batch, sq, sk, scale, mm_dtype,
         mask=None, pad=None):
    """q:(n_batch*sq, D), k/v:(n_batch*sk, D), wo:(D,D) [mm_dtype], bo:(1,D) f32.

    Per-(batch, head) scores/softmax/PV; head outputs are written into a
    contiguous (sq, D) slab, batches stacked back to (n_batch*sq, D), then a
    SINGLE (M, D) @ (D, D) output-projection matmul (full-K MXU contraction).
    """
    D = q.shape[-1]
    Dh = D // n_head
    rows = []
    for b in range(n_batch):
        qb = q[b * sq:(b + 1) * sq, :]
        kb = k[b * sk:(b + 1) * sk, :]
        vb = v[b * sk:(b + 1) * sk, :]
        m = mask
        if pad is not None:
            pb = pad[b:b + 1, :]                 # (1, sk) additive key padding
            m = pb if m is None else m + pb
        heads = []
        for h in range(n_head):
            sl = slice(h * Dh, (h + 1) * Dh)
            # contract on the last dim of both (no explicit transpose of K)
            s = lax.dot_general(qb[:, sl].astype(mm_dtype),
                                kb[:, sl].astype(mm_dtype),
                                (((1,), (1,)), ((), ())),
                                preferred_element_type=jnp.float32) * scale
            if m is not None:
                s = s + m
            p = _softmax_rows(s)
            heads.append(jnp.dot(p.astype(mm_dtype), vb[:, sl].astype(mm_dtype),
                                 preferred_element_type=jnp.float32))
        rows.append(jnp.concatenate(heads, axis=-1))     # (sq, D)
    cat = jnp.concatenate(rows, axis=0) if n_batch > 1 else rows[0]
    out = jnp.dot(cat.astype(mm_dtype), wo, preferred_element_type=jnp.float32)
    return out + bo


# ----------------------------------------------------------------------------
# Fused encoder STACK: all layers in one pallas_call, grid=(L,), activation
# resident in VMEM scratch, final encoder LayerNorm fused into the last step.
# ----------------------------------------------------------------------------
def _encoder_stack_kernel(x_ref, wqkv_ref, bqkv_ref, wo_ref, bo_ref,
                          ln1g_ref, ln1b_ref, w1_ref, b1_ref, w2_ref, b2_ref,
                          ln2g_ref, ln2b_ref, fng_ref, fnb_ref,
                          o_ref, act_ref, *, n_head, n_batch, seq, eps, mm_dtype):
    l = pl.program_id(0)

    @pl.when(l == 0)
    def _():
        act_ref[...] = x_ref[...]

    x = act_ref[...]                                  # (B*S, D) f32 residual
    D = x.shape[-1]
    scale = 1.0 / math.sqrt(D // n_head)

    qkv = jnp.dot(x.astype(mm_dtype), wqkv_ref[0],
                  preferred_element_type=jnp.float32) + bqkv_ref[0]
    q, k, v = qkv[:, :D], qkv[:, D:2 * D], qkv[:, 2 * D:]

    attn = _mha(q, k, v, wo_ref[0], bo_ref[0], n_head, n_batch, seq, seq,
                scale, mm_dtype)                      # no mask in the encoder
    x1 = _ln(x + attn, ln1g_ref[0], ln1b_ref[0], eps)

    h = jnp.dot(x1.astype(mm_dtype), w1_ref[0],
                preferred_element_type=jnp.float32) + b1_ref[0]
    h = jnp.maximum(h, 0.0)
    ff = jnp.dot(h.astype(mm_dtype), w2_ref[0],
                 preferred_element_type=jnp.float32) + b2_ref[0]
    x2 = _ln(x1 + ff, ln2g_ref[0], ln2b_ref[0], eps)

    act_ref[...] = x2

    @pl.when(l == pl.num_programs(0) - 1)
    def _():
        # Final encoder norm fused here (memory = enc_norm(x_L)).
        o_ref[...] = _ln(x2, fng_ref[...], fnb_ref[...], eps)


def encoder_stack(x2d, p, fng, fnb, n_head, n_batch, seq, mm_dtype):
    M, D = x2d.shape
    L = p["wqkv"].shape[0]
    weights = [p["wqkv"], p["bqkv"], p["wo"], p["bo"],
               p["ln1_g"], p["ln1_b"],
               p["w1"], p["b1"], p["w2"], p["b2"],
               p["ln2_g"], p["ln2_b"]]
    fng2 = fng.reshape(1, D)
    fnb2 = fnb.reshape(1, D)
    kernel = functools.partial(_encoder_stack_kernel, n_head=n_head,
                               n_batch=n_batch, seq=seq, eps=1e-5,
                               mm_dtype=mm_dtype)
    return pl.pallas_call(
        kernel,
        out_shape=jax.ShapeDtypeStruct((M, D), jnp.float32),
        grid=(L,),
        in_specs=[pl.BlockSpec((M, D), lambda l: (0, 0))]
                 + [pl.BlockSpec((1,) + w.shape[1:], lambda l: (l, 0, 0))
                    for w in weights]
                 + [pl.BlockSpec((1, D), lambda l: (0, 0)),
                    pl.BlockSpec((1, D), lambda l: (0, 0))],
        out_specs=pl.BlockSpec((M, D), lambda l: (0, 0)),
        scratch_shapes=[pltpu.VMEM((M, D), jnp.float32)],
        compiler_params=pltpu.CompilerParams(dimension_semantics=("arbitrary",)),
    )(x2d, *weights, fng2, fnb2)


# ----------------------------------------------------------------------------
# Fused decoder STACK: causal self-attn + cross-attn + FFN (+ 3x add&LN) per
# layer, all layers in one pallas_call, final decoder LayerNorm fused.
# ----------------------------------------------------------------------------
def _decoder_stack_kernel(y_ref, mem_ref, pad_ref,
                          wqkv_ref, bqkv_ref, wos_ref, bos_ref,
                          ln1g_ref, ln1b_ref,
                          wqc_ref, bqc_ref, wkvc_ref, bkvc_ref, woc_ref, boc_ref,
                          ln2g_ref, ln2b_ref,
                          w1_ref, b1_ref, w2_ref, b2_ref, ln3g_ref, ln3b_ref,
                          fng_ref, fnb_ref,
                          o_ref, act_ref, *, n_head, n_batch, s_tgt, s_src,
                          eps, mm_dtype):
    l = pl.program_id(0)

    @pl.when(l == 0)
    def _():
        act_ref[...] = y_ref[...]

    y = act_ref[...]                                  # (B*St, D) f32 residual
    mem = mem_ref[...]                                # (B*Ss, D) f32
    D = y.shape[-1]
    scale = 1.0 / math.sqrt(D // n_head)

    # Causal mask generated in-kernel (no HBM mask tensor), once per step.
    # Large finite negative instead of -inf avoids NaN on fully-masked rows.
    row = lax.broadcasted_iota(jnp.int32, (s_tgt, s_tgt), 0)
    col = lax.broadcasted_iota(jnp.int32, (s_tgt, s_tgt), 1)
    causal = jnp.where(col > row, jnp.float32(-1e30), jnp.float32(0.0))
    pad = pad_ref[...]                                # (B, St) additive

    # --- causal self-attention ---
    qkv = jnp.dot(y.astype(mm_dtype), wqkv_ref[0],
                  preferred_element_type=jnp.float32) + bqkv_ref[0]
    q, k, v = qkv[:, :D], qkv[:, D:2 * D], qkv[:, 2 * D:]
    sa = _mha(q, k, v, wos_ref[0], bos_ref[0], n_head, n_batch, s_tgt, s_tgt,
              scale, mm_dtype, mask=causal, pad=pad)
    x1 = _ln(y + sa, ln1g_ref[0], ln1b_ref[0], eps)

    # --- cross-attention (no mask) ---
    qc = jnp.dot(x1.astype(mm_dtype), wqc_ref[0],
                 preferred_element_type=jnp.float32) + bqc_ref[0]
    kv = jnp.dot(mem.astype(mm_dtype), wkvc_ref[0],
                 preferred_element_type=jnp.float32) + bkvc_ref[0]
    kc, vc = kv[:, :D], kv[:, D:]
    ca = _mha(qc, kc, vc, woc_ref[0], boc_ref[0], n_head, n_batch, s_tgt, s_src,
              scale, mm_dtype)
    x2 = _ln(x1 + ca, ln2g_ref[0], ln2b_ref[0], eps)

    # --- feed-forward ---
    h = jnp.dot(x2.astype(mm_dtype), w1_ref[0],
                preferred_element_type=jnp.float32) + b1_ref[0]
    h = jnp.maximum(h, 0.0)
    ff = jnp.dot(h.astype(mm_dtype), w2_ref[0],
                 preferred_element_type=jnp.float32) + b2_ref[0]
    x3 = _ln(x2 + ff, ln3g_ref[0], ln3b_ref[0], eps)

    act_ref[...] = x3

    @pl.when(l == pl.num_programs(0) - 1)
    def _():
        # Final decoder norm fused here.
        o_ref[...] = _ln(x3, fng_ref[...], fnb_ref[...], eps)


def decoder_stack(y2d, mem2d, pad, p, fng, fnb, n_head, n_batch,
                  s_tgt, s_src, mm_dtype):
    M, D = y2d.shape
    Mk = mem2d.shape[0]
    L = p["wqkv_s"].shape[0]
    weights = [p["wqkv_s"], p["bqkv_s"], p["wo_s"], p["bo_s"],
               p["ln1_g"], p["ln1_b"],
               p["wq_c"], p["bq_c"], p["wkv_c"], p["bkv_c"], p["wo_c"], p["bo_c"],
               p["ln2_g"], p["ln2_b"],
               p["w1"], p["b1"], p["w2"], p["b2"],
               p["ln3_g"], p["ln3_b"]]
    fng2 = fng.reshape(1, D)
    fnb2 = fnb.reshape(1, D)
    kernel = functools.partial(_decoder_stack_kernel, n_head=n_head,
                               n_batch=n_batch, s_tgt=s_tgt, s_src=s_src,
                               eps=1e-5, mm_dtype=mm_dtype)
    return pl.pallas_call(
        kernel,
        out_shape=jax.ShapeDtypeStruct((M, D), jnp.float32),
        grid=(L,),
        in_specs=[pl.BlockSpec((M, D), lambda l: (0, 0)),
                  pl.BlockSpec((Mk, D), lambda l: (0, 0)),
                  pl.BlockSpec(pad.shape, lambda l: (0, 0))]
                 + [pl.BlockSpec((1,) + w.shape[1:], lambda l: (l, 0, 0))
                    for w in weights]
                 + [pl.BlockSpec((1, D), lambda l: (0, 0)),
                    pl.BlockSpec((1, D), lambda l: (0, 0))],
        out_specs=pl.BlockSpec((M, D), lambda l: (0, 0)),
        scratch_shapes=[pltpu.VMEM((M, D), jnp.float32)],
        compiler_params=pltpu.CompilerParams(dimension_semantics=("arbitrary",)),
    )(y2d, mem2d, pad, *weights, fng2, fnb2)


# ----------------------------------------------------------------------------
# Tiled linear (final vocab projection) — weights lane-padded once at init.
# ----------------------------------------------------------------------------
def _linear_kernel(x_ref, w_ref, b_ref, o_ref, acc_ref):
    @pl.when(pl.program_id(2) == 0)
    def _():
        acc_ref[...] = jnp.zeros_like(acc_ref)

    acc_ref[...] += jnp.dot(x_ref[...], w_ref[...],
                            preferred_element_type=jnp.float32)

    @pl.when(pl.program_id(2) == pl.num_programs(2) - 1)
    def _():
        o_ref[...] = acc_ref[...] + b_ref[...]


def _pick_tile(dim, max_tile, align):
    """Largest divisor of `dim` that is a multiple of `align` and <= max_tile,
    else the whole dim (block == full array dim is always legal)."""
    if dim <= max_tile:
        return dim
    t = (max_tile // align) * align
    while t >= align:
        if dim % t == 0:
            return t
        t -= align
    return dim


def linear(x2d, w, b):
    """x2d:(M,K) @ w:(K,Np) + b:(Np,) -> (M,Np).  w/b are already lane-padded
    (Np multiple of 128) at init; caller slices off the padding."""
    M, K = x2d.shape
    Np = w.shape[1]
    tm = _pick_tile(M, 512, 16)
    tn = _pick_tile(Np, 512, 128)
    tk = _pick_tile(K, 512, 128)
    gm, gn, gk = M // tm, Np // tn, K // tk
    return pl.pallas_call(
        _linear_kernel,
        out_shape=jax.ShapeDtypeStruct((M, Np), jnp.float32),
        grid=(gm, gn, gk),
        in_specs=[
            pl.BlockSpec((tm, tk), lambda i, j, k: (i, k)),
            pl.BlockSpec((tk, tn), lambda i, j, k: (k, j)),
            pl.BlockSpec((1, tn), lambda i, j, k: (0, j)),
        ],
        out_specs=pl.BlockSpec((tm, tn), lambda i, j, k: (i, j)),
        scratch_shapes=[pltpu.VMEM((tm, tn), jnp.float32)],
        compiler_params=pltpu.CompilerParams(
            dimension_semantics=("parallel", "parallel", "arbitrary")),
    )(x2d, w, b.reshape(1, Np))


# ----------------------------------------------------------------------------
# Full forward pass (embedding gather + PE add are plain-JAX glue)
# ----------------------------------------------------------------------------
def transformer_forward(params, src_ids, tgt_ids, tgt_key_padding_mask=None):
    cfg = params["cfg"]
    n_head = cfg["n_head"]
    D = cfg["d_model"]
    mm_dtype = cfg["compute_dtype"]
    out_vocab = cfg["out_vocab"]

    emb = params["embed"]
    s_emb = jnp.take(emb, src_ids, axis=0)            # (B, Ss, D)
    t_emb = jnp.take(emb, tgt_ids, axis=0)            # (B, St, D)
    B, Ss, _ = s_emb.shape
    St = t_emb.shape[1]

    # Positional encoding (reproducing pe[:x.size(0)] on batch_first input).
    pe = params["pe"]                                 # (max_len, 1, D)
    s_p = s_emb + pe[:B]
    t_p = t_emb + pe[:B]

    # Tiny additive key-padding mask for decoder self-attention (B, St).
    if tgt_key_padding_mask is not None:
        pad = jnp.where(tgt_key_padding_mask, -1e30, 0.0).astype(jnp.float32)
    else:
        pad = jnp.zeros((B, St), jnp.float32)

    # Encoder: all layers + final norm in one pallas_call.
    x2d = s_p.reshape(B * Ss, D).astype(jnp.float32)
    memory = encoder_stack(x2d, params["enc"],
                           params["enc_norm_g"], params["enc_norm_b"],
                           n_head, B, Ss, mm_dtype)

    # Decoder: all layers + final norm in one pallas_call.
    y2d = t_p.reshape(B * St, D).astype(jnp.float32)
    dec = decoder_stack(y2d, memory, pad, params["dec"],
                        params["dec_norm_g"], params["dec_norm_b"],
                        n_head, B, St, Ss, mm_dtype)

    # Final projection (tiled accumulator, lane-padded at init).
    logits = linear(dec.astype(mm_dtype), params["fc_w"], params["fc_b"])
    return logits[:, :out_vocab].reshape(B, St, out_vocab)


# ----------------------------------------------------------------------------
# Deterministic parameter init (stacked per-layer weights, bf16 matmul weights)
# ----------------------------------------------------------------------------
def init_params(key, in_vocab, out_vocab, d_model, n_head, nb_layer,
                dim_ff, padding_idx, max_len=64, compute_dtype=jnp.bfloat16):
    keys = iter(jax.random.split(key, 1024))

    def wgt(shape, scale=0.02):
        # matmul weights stored in compute_dtype (halves DMA/VMEM on MXU path)
        return (scale * jax.random.normal(next(keys), shape)).astype(compute_dtype)

    def zeros(shape):
        return jnp.zeros(shape, jnp.float32)

    def ones(shape):
        return jnp.ones(shape, jnp.float32)

    embed = jax.random.normal(next(keys), (in_vocab, d_model)).astype(jnp.float32)
    embed = embed.at[padding_idx].set(0.0)            # padding_idx row is zero

    # Sinusoidal positional-encoding buffer, shape (max_len, 1, d_model).
    pos = jnp.arange(max_len, dtype=jnp.float32)[:, None]
    div = jnp.exp(jnp.arange(0, d_model, 2, dtype=jnp.float32)
                  * (-math.log(10000.0) / d_model))
    pe = jnp.zeros((max_len, d_model), jnp.float32)
    pe = pe.at[:, 0::2].set(jnp.sin(pos * div))
    pe = pe.at[:, 1::2].set(jnp.cos(pos * div))
    pe = pe[:, None, :]

    L, D, F = nb_layer, d_model, dim_ff

    enc = dict(
        wqkv=wgt((L, D, 3 * D)), bqkv=zeros((L, 1, 3 * D)),
        wo=wgt((L, D, D)), bo=zeros((L, 1, D)),
        ln1_g=ones((L, 1, D)), ln1_b=zeros((L, 1, D)),
        w1=wgt((L, D, F)), b1=zeros((L, 1, F)),
        w2=wgt((L, F, D)), b2=zeros((L, 1, D)),
        ln2_g=ones((L, 1, D)), ln2_b=zeros((L, 1, D)),
    )

    dec = dict(
        wqkv_s=wgt((L, D, 3 * D)), bqkv_s=zeros((L, 1, 3 * D)),
        wo_s=wgt((L, D, D)), bo_s=zeros((L, 1, D)),
        ln1_g=ones((L, 1, D)), ln1_b=zeros((L, 1, D)),
        wq_c=wgt((L, D, D)), bq_c=zeros((L, 1, D)),
        wkv_c=wgt((L, D, 2 * D)), bkv_c=zeros((L, 1, 2 * D)),
        wo_c=wgt((L, D, D)), bo_c=zeros((L, 1, D)),
        ln2_g=ones((L, 1, D)), ln2_b=zeros((L, 1, D)),
        w1=wgt((L, D, F)), b1=zeros((L, 1, F)),
        w2=wgt((L, F, D)), b2=zeros((L, 1, D)),
        ln3_g=ones((L, 1, D)), ln3_b=zeros((L, 1, D)),
    )

    # Final vocab projection: lane-pad to a multiple of 128 ONCE at init.
    Np = ((out_vocab + 127) // 128) * 128
    fc_w = (0.02 * jax.random.normal(next(keys), (D, out_vocab))).astype(jnp.float32)
    fc_w = jnp.pad(fc_w, ((0, 0), (0, Np - out_vocab))).astype(compute_dtype)
    fc_b = jnp.zeros((Np,), jnp.float32)

    return dict(
        cfg=dict(d_model=d_model, n_head=n_head, out_vocab=out_vocab,
                 nb_layer=nb_layer, compute_dtype=compute_dtype),
        embed=embed, pe=pe,
        enc=enc, dec=dec,
        enc_norm_g=ones((D,)), enc_norm_b=zeros((D,)),
        dec_norm_g=ones((D,)), dec_norm_b=zeros((D,)),
        fc_w=fc_w, fc_b=fc_b,
    )


# ----------------------------------------------------------------------------
if __name__ == "__main__":
    B, Ss, St = 2, 10, 8
    in_vocab, out_vocab = 50, 40
    d_model, n_head, nb_layer, dim_ff = 32, 4, 2, 64
    padding_idx = 0

    key = jax.random.PRNGKey(0)
    pk, sk, tk_ = jax.random.split(key, 3)
    params = init_params(pk, in_vocab, out_vocab, d_model, n_head,
                         nb_layer, dim_ff, padding_idx)

    src = jax.random.randint(sk, (B, Ss), 1, in_vocab, dtype=jnp.int32)
    tgt = jax.random.randint(tk_, (B, St), 1, in_vocab, dtype=jnp.int32)

    out = transformer_forward(params, src, tgt, tgt_key_padding_mask=None)
    out = jax.block_until_ready(out)

    assert out.shape == (B, St, out_vocab), out.shape
    assert not bool(jnp.any(jnp.isnan(out)))
    print("KERNEL_OK")
</pallas_src>

<mosaic_0001>
module attributes {stable_mosaic.version = 11 : i64} {
  func.func @_encoder_stack_kernel(%arg0: i32, %arg1: memref<20x32xf32, #tpu.memory_space<vmem>>, %arg2: memref<1x32x96xbf16, #tpu.memory_space<vmem>>, %arg3: memref<1x1x96xf32, #tpu.memory_space<vmem>>, %arg4: memref<1x32x32xbf16, #tpu.memory_space<vmem>>, %arg5: memref<1x1x32xf32, #tpu.memory_space<vmem>>, %arg6: memref<1x1x32xf32, #tpu.memory_space<vmem>>, %arg7: memref<1x1x32xf32, #tpu.memory_space<vmem>>, %arg8: memref<1x32x64xbf16, #tpu.memory_space<vmem>>, %arg9: memref<1x1x64xf32, #tpu.memory_space<vmem>>, %arg10: memref<1x64x32xbf16, #tpu.memory_space<vmem>>, %arg11: memref<1x1x32xf32, #tpu.memory_space<vmem>>, %arg12: memref<1x1x32xf32, #tpu.memory_space<vmem>>, %arg13: memref<1x1x32xf32, #tpu.memory_space<vmem>>, %arg14: memref<1x32xf32, #tpu.memory_space<vmem>>, %arg15: memref<1x32xf32, #tpu.memory_space<vmem>>, %arg16: memref<20x32xf32, #tpu.memory_space<vmem>>, %arg17: memref<20x32xf32, #tpu.memory_space<vmem>>) attributes {dimension_semantics = [#tpu.dimension_semantics<arbitrary>], iteration_bounds = array<i64: 2>, scalar_prefetch = 0 : i64, scratch_operands = 1 : i64, tpu.core_type = #tpu.core_type<tc>, window_params = [{pipeline_mode = #tpu.pipeline_mode<synchronous>, transform_indices = @transform_0, window_bounds = array<i64: 20, 32>}, {transform_indices = @transform_1, window_bounds = array<i64: 1, 32, 96>}, {transform_indices = @transform_2, window_bounds = array<i64: 1, 1, 96>}, {transform_indices = @transform_3, window_bounds = array<i64: 1, 32, 32>}, {transform_indices = @transform_4, window_bounds = array<i64: 1, 1, 32>}, {transform_indices = @transform_5, window_bounds = array<i64: 1, 1, 32>}, {transform_indices = @transform_6, window_bounds = array<i64: 1, 1, 32>}, {transform_indices = @transform_7, window_bounds = array<i64: 1, 32, 64>}, {transform_indices = @transform_8, window_bounds = array<i64: 1, 1, 64>}, {transform_indices = @transform_9, window_bounds = array<i64: 1, 64, 32>}, {transform_indices = @transform_10, window_bounds = array<i64: 1, 1, 32>}, {transform_indices = @transform_11, window_bounds = array<i64: 1, 1, 32>}, {transform_indices = @transform_12, window_bounds = array<i64: 1, 1, 32>}, {pipeline_mode = #tpu.pipeline_mode<synchronous>, transform_indices = @transform_13, window_bounds = array<i64: 1, 32>}, {pipeline_mode = #tpu.pipeline_mode<synchronous>, transform_indices = @transform_14, window_bounds = array<i64: 1, 32>}, {pipeline_mode = #tpu.pipeline_mode<synchronous>, transform_indices = @transform_15, window_bounds = array<i64: 20, 32>}]} {
    %c0_i32 = arith.constant 0 : i32
    %0 = arith.cmpi eq, %arg0, %c0_i32 : i32
    %1 = arith.extui %0 : i1 to i32
    %c0_i32_0 = arith.constant 0 : i32
    %2 = arith.cmpi ne, %1, %c0_i32_0 : i32
    scf.if %2 {
      %c0_95 = arith.constant 0 : index
      %c0_96 = arith.constant 0 : index
      %276 = vector.load %arg1[%c0_95, %c0_96] : memref<20x32xf32, #tpu.memory_space<vmem>>, vector<20x32xf32>
      %c0_97 = arith.constant 0 : index
      %c0_98 = arith.constant 0 : index
      %277 = vector.load %arg17[%c0_97, %c0_98] : memref<20x32xf32, #tpu.memory_space<vmem>>, vector<20x32xf32>
      tpu.vector_store %arg17[%c0_97, %c0_98], %276 {strides = array<i32>} : memref<20x32xf32, #tpu.memory_space<vmem>>, vector<20x32xf32>,
    } else {
    }
    %c0 = arith.constant 0 : index
    %c0_1 = arith.constant 0 : index
    %3 = vector.load %arg17[%c0, %c0_1] : memref<20x32xf32, #tpu.memory_space<vmem>>, vector<20x32xf32>
    %4 = arith.truncf %3 : vector<20x32xf32> to vector<20x32xbf16>
    %c0_2 = arith.constant 0 : index
    %c0_3 = arith.constant 0 : index
    %c0_4 = arith.constant 0 : index
    %5 = vector.load %arg2[%c0_2, %c0_3, %c0_4] : memref<1x32x96xbf16, #tpu.memory_space<vmem>>, vector<1x32x96xbf16>
    %6 = vector.shape_cast %5 : vector<1x32x96xbf16> to vector<32x96xbf16>
    %cst = arith.constant dense<0.000000e+00> : vector<20x96xf32>
    %7 = tpu.matmul %4, %6, %cst {dimension_numbers = #tpu.dot_dimension_numbers<[1], [0], [0], [1], [0, 0, 1, 1], [], []>} : vector<20x32xbf16>, vector<32x96xbf16>, vector<20x96xf32> -> vector<20x96xf32>
    %c0_5 = arith.constant 0 : index
    %c0_6 = arith.constant 0 : index
    %c0_7 = arith.constant 0 : index
    %8 = vector.load %arg3[%c0_5, %c0_6, %c0_7] : memref<1x1x96xf32, #tpu.memory_space<vmem>>, vector<1x1x96xf32>
    %9 = vector.shape_cast %8 : vector<1x1x96xf32> to vector<1x96xf32>
    %10 = vector.broadcast %9 : vector<1x96xf32> to vector<20x96xf32>
    %11 = arith.addf %7, %10 : vector<20x96xf32>
    %12 = vector.extract_strided_slice %11 {offsets = [0, 0], sizes = [20, 32], strides = [1, 1]} : vector<20x96xf32> to vector<20x32xf32>
    %13 = vector.extract_strided_slice %11 {offsets = [0, 32], sizes = [20, 32], strides = [1, 1]} : vector<20x96xf32> to vector<20x32xf32>
    %14 = vector.extract_strided_slice %11 {offsets = [0, 64], sizes = [20, 32], strides = [1, 1]} : vector<20x96xf32> to vector<20x32xf32>
    %c0_8 = arith.constant 0 : index
    %c0_9 = arith.constant 0 : index
    %c0_10 = arith.constant 0 : index
    %15 = vector.load %arg4[%c0_8, %c0_9, %c0_10] : memref<1x32x32xbf16, #tpu.memory_space<vmem>>, vector<1x32x32xbf16>
    %16 = vector.shape_cast %15 : vector<1x32x32xbf16> to vector<32x32xbf16>
    %c0_11 = arith.constant 0 : index
    %c0_12 = arith.constant 0 : index
    %c0_13 = arith.constant 0 : index
    %17 = vector.load %arg5[%c0_11, %c0_12, %c0_13] : memref<1x1x32xf32, #tpu.memory_space<vmem>>, vector<1x1x32xf32>
    %18 = vector.shape_cast %17 : vector<1x1x32xf32> to vector<1x32xf32>
    %19 = vector.extract_strided_slice %12 {offsets = [0, 0], sizes = [10, 32], strides = [1, 1]} : vector<20x32xf32> to vector<10x32xf32>
    %20 = vector.extract_strided_slice %13 {offsets = [0, 0], sizes = [10, 32], strides = [1, 1]} : vector<20x32xf32> to vector<10x32xf32>
    %21 = vector.extract_strided_slice %14 {offsets = [0, 0], sizes = [10, 32], strides = [1, 1]} : vector<20x32xf32> to vector<10x32xf32>
    %22 = vector.extract_strided_slice %19 {offsets = [0, 0], sizes = [10, 8], strides = [1, 1]} : vector<10x32xf32> to vector<10x8xf32>
    %23 = arith.truncf %22 : vector<10x8xf32> to vector<10x8xbf16>
    %24 = vector.extract_strided_slice %20 {offsets = [0, 0], sizes = [10, 8], strides = [1, 1]} : vector<10x32xf32> to vector<10x8xf32>
    %25 = arith.truncf %24 : vector<10x8xf32> to vector<10x8xbf16>
    %cst_14 = arith.constant dense<0.000000e+00> : vector<10x10xf32>
    %26 = tpu.matmul %23, %25, %cst_14 {dimension_numbers = #tpu.dot_dimension_numbers<[1], [1], [0], [0], [0, 0, 1, 0], [], []>} : vector<10x8xbf16>, vector<10x8xbf16>, vector<10x10xf32> -> vector<10x10xf32>
    %cst_15 = arith.constant 0.353553385 : f32
    %27 = vector.broadcast %cst_15 : f32 to vector<10x10xf32>
    %28 = arith.mulf %26, %27 : vector<10x10xf32>
    %cst_16 = arith.constant dense<0xFF800000> : vector<10xf32>
    %29 = vector.multi_reduction <maximumf>, %28, %cst_16 [1] : vector<10x10xf32> to vector<10xf32>
    %30 = vector.shape_cast %29 : vector<10xf32> to vector<10x1xf32>
    %31 = vector.broadcast %30 : vector<10x1xf32> to vector<10x10xf32>
    %32 = arith.subf %28, %31 : vector<10x10xf32>
    %33 = math.exp %32 : vector<10x10xf32>
    %cst_17 = arith.constant dense<0.000000e+00> : vector<10xf32>
    %34 = vector.multi_reduction <add>, %33, %cst_17 [1] : vector<10x10xf32> to vector<10xf32>
    %35 = vector.shape_cast %34 : vector<10xf32> to vector<10x1xf32>
    %36 = tpu.reciprocal %35 {approx = true} : vector<10x1xf32> -> vector<10x1xf32>
    %37 = vector.broadcast %36 : vector<10x1xf32> to vector<10x10xf32>
    %38 = arith.mulf %33, %37 : vector<10x10xf32>
    %39 = arith.truncf %38 : vector<10x10xf32> to vector<10x10xbf16>
    %40 = vector.extract_strided_slice %21 {offsets = [0, 0], sizes = [10, 8], strides = [1, 1]} : vector<10x32xf32> to vector<10x8xf32>
    %41 = arith.truncf %40 : vector<10x8xf32> to vector<10x8xbf16>
    %cst_18 = arith.constant dense<0.000000e+00> : vector<10x8xf32>
    %42 = tpu.matmul %39, %41, %cst_18 {dimension_numbers = #tpu.dot_dimension_numbers<[1], [0], [0], [1], [0, 0, 1, 1], [], []>} : vector<10x10xbf16>, vector<10x8xbf16>, vector<10x8xf32> -> vector<10x8xf32>
    %43 = vector.extract_strided_slice %19 {offsets = [0, 8], sizes = [10, 8], strides = [1, 1]} : vector<10x32xf32> to vector<10x8xf32>
    %44 = arith.truncf %43 : vector<10x8xf32> to vector<10x8xbf16>
    %45 = vector.extract_strided_slice %20 {offsets = [0, 8], sizes = [10, 8], strides = [1, 1]} : vector<10x32xf32> to vector<10x8xf32>
    %46 = arith.truncf %45 : vector<10x8xf32> to vector<10x8xbf16>
    %cst_19 = arith.constant dense<0.000000e+00> : vector<10x10xf32>
    %47 = tpu.matmul %44, %46, %cst_19 {dimension_numbers = #tpu.dot_dimension_numbers<[1], [1], [0], [0], [0, 0, 1, 0], [], []>} : vector<10x8xbf16>, vector<10x8xbf16>, vector<10x10xf32> -> vector<10x10xf32>
    %cst_20 = arith.constant 0.353553385 : f32
    %48 = vector.broadcast %cst_20 : f32 to vector<10x10xf32>
    %49 = arith.mulf %47, %48 : vector<10x10xf32>
    %cst_21 = arith.constant dense<0xFF800000> : vector<10xf32>
    %50 = vector.multi_reduction <maximumf>, %49, %cst_21 [1] : vector<10x10xf32> to vector<10xf32>
    %51 = vector.shape_cast %50 : vector<10xf32> to vector<10x1xf32>
    %52 = vector.broadcast %51 : vector<10x1xf32> to vector<10x10xf32>
    %53 = arith.subf %49, %52 : vector<10x10xf32>
    %54 = math.exp %53 : vector<10x10xf32>
    %cst_22 = arith.constant dense<0.000000e+00> : vector<10xf32>
    %55 = vector.multi_reduction <add>, %54, %cst_22 [1] : vector<10x10xf32> to vector<10xf32>
    %56 = vector.shape_cast %55 : vector<10xf32> to vector<10x1xf32>
    %57 = tpu.reciprocal %56 {approx = true} : vector<10x1xf32> -> vector<10x1xf32>
    %58 = vector.broadcast %57 : vector<10x1xf32> to vector<10x10xf32>
    %59 = arith.mulf %54, %58 : vector<10x10xf32>
    %60 = arith.truncf %59 : vector<10x10xf32> to vector<10x10xbf16>
    %61 = vector.extract_strided_slice %21 {offsets = [0, 8], sizes = [10, 8], strides = [1, 1]} : vector<10x32xf32> to vector<10x8xf32>
    %62 = arith.truncf %61 : vector<10x8xf32> to vector<10x8xbf16>
    %cst_23 = arith.constant dense<0.000000e+00> : vector<10x8xf32>
    %63 = tpu.matmul %60, %62, %cst_23 {dimension_numbers = #tpu.dot_dimension_numbers<[1], [0], [0], [1], [0, 0, 1, 1], [], []>} : vector<10x10xbf16>, vector<10x8xbf16>, vector<10x8xf32> -> vector<10x8xf32>
    %64 = vector.extract_strided_slice %19 {offsets = [0, 16], sizes = [10, 8], strides = [1, 1]} : vector<10x32xf32> to vector<10x8xf32>
    %65 = arith.truncf %64 : vector<10x8xf32> to vector<10x8xbf16>
    %66 = vector.extract_strided_slice %20 {offsets = [0, 16], sizes = [10, 8], strides = [1, 1]} : vector<10x32xf32> to vector<10x8xf32>
    %67 = arith.truncf %66 : vector<10x8xf32> to vector<10x8xbf16>
    %cst_24 = arith.constant dense<0.000000e+00> : vector<10x10xf32>
    %68 = tpu.matmul %65, %67, %cst_24 {dimension_numbers = #tpu.dot_dimension_numbers<[1], [1], [0], [0], [0, 0, 1, 0], [], []>} : vector<10x8xbf16>, vector<10x8xbf16>, vector<10x10xf32> -> vector<10x10xf32>
    %cst_25 = arith.constant 0.353553385 : f32
    %69 = vector.broadcast %cst_25 : f32 to vector<10x10xf32>
    %70 = arith.mulf %68, %69 : vector<10x10xf32>
    %cst_26 = arith.constant dense<0xFF800000> : vector<10xf32>
    %71 = vector.multi_reduction <maximumf>, %70, %cst_26 [1] : vector<10x10xf32> to vector<10xf32>
    %72 = vector.shape_cast %71 : vector<10xf32> to vector<10x1xf32>
    %73 = vector.broadcast %72 : vector<10x1xf32> to vector<10x10xf32>
    %74 = arith.subf %70, %73 : vector<10x10xf32>
    %75 = math.exp %74 : vector<10x10xf32>
    %cst_27 = arith.constant dense<0.000000e+00> : vector<10xf32>
    %76 = vector.multi_reduction <add>, %75, %cst_27 [1] : vector<10x10xf32> to vector<10xf32>
    %77 = vector.shape_cast %76 : vector<10xf32> to vector<10x1xf32>
    %78 = tpu.reciprocal %77 {approx = true} : vector<10x1xf32> -> vector<10x1xf32>
    %79 = vector.broadcast %78 : vector<10x1xf32> to vector<10x10xf32>
    %80 = arith.mulf %75, %79 : vector<10x10xf32>
    %81 = arith.truncf %80 : vector<10x10xf32> to vector<10x10xbf16>
    %82 = vector.extract_strided_slice %21 {offsets = [0, 16], sizes = [10, 8], strides = [1, 1]} : vector<10x32xf32> to vector<10x8xf32>
    %83 = arith.truncf %82 : vector<10x8xf32> to vector<10x8xbf16>
    %cst_28 = arith.constant dense<0.000000e+00> : vector<10x8xf32>
    %84 = tpu.matmul %81, %83, %cst_28 {dimension_numbers = #tpu.dot_dimension_numbers<[1], [0], [0], [1], [0, 0, 1, 1], [], []>} : vector<10x10xbf16>, vector<10x8xbf16>, vector<10x8xf32> -> vector<10x8xf32>
    %85 = vector.extract_strided_slice %19 {offsets = [0, 24], sizes = [10, 8], strides = [1, 1]} : vector<10x32xf32> to vector<10x8xf32>
    %86 = arith.truncf %85 : vector<10x8xf32> to vector<10x8xbf16>
    %87 = vector.extract_strided_slice %20 {offsets = [0, 24], sizes = [10, 8], strides = [1, 1]} : vector<10x32xf32> to vector<10x8xf32>
    %88 = arith.truncf %87 : vector<10x8xf32> to vector<10x8xbf16>
    %cst_29 = arith.constant dense<0.000000e+00> : vector<10x10xf32>
    %89 = tpu.matmul %86, %88, %cst_29 {dimension_numbers = #tpu.dot_dimension_numbers<[1], [1], [0], [0], [0, 0, 1, 0], [], []>} : vector<10x8xbf16>, vector<10x8xbf16>, vector<10x10xf32> -> vector<10x10xf32>
    %cst_30 = arith.constant 0.353553385 : f32
    %90 = vector.broadcast %cst_30 : f32 to vector<10x10xf32>
    %91 = arith.mulf %89, %90 : vector<10x10xf32>
    %cst_31 = arith.constant dense<0xFF800000> : vector<10xf32>
    %92 = vector.multi_reduction <maximumf>, %91, %cst_31 [1] : vector<10x10xf32> to vector<10xf32>
    %93 = vector.shape_cast %92 : vector<10xf32> to vector<10x1xf32>
    %94 = vector.broadcast %93 : vector<10x1xf32> to vector<10x10xf32>
    %95 = arith.subf %91, %94 : vector<10x10xf32>
    %96 = math.exp %95 : vector<10x10xf32>
    %cst_32 = arith.constant dense<0.000000e+00> : vector<10xf32>
    %97 = vector.multi_reduction <add>, %96, %cst_32 [1] : vector<10x10xf32> to vector<10xf32>
    %98 = vector.shape_cast %97 : vector<10xf32> to vector<10x1xf32>
    %99 = tpu.reciprocal %98 {approx = true} : vector<10x1xf32> -> vector<10x1xf32>
    %100 = vector.broadcast %99 : vector<10x1xf32> to vector<10x10xf32>
    %101 = arith.mulf %96, %100 : vector<10x10xf32>
    %102 = arith.truncf %101 : vector<10x10xf32> to vector<10x10xbf16>
    %103 = vector.extract_strided_slice %21 {offsets = [0, 24], sizes = [10, 8], strides = [1, 1]} : vector<10x32xf32> to vector<10x8xf32>
    %104 = arith.truncf %103 : vector<10x8xf32> to vector<10x8xbf16>
    %cst_33 = arith.constant dense<0.000000e+00> : vector<10x8xf32>
    %105 = tpu.matmul %102, %104, %cst_33 {dimension_numbers = #tpu.dot_dimension_numbers<[1], [0], [0], [1], [0, 0, 1, 1], [], []>} : vector<10x10xbf16>, vector<10x8xbf16>, vector<10x8xf32> -> vector<10x8xf32>
    %106 = tpu.concatenate %42, %63, %84, %105 in 1 : vector<10x8xf32>, vector<10x8xf32>, vector<10x8xf32>, vector<10x8xf32> -> vector<10x32xf32>
    %107 = vector.extract_strided_slice %12 {offsets = [10, 0], sizes = [10, 32], strides = [1, 1]} : vector<20x32xf32> to vector<10x32xf32>
    %108 = vector.extract_strided_slice %13 {offsets = [10, 0], sizes = [10, 32], strides = [1, 1]} : vector<20x32xf32> to vector<10x32xf32>
    %109 = vector.extract_strided_slice %14 {offsets = [10, 0], sizes = [10, 32], strides = [1, 1]} : vector<20x32xf32> to vector<10x32xf32>
    %110 = vector.extract_strided_slice %107 {offsets = [0, 0], sizes = [10, 8], strides = [1, 1]} : vector<10x32xf32> to vector<10x8xf32>
    %111 = arith.truncf %110 : vector<10x8xf32> to vector<10x8xbf16>
    %112 = vector.extract_strided_slice %108 {offsets = [0, 0], sizes = [10, 8], strides = [1, 1]} : vector<10x32xf32> to vector<10x8xf32>
    %113 = arith.truncf %112 : vector<10x8xf32> to vector<10x8xbf16>
    %cst_34 = arith.constant dense<0.000000e+00> : vector<10x10xf32>
    %114 = tpu.matmul %111, %113, %cst_34 {dimension_numbers = #tpu.dot_dimension_numbers<[1], [1], [0], [0], [0, 0, 1, 0], [], []>} : vector<10x8xbf16>, vector<10x8xbf16>, vector<10x10xf32> -> vector<10x10xf32>
    %cst_35 = arith.constant 0.353553385 : f32
    %115 = vector.broadcast %cst_35 : f32 to vector<10x10xf32>
    %116 = arith.mulf %114, %115 : vector<10x10xf32>
    %cst_36 = arith.constant dense<0xFF800000> : vector<10xf32>
    %117 = vector.multi_reduction <maximumf>, %116, %cst_36 [1] : vector<10x10xf32> to vector<10xf32>
    %118 = vector.shape_cast %117 : vector<10xf32> to vector<10x1xf32>
    %119 = vector.broadcast %118 : vector<10x1xf32> to vector<10x10xf32>
    %120 = arith.subf %116, %119 : vector<10x10xf32>
    %121 = math.exp %120 : vector<10x10xf32>
    %cst_37 = arith.constant dense<0.000000e+00> : vector<10xf32>
    %122 = vector.multi_reduction <add>, %121, %cst_37 [1] : vector<10x10xf32> to vector<10xf32>
    %123 = vector.shape_cast %122 : vector<10xf32> to vector<10x1xf32>
    %124 = tpu.reciprocal %123 {approx = true} : vector<10x1xf32> -> vector<10x1xf32>
    %125 = vector.broadcast %124 : vector<10x1xf32> to vector<10x10xf32>
    %126 = arith.mulf %121, %125 : vector<10x10xf32>
    %127 = arith.truncf %126 : vector<10x10xf32> to vector<10x10xbf16>
    %128 = vector.extract_strided_slice %109 {offsets = [0, 0], sizes = [10, 8], strides = [1, 1]} : vector<10x32xf32> to vector<10x8xf32>
    %129 = arith.truncf %128 : vector<10x8xf32> to vector<10x8xbf16>
    %cst_38 = arith.constant dense<0.000000e+00> : vector<10x8xf32>
    %130 = tpu.matmul %127, %129, %cst_38 {dimension_numbers = #tpu.dot_dimension_numbers<[1], [0], [0], [1], [0, 0, 1, 1], [], []>} : vector<10x10xbf16>, vector<10x8xbf16>, vector<10x8xf32> -> vector<10x8xf32>
    %131 = vector.extract_strided_slice %107 {offsets = [0, 8], sizes = [10, 8], strides = [1, 1]} : vector<10x32xf32> to vector<10x8xf32>
    %132 = arith.truncf %131 : vector<10x8xf32> to vector<10x8xbf16>
    %133 = vector.extract_strided_slice %108 {offsets = [0, 8], sizes = [10, 8], strides = [1, 1]} : vector<10x32xf32> to vector<10x8xf32>
    %134 = arith.truncf %133 : vector<10x8xf32> to vector<10x8xbf16>
    %cst_39 = arith.constant dense<0.000000e+00> : vector<10x10xf32>
    %135 = tpu.matmul %132, %134, %cst_39 {dimension_numbers = #tpu.dot_dimension_numbers<[1], [1], [0], [0], [0, 0, 1, 0], [], []>} : vector<10x8xbf16>, vector<10x8xbf16>, vector<10x10xf32> -> vector<10x10xf32>
    %cst_40 = arith.constant 0.353553385 : f32
    %136 = vector.broadcast %cst_40 : f32 to vector<10x10xf32>
    %137 = arith.mulf %135, %136 : vector<10x10xf32>
    %cst_41 = arith.constant dense<0xFF800000> : vector<10xf32>
    %138 = vector.multi_reduction <maximumf>, %137, %cst_41 [1] : vector<10x10xf32> to vector<10xf32>
    %139 = vector.shape_cast %138 : vector<10xf32> to vector<10x1xf32>
    %140 = vector.broadcast %139 : vector<10x1xf32> to vector<10x10xf32>
    %141 = arith.subf %137, %140 : vector<10x10xf32>
    %142 = math.exp %141 : vector<10x10xf32>
    %cst_42 = arith.constant dense<0.000000e+00> : vector<10xf32>
    %143 = vector.multi_reduction <add>, %142, %cst_42 [1] : vector<10x10xf32> to vector<10xf32>
    %144 = vector.shape_cast %143 : vector<10xf32> to vector<10x1xf32>
    %145 = tpu.reciprocal %144 {approx = true} : vector<10x1xf32> -> vector<10x1xf32>
    %146 = vector.broadcast %145 : vector<10x1xf32> to vector<10x10xf32>
    %147 = arith.mulf %142, %146 : vector<10x10xf32>
    %148 = arith.truncf %147 : vector<10x10xf32> to vector<10x10xbf16>
    %149 = vector.extract_strided_slice %109 {offsets = [0, 8], sizes = [10, 8], strides = [1, 1]} : vector<10x32xf32> to vector<10x8xf32>
    %150 = arith.truncf %149 : vector<10x8xf32> to vector<10x8xbf16>
    %cst_43 = arith.constant dense<0.000000e+00> : vector<10x8xf32>
    %151 = tpu.matmul %148, %150, %cst_43 {dimension_numbers = #tpu.dot_dimension_numbers<[1], [0], [0], [1], [0, 0, 1, 1], [], []>} : vector<10x10xbf16>, vector<10x8xbf16>, vector<10x8xf32> -> vector<10x8xf32>
    %152 = vector.extract_strided_slice %107 {offsets = [0, 16], sizes = [10, 8], strides = [1, 1]} : vector<10x32xf32> to vector<10x8xf32>
    %153 = arith.truncf %152 : vector<10x8xf32> to vector<10x8xbf16>
    %154 = vector.extract_strided_slice %108 {offsets = [0, 16], sizes = [10, 8], strides = [1, 1]} : vector<10x32xf32> to vector<10x8xf32>
    %155 = arith.truncf %154 : vector<10x8xf32> to vector<10x8xbf16>
    %cst_44 = arith.constant dense<0.000000e+00> : vector<10x10xf32>
    %156 = tpu.matmul %153, %155, %cst_44 {dimension_numbers = #tpu.dot_dimension_numbers<[1], [1], [0], [0], [0, 0, 1, 0], [], []>} : vector<10x8xbf16>, vector<10x8xbf16>, vector<10x10xf32> -> vector<10x10xf32>
    %cst_45 = arith.constant 0.353553385 : f32
    %157 = vector.broadcast %cst_45 : f32 to vector<10x10xf32>
    %158 = arith.mulf %156, %157 : vector<10x10xf32>
    %cst_46 = arith.constant dense<0xFF800000> : vector<10xf32>
    %159 = vector.multi_reduction <maximumf>, %158, %cst_46 [1] : vector<10x10xf32> to vector<10xf32>
    %160 = vector.shape_cast %159 : vector<10xf32> to vector<10x1xf32>
    %161 = vector.broadcast %160 : vector<10x1xf32> to vector<10x10xf32>
    %162 = arith.subf %158, %161 : vector<10x10xf32>
    %163 = math.exp %162 : vector<10x10xf32>
    %cst_47 = arith.constant dense<0.000000e+00> : vector<10xf32>
    %164 = vector.multi_reduction <add>, %163, %cst_47 [1] : vector<10x10xf32> to vector<10xf32>
    %165 = vector.shape_cast %164 : vector<10xf32> to vector<10x1xf32>
    %166 = tpu.reciprocal %165 {approx = true} : vector<10x1xf32> -> vector<10x1xf32>
    %167 = vector.broadcast %166 : vector<10x1xf32> to vector<10x10xf32>
    %168 = arith.mulf %163, %167 : vector<10x10xf32>
    %169 = arith.truncf %168 : vector<10x10xf32> to vector<10x10xbf16>
    %170 = vector.extract_strided_slice %109 {offsets = [0, 16], sizes = [10, 8], strides = [1, 1]} : vector<10x32xf32> to vector<10x8xf32>
    %171 = arith.truncf %170 : vector<10x8xf32> to vector<10x8xbf16>
    %cst_48 = arith.constant dense<0.000000e+00> : vector<10x8xf32>
    %172 = tpu.matmul %169, %171, %cst_48 {dimension_numbers = #tpu.dot_dimension_numbers<[1], [0], [0], [1], [0, 0, 1, 1], [], []>} : vector<10x10xbf16>, vector<10x8xbf16>, vector<10x8xf32> -> vector<10x8xf32>
    %173 = vector.extract_strided_slice %107 {offsets = [0, 24], sizes = [10, 8], strides = [1, 1]} : vector<10x32xf32> to vector<10x8xf32>
    %174 = arith.truncf %173 : vector<10x8xf32> to vector<10x8xbf16>
    %175 = vector.extract_strided_slice %108 {offsets = [0, 24], sizes = [10, 8], strides = [1, 1]} : vector<10x32xf32> to vector<10x8xf32>
    %176 = arith.truncf %175 : vector<10x8xf32> to vector<10x8xbf16>
    %cst_49 = arith.constant dense<0.000000e+00> : vector<10x10xf32>
    %177 = tpu.matmul %174, %176, %cst_49 {dimension_numbers = #tpu.dot_dimension_numbers<[1], [1], [0], [0], [0, 0, 1, 0], [], []>} : vector<10x8xbf16>, vector<10x8xbf16>, vector<10x10xf32> -> vector<10x10xf32>
    %cst_50 = arith.constant 0.353553385 : f32
    %178 = vector.broadcast %cst_50 : f32 to vector<10x10xf32>
    %179 = arith.mulf %177, %178 : vector<10x10xf32>
    %cst_51 = arith.constant dense<0xFF800000> : vector<10xf32>
    %180 = vector.multi_reduction <maximumf>, %179, %cst_51 [1] : vector<10x10xf32> to vector<10xf32>
    %181 = vector.shape_cast %180 : vector<10xf32> to vector<10x1xf32>
    %182 = vector.broadcast %181 : vector<10x1xf32> to vector<10x10xf32>
    %183 = arith.subf %179, %182 : vector<10x10xf32>
    %184 = math.exp %183 : vector<10x10xf32>
    %cst_52 = arith.constant dense<0.000000e+00> : vector<10xf32>
    %185 = vector.multi_reduction <add>, %184, %cst_52 [1] : vector<10x10xf32> to vector<10xf32>
    %186 = vector.shape_cast %185 : vector<10xf32> to vector<10x1xf32>
    %187 = tpu.reciprocal %186 {approx = true} : vector<10x1xf32> -> vector<10x1xf32>
    %188 = vector.broadcast %187 : vector<10x1xf32> to vector<10x10xf32>
    %189 = arith.mulf %184, %188 : vector<10x10xf32>
    %190 = arith.truncf %189 : vector<10x10xf32> to vector<10x10xbf16>
    %191 = vector.extract_strided_slice %109 {offsets = [0, 24], sizes = [10, 8], strides = [1, 1]} : vector<10x32xf32> to vector<10x8xf32>
    %192 = arith.truncf %191 : vector<10x8xf32> to vector<10x8xbf16>
    %cst_53 = arith.constant dense<0.000000e+00> : vector<10x8xf32>
    %193 = tpu.matmul %190, %192, %cst_53 {dimension_numbers = #tpu.dot_dimension_numbers<[1], [0], [0], [1], [0, 0, 1, 1], [], []>} : vector<10x10xbf16>, vector<10x8xbf16>, vector<10x8xf32> -> vector<10x8xf32>
    %194 = tpu.concatenate %130, %151, %172, %193 in 1 : vector<10x8xf32>, vector<10x8xf32>, vector<10x8xf32>, vector<10x8xf32> -> vector<10x32xf32>
    %195 = tpu.concatenate %106, %194 in 0 : vector<10x32xf32>, vector<10x32xf32> -> vector<20x32xf32>
    %196 = arith.truncf %195 : vector<20x32xf32> to vector<20x32xbf16>
    %cst_54 = arith.constant dense<0.000000e+00> : vector<20x32xf32>
    %197 = tpu.matmul %196, %16, %cst_54 {dimension_numbers = #tpu.dot_dimension_numbers<[1], [0], [0], [1], [0, 0, 1, 1], [], []>} : vector<20x32xbf16>, vector<32x32xbf16>, vector<20x32xf32> -> vector<20x32xf32>
    %198 = vector.broadcast %18 : vector<1x32xf32> to vector<20x32xf32>
    %199 = arith.addf %197, %198 : vector<20x32xf32>
    %200 = arith.addf %3, %199 : vector<20x32xf32>
    %c0_55 = arith.constant 0 : index
    %c0_56 = arith.constant 0 : index
    %c0_57 = arith.constant 0 : index
    %201 = vector.load %arg6[%c0_55, %c0_56, %c0_57] : memref<1x1x32xf32, #tpu.memory_space<vmem>>, vector<1x1x32xf32>
    %202 = vector.shape_cast %201 : vector<1x1x32xf32> to vector<1x32xf32>
    %c0_58 = arith.constant 0 : index
    %c0_59 = arith.constant 0 : index
    %c0_60 = arith.constant 0 : index
    %203 = vector.load %arg7[%c0_58, %c0_59, %c0_60] : memref<1x1x32xf32, #tpu.memory_space<vmem>>, vector<1x1x32xf32>
    %204 = vector.shape_cast %203 : vector<1x1x32xf32> to vector<1x32xf32>
    %cst_61 = arith.constant dense<0.000000e+00> : vector<20xf32>
    %205 = vector.multi_reduction <add>, %200, %cst_61 [1] : vector<20x32xf32> to vector<20xf32>
    %206 = vector.shape_cast %205 : vector<20xf32> to vector<20x1xf32>
    %cst_62 = arith.constant 3.200000e+01 : f32
    %207 = vector.broadcast %cst_62 : f32 to vector<20x1xf32>
    %208 = arith.divf %206, %207 : vector<20x1xf32>
    %209 = vector.broadcast %208 : vector<20x1xf32> to vector<20x32xf32>
    %210 = arith.subf %200, %209 : vector<20x32xf32>
    %211 = arith.mulf %210, %210 : vector<20x32xf32>
    %cst_63 = arith.constant dense<0.000000e+00> : vector<20xf32>
    %212 = vector.multi_reduction <add>, %211, %cst_63 [1] : vector<20x32xf32> to vector<20xf32>
    %213 = vector.shape_cast %212 : vector<20xf32> to vector<20x1xf32>
    %cst_64 = arith.constant 3.200000e+01 : f32
    %214 = vector.broadcast %cst_64 : f32 to vector<20x1xf32>
    %215 = arith.divf %213, %214 : vector<20x1xf32>
    %216 = vector.broadcast %208 : vector<20x1xf32> to vector<20x32xf32>
    %217 = arith.subf %200, %216 : vector<20x32xf32>
    %cst_65 = arith.constant 9.99999974E-6 : f32
    %218 = vector.broadcast %cst_65 : f32 to vector<20x1xf32>
    %219 = arith.addf %215, %218 : vector<20x1xf32>
    %220 = math.rsqrt %219 : vector<20x1xf32>
    %221 = vector.broadcast %220 : vector<20x1xf32> to vector<20x32xf32>
    %222 = arith.mulf %217, %221 : vector<20x32xf32>
    %223 = vector.broadcast %202 : vector<1x32xf32> to vector<20x32xf32>
    %224 = arith.mulf %222, %223 : vector<20x32xf32>
    %225 = vector.broadcast %204 : vector<1x32xf32> to vector<20x32xf32>
    %226 = arith.addf %224, %225 : vector<20x32xf32>
    %227 = arith.truncf %226 : vector<20x32xf32> to vector<20x32xbf16>
    %c0_66 = arith.constant 0 : index
    %c0_67 = arith.constant 0 : index
    %c0_68 = arith.constant 0 : index
    %228 = vector.load %arg8[%c0_66, %c0_67, %c0_68] : memref<1x32x64xbf16, #tpu.memory_space<vmem>>, vector<1x32x64xbf16>
    %229 = vector.shape_cast %228 : vector<1x32x64xbf16> to vector<32x64xbf16>
    %cst_69 = arith.constant dense<0.000000e+00> : vector<20x64xf32>
    %230 = tpu.matmul %227, %229, %cst_69 {dimension_numbers = #tpu.dot_dimension_numbers<[1], [0], [0], [1], [0, 0, 1, 1], [], []>} : vector<20x32xbf16>, vector<32x64xbf16>, vector<20x64xf32> -> vector<20x64xf32>
    %c0_70 = arith.constant 0 : index
    %c0_71 = arith.constant 0 : index
    %c0_72 = arith.constant 0 : index
    %231 = vector.load %arg9[%c0_70, %c0_71, %c0_72] : memref<1x1x64xf32, #tpu.memory_space<vmem>>, vector<1x1x64xf32>
    %232 = vector.shape_cast %231 : vector<1x1x64xf32> to vector<1x64xf32>
    %233 = vector.broadcast %232 : vector<1x64xf32> to vector<20x64xf32>
    %234 = arith.addf %230, %233 : vector<20x64xf32>
    %cst_73 = arith.constant 0.000000e+00 : f32
    %235 = vector.broadcast %cst_73 : f32 to vector<20x64xf32>
    %236 = arith.maximumf %234, %235 : vector<20x64xf32>
    %237 = arith.truncf %236 : vector<20x64xf32> to vector<20x64xbf16>
    %c0_74 = arith.constant 0 : index
    %c0_75 = arith.constant 0 : index
    %c0_76 = arith.constant 0 : index
    %238 = vector.load %arg10[%c0_74, %c0_75, %c0_76] : memref<1x64x32xbf16, #tpu.memory_space<vmem>>, vector<1x64x32xbf16>
    %239 = vector.shape_cast %238 : vector<1x64x32xbf16> to vector<64x32xbf16>
    %cst_77 = arith.constant dense<0.000000e+00> : vector<20x32xf32>
    %240 = tpu.matmul %237, %239, %cst_77 {dimension_numbers = #tpu.dot_dimension_numbers<[1], [0], [0], [1], [0, 0, 1, 1], [], []>} : vector<20x64xbf16>, vector<64x32xbf16>, vector<20x32xf32> -> vector<20x32xf32>
    %c0_78 = arith.constant 0 : index
    %c0_79 = arith.constant 0 : index
    %c0_80 = arith.constant 0 : index
    %241 = vector.load %arg11[%c0_78, %c0_79, %c0_80] : memref<1x1x32xf32, #tpu.memory_space<vmem>>, vector<1x1x32xf32>
    %242 = vector.shape_cast %241 : vector<1x1x32xf32> to vector<1x32xf32>
    %243 = vector.broadcast %242 : vector<1x32xf32> to vector<20x32xf32>
    %244 = arith.addf %240, %243 : vector<20x32xf32>
    %245 = arith.addf %226, %244 : vector<20x32xf32>
    %c0_81 = arith.constant 0 : index
    %c0_82 = arith.constant 0 : index
    %c0_83 = arith.constant 0 : index
    %246 = vector.load %arg12[%c0_81, %c0_82, %c0_83] : memref<1x1x32xf32, #tpu.memory_space<vmem>>, vector<1x1x32xf32>
    %247 = vector.shape_cast %246 : vector<1x1x32xf32> to vector<1x32xf32>
    %c0_84 = arith.constant 0 : index
    %c0_85 = arith.constant 0 : index
    %c0_86 = arith.constant 0 : index
    %248 = vector.load %arg13[%c0_84, %c0_85, %c0_86] : memref<1x1x32xf32, #tpu.memory_space<vmem>>, vector<1x1x32xf32>
    %249 = vector.shape_cast %248 : vector<1x1x32xf32> to vector<1x32xf32>
    %cst_87 = arith.constant dense<0.000000e+00> : vector<20xf32>
    %250 = vector.multi_reduction <add>, %245, %cst_87 [1] : vector<20x32xf32> to vector<20xf32>
    %251 = vector.shape_cast %250 : vector<20xf32> to vector<20x1xf32>
    %cst_88 = arith.constant 3.200000e+01 : f32
    %252 = vector.broadcast %cst_88 : f32 to vector<20x1xf32>
    %253 = arith.divf %251, %252 : vector<20x1xf32>
    %254 = vector.broadcast %253 : vector<20x1xf32> to vector<20x32xf32>
    %255 = arith.subf %245, %254 : vector<20x32xf32>
    %256 = arith.mulf %255, %255 : vector<20x32xf32>
    %cst_89 = arith.constant dense<0.000000e+00> : vector<20xf32>
    %257 = vector.multi_reduction <add>, %256, %cst_89 [1] : vector<20x32xf32> to vector<20xf32>
    %258 = vector.shape_cast %257 : vector<20xf32> to vector<20x1xf32>
    %cst_90 = arith.constant 3.200000e+01 : f32
    %259 = vector.broadcast %cst_90 : f32 to vector<20x1xf32>
    %260 = arith.divf %258, %259 : vector<20x1xf32>
    %261 = vector.broadcast %253 : vector<20x1xf32> to vector<20x32xf32>
    %262 = arith.subf %245, %261 : vector<20x32xf32>
    %cst_91 = arith.constant 9.99999974E-6 : f32
    %263 = vector.broadcast %cst_91 : f32 to vector<20x1xf32>
    %264 = arith.addf %260, %263 : vector<20x1xf32>
    %265 = math.rsqrt %264 : vector<20x1xf32>
    %266 = vector.broadcast %265 : vector<20x1xf32> to vector<20x32xf32>
    %267 = arith.mulf %262, %266 : vector<20x32xf32>
    %268 = vector.broadcast %247 : vector<1x32xf32> to vector<20x32xf32>
    %269 = arith.mulf %267, %268 : vector<20x32xf32>
    %270 = vector.broadcast %249 : vector<1x32xf32> to vector<20x32xf32>
    %271 = arith.addf %269, %270 : vector<20x32xf32>
    %c0_92 = arith.constant 0 : index
    %c0_93 = arith.constant 0 : index
    %272 = vector.load %arg17[%c0_92, %c0_93] : memref<20x32xf32, #tpu.memory_space<vmem>>, vector<20x32xf32>
    tpu.vector_store %arg17[%c0_92, %c0_93], %271 {strides = array<i32>} : memref<20x32xf32, #tpu.memory_space<vmem>>, vector<20x32xf32>,
    %c1_i32 = arith.constant 1 : i32
    %273 = arith.cmpi eq, %arg0, %c1_i32 : i32
    %274 = arith.extui %273 : i1 to i32
    %c0_i32_94 = arith.constant 0 : i32
    %275 = arith.cmpi ne, %274, %c0_i32_94 : i32
    scf.if %275 {
      %c0_95 = arith.constant 0 : index
      %c0_96 = arith.constant 0 : index
      %276 = vector.load %arg14[%c0_95, %c0_96] : memref<1x32xf32, #tpu.memory_space<vmem>>, vector<1x32xf32>
      %c0_97 = arith.constant 0 : index
      %c0_98 = arith.constant 0 : index
      %277 = vector.load %arg15[%c0_97, %c0_98] : memref<1x32xf32, #tpu.memory_space<vmem>>, vector<1x32xf32>
      %cst_99 = arith.constant dense<0.000000e+00> : vector<20xf32>
      %278 = vector.multi_reduction <add>, %271, %cst_99 [1] : vector<20x32xf32> to vector<20xf32>
      %279 = vector.shape_cast %278 : vector<20xf32> to vector<20x1xf32>
      %cst_100 = arith.constant 3.200000e+01 : f32
      %280 = vector.broadcast %cst_100 : f32 to vector<20x1xf32>
      %281 = arith.divf %279, %280 : vector<20x1xf32>
      %282 = vector.broadcast %281 : vector<20x1xf32> to vector<20x32xf32>
      %283 = arith.subf %271, %282 : vector<20x32xf32>
      %284 = arith.mulf %283, %283 : vector<20x32xf32>
      %cst_101 = arith.constant dense<0.000000e+00> : vector<20xf32>
      %285 = vector.multi_reduction <add>, %284, %cst_101 [1] : vector<20x32xf32> to vector<20xf32>
      %286 = vector.shape_cast %285 : vector<20xf32> to vector<20x1xf32>
      %cst_102 = arith.constant 3.200000e+01 : f32
      %287 = vector.broadcast %cst_102 : f32 to vector<20x1xf32>
      %288 = arith.divf %286, %287 : vector<20x1xf32>
      %289 = vector.broadcast %281 : vector<20x1xf32> to vector<20x32xf32>
      %290 = arith.subf %271, %289 : vector<20x32xf32>
      %cst_103 = arith.constant 9.99999974E-6 : f32
      %291 = vector.broadcast %cst_103 : f32 to vector<20x1xf32>
      %292 = arith.addf %288, %291 : vector<20x1xf32>
      %293 = math.rsqrt %292 : vector<20x1xf32>
      %294 = vector.broadcast %293 : vector<20x1xf32> to vector<20x32xf32>
      %295 = arith.mulf %290, %294 : vector<20x32xf32>
      %296 = vector.broadcast %276 : vector<1x32xf32> to vector<20x32xf32>
      %297 = arith.mulf %295, %296 : vector<20x32xf32>
      %298 = vector.broadcast %277 : vector<1x32xf32> to vector<20x32xf32>
      %299 = arith.addf %297, %298 : vector<20x32xf32>
      %c0_104 = arith.constant 0 : index
      %c0_105 = arith.constant 0 : index
      %300 = vector.load %arg16[%c0_104, %c0_105] : memref<20x32xf32, #tpu.memory_space<vmem>>, vector<20x32xf32>
      tpu.vector_store %arg16[%c0_104, %c0_105], %299 {strides = array<i32>} : memref<20x32xf32, #tpu.memory_space<vmem>>, vector<20x32xf32>,
    } else {
    }
    return
  }
  func.func @transform_0(%arg0: i32) -> (i32, i32) {
    %c0_i32 = arith.constant 0 : i32
    %c0_i32_0 = arith.constant 0 : i32
    %c0_i32_1 = arith.constant 0 : i32
    return %c0_i32, %c0_i32_0 : i32, i32
  }
  func.func @transform_1(%arg0: i32) -> (i32, i32, i32) {
    %c0_i32 = arith.constant 0 : i32
    %c0_i32_0 = arith.constant 0 : i32
    %c0_i32_1 = arith.constant 0 : i32
    return %arg0, %c0_i32, %c0_i32_0 : i32, i32, i32
  }
  func.func @transform_2(%arg0: i32) -> (i32, i32, i32) {
    %c0_i32 = arith.constant 0 : i32
    %c0_i32_0 = arith.constant 0 : i32
    %c0_i32_1 = arith.constant 0 : i32
    return %arg0, %c0_i32, %c0_i32_0 : i32, i32, i32
  }
  func.func @transform_3(%arg0: i32) -> (i32, i32, i32) {
    %c0_i32 = arith.constant 0 : i32
    %c0_i32_0 = arith.constant 0 : i32
    %c0_i32_1 = arith.constant 0 : i32
    return %arg0, %c0_i32, %c0_i32_0 : i32, i32, i32
  }
  func.func @transform_4(%arg0: i32) -> (i32, i32, i32) {
    %c0_i32 = arith.constant 0 : i32
    %c0_i32_0 = arith.constant 0 : i32
    %c0_i32_1 = arith.constant 0 : i32
    return %arg0, %c0_i32, %c0_i32_0 : i32, i32, i32
  }
  func.func @transform_5(%arg0: i32) -> (i32, i32, i32) {
    %c0_i32 = arith.constant 0 : i32
    %c0_i32_0 = arith.constant 0 : i32
    %c0_i32_1 = arith.constant 0 : i32
    return %arg0, %c0_i32, %c0_i32_0 : i32, i32, i32
  }
  func.func @transform_6(%arg0: i32) -> (i32, i32, i32) {
    %c0_i32 = arith.constant 0 : i32
    %c0_i32_0 = arith.constant 0 : i32
    %c0_i32_1 = arith.constant 0 : i32
    return %arg0, %c0_i32, %c0_i32_0 : i32, i32, i32
  }
  func.func @transform_7(%arg0: i32) -> (i32, i32, i32) {
    %c0_i32 = arith.constant 0 : i32
    %c0_i32_0 = arith.constant 0 : i32
    %c0_i32_1 = arith.constant 0 : i32
    return %arg0, %c0_i32, %c0_i32_0 : i32, i32, i32
  }
  func.func @transform_8(%arg0: i32) -> (i32, i32, i32) {
    %c0_i32 = arith.constant 0 : i32
    %c0_i32_0 = arith.constant 0 : i32
    %c0_i32_1 = arith.constant 0 : i32
    return %arg0, %c0_i32, %c0_i32_0 : i32, i32, i32
  }
  func.func @transform_9(%arg0: i32) -> (i32, i32, i32) {
    %c0_i32 = arith.constant 0 : i32
    %c0_i32_0 = arith.constant 0 : i32
    %c0_i32_1 = arith.constant 0 : i32
    return %arg0, %c0_i32, %c0_i32_0 : i32, i32, i32
  }
  func.func @transform_10(%arg0: i32) -> (i32, i32, i32) {
    %c0_i32 = arith.constant 0 : i32
    %c0_i32_0 = arith.constant 0 : i32
    %c0_i32_1 = arith.constant 0 : i32
    return %arg0, %c0_i32, %c0_i32_0 : i32, i32, i32
  }
  func.func @transform_11(%arg0: i32) -> (i32, i32, i32) {
    %c0_i32 = arith.constant 0 : i32
    %c0_i32_0 = arith.constant 0 : i32
    %c0_i32_1 = arith.constant 0 : i32
    return %arg0, %c0_i32, %c0_i32_0 : i32, i32, i32
  }
  func.func @transform_12(%arg0: i32) -> (i32, i32, i32) {
    %c0_i32 = arith.constant 0 : i32
    %c0_i32_0 = arith.constant 0 : i32
    %c0_i32_1 = arith.constant 0 : i32
    return %arg0, %c0_i32, %c0_i32_0 : i32, i32, i32
  }
  func.func @transform_13(%arg0: i32) -> (i32, i32) {
    %c0_i32 = arith.constant 0 : i32
    %c0_i32_0 = arith.constant 0 : i32
    %c0_i32_1 = arith.constant 0 : i32
    return %c0_i32, %c0_i32_0 : i32, i32
  }
  func.func @transform_14(%arg0: i32) -> (i32, i32) {
    %c0_i32 = arith.constant 0 : i32
    %c0_i32_0 = arith.constant 0 : i32
    %c0_i32_1 = arith.constant 0 : i32
    return %c0_i32, %c0_i32_0 : i32, i32
  }
  func.func @transform_15(%arg0: i32) -> (i32, i32) {
    %c0_i32 = arith.constant 0 : i32
    %c0_i32_0 = arith.constant 0 : i32
    %c0_i32_1 = arith.constant 0 : i32
    return %c0_i32, %c0_i32_0 : i32, i32
  }
}

</mosaic_0001>

<llo_original>
// kernel: tpu_custom_call.1
$region0: #{tpu_custom_call.1}
  #allocation0 [shape = 'u32[]', space=smem, size = 0x4, offset = 0x4, fixed_abs, tag = 'smem constant byte address 0x4 - core index']
  #allocation1 [shape = 'u32[144,128]{1,0:T(1,128)}', space=vmem, size = 0x12000, scoped, tag = 'internal scratch']
  #allocation2 [shape = 'f32[20,32]{1,0:T(8,128)}', space=vmem, size = 0x3000, scoped, tag = 'scratch operand']
  %s0 = inlined_call_operand.hbm [shape: f32[20,32], index: 0, kind: input, shape index: {}]
  %s1 = inlined_call_operand.vmem [shape: bf16[2,32,96], index: 1, kind: input, shape index: {}]
  %s2 = inlined_call_operand.vmem [shape: f32[2,1,96], index: 2, kind: input, shape index: {}]
  %s3 = inlined_call_operand.vmem [shape: bf16[2,32,32], index: 3, kind: input, shape index: {}]
  %s4 = inlined_call_operand.vmem [shape: f32[2,1,32], index: 4, kind: input, shape index: {}]
  %s5 = inlined_call_operand.vmem [shape: f32[2,1,32], index: 5, kind: input, shape index: {}]
  %s6 = inlined_call_operand.vmem [shape: f32[2,1,32], index: 6, kind: input, shape index: {}]
  %s7 = inlined_call_operand.vmem [shape: bf16[2,32,64], index: 7, kind: input, shape index: {}]
  %s8 = inlined_call_operand.vmem [shape: f32[2,1,64], index: 8, kind: input, shape index: {}]
  %s9 = inlined_call_operand.vmem [shape: bf16[2,64,32], index: 9, kind: input, shape index: {}]
  %s10 = inlined_call_operand.vmem [shape: f32[2,1,32], index: 10, kind: input, shape index: {}]
  %s11 = inlined_call_operand.vmem [shape: f32[2,1,32], index: 11, kind: input, shape index: {}]
  %s12 = inlined_call_operand.vmem [shape: f32[2,1,32], index: 12, kind: input, shape index: {}]
  %s13 = inlined_call_operand.vmem [shape: f32[1,32], index: 13, kind: input, shape index: {}]
  %s14 = inlined_call_operand.vmem [shape: f32[1,32], index: 14, kind: input, shape index: {}]
  %s15 = inlined_call_operand.hbm [shape: f32[20,32], index: 15, kind: output, shape index: {}]
  %s16 = sld [smem:[#allocation0]]
  $region105: #{tpu_custom_call.1} parent=0
    _
  %s18 = ssub.s32 1, %s16
  %s19 = scalar_select 0, %s18, %s16
  $region1: #{tpu_custom_call.1} parent=0
    #allocation3 [shape = 'u8[12288]{0}', space=vmem, size = 0x3000, scoped, tag = 'input window, operand 0, single buffered']
    #allocation4 [shape = 's32[2]{0}', space=sflag, size = 0x8, scoped, tag = 'scoped memory for tpu_custom_call.1']
    #allocation5 [shape = 's32[2]{0}', space=sflag, size = 0x8, scoped, tag = 'scoped memory for tpu_custom_call.1']
    #allocation6 [shape = 'u8[12288]{0}', space=vmem, size = 0x3000, scoped, tag = 'output window, operand 0, single buffered']
    %20 = vsyncpa [#allocation4], 0
    %21 = vsyncpa [#allocation5], 0
    loop: start=0, step=1, limit=4
    $region2: #{tpu_custom_call.1} parent=1 // loop_pre_header
      _
    $region3: #{tpu_custom_call.1} parent=1 // loop_header
      %s23 = sphi 0, %s27
      %p24 = scmp.ge.s32.totalorder %s23, 4
      %s31 = sphi 0, %s31
      %s33 = sphi 0, %s31
      %s34 = sphi 0, %s33
      %s48 = sphi 0, %s34
      %s54 = sphi 0, %s56
      %s57 = sphi 0, %s54
      %s58 = sphi 0, %s57
      %s74 = sphi 0, %s58
      %s80 = sphi 0, %s82
      %s83 = sphi 0, %s80
      %s84 = sphi 0, %s83
      %s100 = sphi 0, %s84
      %s106 = sphi 0, %s108
      %s109 = sphi 0, %s106
      %s110 = sphi 0, %s109
      %s126 = sphi 0, %s110
      %s132 = sphi 0, %s134
      %s135 = sphi 0, %s132
      %s136 = sphi 0, %s135
      %s152 = sphi 0, %s136
      %s158 = sphi 0, %s160
      %s161 = sphi 0, %s158
      %s162 = sphi 0, %s161
      %s178 = sphi 0, %s162
      %s184 = sphi 0, %s186
      %s187 = sphi 0, %s184
      %s188 = sphi 0, %s187
      %s204 = sphi 0, %s188
      %s210 = sphi 0, %s212
      %s213 = sphi 0, %s210
      %s214 = sphi 0, %s213
      %s230 = sphi 0, %s214
      %s236 = sphi 0, %s238
      %s239 = sphi 0, %s236
      %s240 = sphi 0, %s239
      %s256 = sphi 0, %s240
      %s262 = sphi 0, %s264
      %s265 = sphi 0, %s262
      %s266 = sphi 0, %s265
      %s282 = sphi 0, %s266
      %s288 = sphi 0, %s290
      %s291 = sphi 0, %s288
      %s292 = sphi 0, %s291
      %s308 = sphi 0, %s292
      %s314 = sphi 0, %s316
      %s317 = sphi 0, %s314
      %s318 = sphi 0, %s317
      %s334 = sphi 0, %s318
      %s340 = sphi 0, %s342
      %s343 = sphi 0, %s340
      %s344 = sphi 0, %s343
      %s360 = sphi 0, %s344
      %s364 = sphi 0, %s364
      %s366 = sphi 0, %s364
      %s367 = sphi 0, %s366
      %s381 = sphi 0, %s367
      %s385 = sphi 0, %s385
      %s387 = sphi 0, %s385
      %s388 = sphi 0, %s387
      %s402 = sphi 0, %s388
      %s406 = sphi 0, %s406
      %s408 = sphi 0, %s406
      %s409 = sphi 0, %s408
      %s423 = sphi 0, %s409
    $region4: #{tpu_custom_call.1} parent=1 // loop_header_branch
      %26 = sbr.rel (%p24) target = $region8
    $region5: #{tpu_custom_call.1} parent=1 // loop_body
      %s28 = ssub.s32 %s23, 1
      %s29 = ssub.s32 %s23, 2
      %s30 = sadd.s32 %s23, 1
      %s32 = sadd.s32 %s31, 1
      %p35 = scmp.eq.s32.totalorder %s23, 1
      %p36 = scmp.ne.s32.totalorder %s31, %s33
      %p37 = scmp.eq.s32.totalorder %s23, 0
      %p38 = por %p36, %p37
      %p39 = scmp.ne.s32.totalorder %s31, %s33
      %p40 = scmp.eq.s32.totalorder %s28, 1
      %p41 = por %p39, %p40
      %p42 = scmp.ne.s32.totalorder %s33, %s34
      %p43 = scmp.eq.s32.totalorder %s28, 0
      %p44 = por %p42, %p43
      %p45 = scmp.ne.s32.totalorder %s33, %s34
      %p46 = scmp.eq.s32.totalorder %s29, 1
      %p47 = por %p45, %p46
      %p49 = scmp.ne.s32.totalorder %s34, %s48
      %p50 = scmp.eq.s32.totalorder %s29, 0
      %p51 = por %p49, %p50
      %s52 = ssub.s32 %s23, %s30
      %p53 = scmp.eq.s32.totalorder %s52, 0
      %s55 = sadd.s32 %s54, 1
      %s56 = scalar_select %p53, %s54, %s55
      %p59 = pneg %p53
      %p60 = scmp.eq.s32.totalorder %s23, 1
      %p61 = por %p59, %p60
      %p62 = scmp.ne.s32.totalorder %s54, %s57
      %p63 = scmp.eq.s32.totalorder %s23, 0
      %p64 = por %p62, %p63
      %p65 = scmp.ne.s32.totalorder %s54, %s57
      %p66 = scmp.eq.s32.totalorder %s28, 1
      %p67 = por %p65, %p66
      %p68 = scmp.ne.s32.totalorder %s57, %s58
      %p69 = scmp.eq.s32.totalorder %s28, 0
      %p70 = por %p68, %p69
      %p71 = scmp.ne.s32.totalorder %s57, %s58
      %p72 = scmp.eq.s32.totalorder %s29, 1
      %p73 = por %p71, %p72
      %p75 = scmp.ne.s32.totalorder %s58, %s74
      %p76 = scmp.eq.s32.totalorder %s29, 0
      %p77 = por %p75, %p76
      %s78 = ssub.s32 %s23, %s30
      %p79 = scmp.eq.s32.totalorder %s78, 0
      %s81 = sadd.s32 %s80, 1
      %s82 = scalar_select %p79, %s80, %s81
      %p85 = pneg %p79
      %p86 = scmp.eq.s32.totalorder %s23, 1
      %p87 = por %p85, %p86
      %p88 = scmp.ne.s32.totalorder %s80, %s83
      %p89 = scmp.eq.s32.totalorder %s23, 0
      %p90 = por %p88, %p89
      %p91 = scmp.ne.s32.totalorder %s80, %s83
      %p92 = scmp.eq.s32.totalorder %s28, 1
      %p93 = por %p91, %p92
      %p94 = scmp.ne.s32.totalorder %s83, %s84
      %p95 = scmp.eq.s32.totalorder %s28, 0
      %p96 = por %p94, %p95
      %p97 = scmp.ne.s32.totalorder %s83, %s84
      %p98 = scmp.eq.s32.totalorder %s29, 1
      %p99 = por %p97, %p98
      %p101 = scmp.ne.s32.totalorder %s84, %s100
      %p102 = scmp.eq.s32.totalorder %s29, 0
      %p103 = por %p101, %p102
      %s104 = ssub.s32 %s23, %s30
      %p105 = scmp.eq.s32.totalorder %s104, 0
      %s107 = sadd.s32 %s106, 1
      %s108 = scalar_select %p105, %s106, %s107
      %p111 = pneg %p105
      %p112 = scmp.eq.s32.totalorder %s23, 1
      %p113 = por %p111, %p112
      %p114 = scmp.ne.s32.totalorder %s106, %s109
      %p115 = scmp.eq.s32.totalorder %s23, 0
      %p116 = por %p114, %p115
      %p117 = scmp.ne.s32.totalorder %s106, %s109
      %p118 = scmp.eq.s32.totalorder %s28, 1
      %p119 = por %p117, %p118
      %p120 = scmp.ne.s32.totalorder %s109, %s110
      %p121 = scmp.eq.s32.totalorder %s28, 0
      %p122 = por %p120, %p121
      %p123 = scmp.ne.s32.totalorder %s109, %s110
      %p124 = scmp.eq.s32.totalorder %s29, 1
      %p125 = por %p123, %p124
      %p127 = scmp.ne.s32.totalorder %s110, %s126
      %p128 = scmp.eq.s32.totalorder %s29, 0
      %p129 = por %p127, %p128
      %s130 = ssub.s32 %s23, %s30
      %p131 = scmp.eq.s32.totalorder %s130, 0
      %s133 = sadd.s32 %s132, 1
      %s134 = scalar_select %p131, %s132, %s133
      %p137 = pneg %p131
      %p138 = scmp.eq.s32.totalorder %s23, 1
      %p139 = por %p137, %p138
      %p140 = scmp.ne.s32.totalorder %s132, %s135
      %p141 = scmp.eq.s32.totalorder %s23, 0
      %p142 = por %p140, %p141
      %p143 = scmp.ne.s32.totalorder %s132, %s135
      %p144 = scmp.eq.s32.totalorder %s28, 1
      %p145 = por %p143, %p144
      %p146 = scmp.ne.s32.totalorder %s135, %s136
      %p147 = scmp.eq.s32.totalorder %s28, 0
      %p148 = por %p146, %p147
      %p149 = scmp.ne.s32.totalorder %s135, %s136
      %p150 = scmp.eq.s32.totalorder %s29, 1
      %p151 = por %p149, %p150
      %p153 = scmp.ne.s32.totalorder %s136, %s152
      %p154 = scmp.eq.s32.totalorder %s29, 0
      %p155 = por %p153, %p154
      %s156 = ssub.s32 %s23, %s30
      %p157 = scmp.eq.s32.totalorder %s156, 0
      %s159 = sadd.s32 %s158, 1
      %s160 = scalar_select %p157, %s158, %s159
      %p163 = pneg %p157
      %p164 = scmp.eq.s32.totalorder %s23, 1
      %p165 = por %p163, %p164
      %p166 = scmp.ne.s32.totalorder %s158, %s161
      %p167 = scmp.eq.s32.totalorder %s23, 0
      %p168 = por %p166, %p167
      %p169 = scmp.ne.s32.totalorder %s158, %s161
      %p170 = scmp.eq.s32.totalorder %s28, 1
      %p171 = por %p169, %p170
      %p172 = scmp.ne.s32.totalorder %s161, %s162
      %p173 = scmp.eq.s32.totalorder %s28, 0
      %p174 = por %p172, %p173
      %p175 = scmp.ne.s32.totalorder %s161, %s162
      %p176 = scmp.eq.s32.totalorder %s29, 1
      %p177 = por %p175, %p176
      %p179 = scmp.ne.s32.totalorder %s162, %s178
      %p180 = scmp.eq.s32.totalorder %s29, 0
      %p181 = por %p179, %p180
      %s182 = ssub.s32 %s23, %s30
      %p183 = scmp.eq.s32.totalorder %s182, 0
      %s185 = sadd.s32 %s184, 1
      %s186 = scalar_select %p183, %s184, %s185
      %p189 = pneg %p183
      %p190 = scmp.eq.s32.totalorder %s23, 1
      %p191 = por %p189, %p190
      %p192 = scmp.ne.s32.totalorder %s184, %s187
      %p193 = scmp.eq.s32.totalorder %s23, 0
      %p194 = por %p192, %p193
      %p195 = scmp.ne.s32.totalorder %s184, %s187
      %p196 = scmp.eq.s32.totalorder %s28, 1
      %p197 = por %p195, %p196
      %p198 = scmp.ne.s32.totalorder %s187, %s188
      %p199 = scmp.eq.s32.totalorder %s28, 0
      %p200 = por %p198, %p199
      %p201 = scmp.ne.s32.totalorder %s187, %s188
      %p202 = scmp.eq.s32.totalorder %s29, 1
      %p203 = por %p201, %p202
      %p205 = scmp.ne.s32.totalorder %s188, %s204
      %p206 = scmp.eq.s32.totalorder %s29, 0
      %p207 = por %p205, %p206
      %s208 = ssub.s32 %s23, %s30
      %p209 = scmp.eq.s32.totalorder %s208, 0
      %s211 = sadd.s32 %s210, 1
      %s212 = scalar_select %p209, %s210, %s211
      %p215 = pneg %p209
      %p216 = scmp.eq.s32.totalorder %s23, 1
      %p217 = por %p215, %p216
      %p218 = scmp.ne.s32.totalorder %s210, %s213
      %p219 = scmp.eq.s32.totalorder %s23, 0
      %p220 = por %p218, %p219
      %p221 = scmp.ne.s32.totalorder %s210, %s213
      %p222 = scmp.eq.s32.totalorder %s28, 1
      %p223 = por %p221, %p222
      %p224 = scmp.ne.s32.totalorder %s213, %s214
      %p225 = scmp.eq.s32.totalorder %s28, 0
      %p226 = por %p224, %p225
      %p227 = scmp.ne.s32.totalorder %s213, %s214
      %p228 = scmp.eq.s32.totalorder %s29, 1
      %p229 = por %p227, %p228
      %p231 = scmp.ne.s32.totalorder %s214, %s230
      %p232 = scmp.eq.s32.totalorder %s29, 0
      %p233 = por %p231, %p232
      %s234 = ssub.s32 %s23, %s30
      %p235 = scmp.eq.s32.totalorder %s234, 0
      %s237 = sadd.s32 %s236, 1
      %s238 = scalar_select %p235, %s236, %s237
      %p241 = pneg %p235
      %p242 = scmp.eq.s32.totalorder %s23, 1
      %p243 = por %p241, %p242
      %p244 = scmp.ne.s32.totalorder %s236, %s239
      %p245 = scmp.eq.s32.totalorder %s23, 0
      %p246 = por %p244, %p245
      %p247 = scmp.ne.s32.totalorder %s236, %s239
      %p248 = scmp.eq.s32.totalorder %s28, 1
      %p249 = por %p247, %p248
      %p250 = scmp.ne.s32.totalorder %s239, %s240
      %p251 = scmp.eq.s32.totalorder %s28, 0
      %p252 = por %p250, %p251
      %p253 = scmp.ne.s32.totalorder %s239, %s240
      %p254 = scmp.eq.s32.totalorder %s29, 1
      %p255 = por %p253, %p254
      %p257 = scmp.ne.s32.totalorder %s240, %s256
      %p258 = scmp.eq.s32.totalorder %s29, 0
      %p259 = por %p257, %p258
      %s260 = ssub.s32 %s23, %s30
      %p261 = scmp.eq.s32.totalorder %s260, 0
      %s263 = sadd.s32 %s262, 1
      %s264 = scalar_select %p261, %s262, %s263
      %p267 = pneg %p261
      %p268 = scmp.eq.s32.totalorder %s23, 1
      %p269 = por %p267, %p268
      %p270 = scmp.ne.s32.totalorder %s262, %s265
      %p271 = scmp.eq.s32.totalorder %s23, 0
      %p272 = por %p270, %p271
      %p273 = scmp.ne.s32.totalorder %s262, %s265
      %p274 = scmp.eq.s32.totalorder %s28, 1
      %p275 = por %p273, %p274
      %p276 = scmp.ne.s32.totalorder %s265, %s266
      %p277 = scmp.eq.s32.totalorder %s28, 0
      %p278 = por %p276, %p277
      %p279 = scmp.ne.s32.totalorder %s265, %s266
      %p280 = scmp.eq.s32.totalorder %s29, 1
      %p281 = por %p279, %p280
      %p283 = scmp.ne.s32.totalorder %s266, %s282
      %p284 = scmp.eq.s32.totalorder %s29, 0
      %p285 = por %p283, %p284
      %s286 = ssub.s32 %s23, %s30
      %p287 = scmp.eq.s32.totalorder %s286, 0
      %s289 = sadd.s32 %s288, 1
      %s290 = scalar_select %p287, %s288, %s289
      %p293 = pneg %p287
      %p294 = scmp.eq.s32.totalorder %s23, 1
      %p295 = por %p293, %p294
      %p296 = scmp.ne.s32.totalorder %s288, %s291
      %p297 = scmp.eq.s32.totalorder %s23, 0
      %p298 = por %p296, %p297
      %p299 = scmp.ne.s32.totalorder %s288, %s291
      %p300 = scmp.eq.s32.totalorder %s28, 1
      %p301 = por %p299, %p300
      %p302 = scmp.ne.s32.totalorder %s291, %s292
      %p303 = scmp.eq.s32.totalorder %s28, 0
      %p304 = por %p302, %p303
      %p305 = scmp.ne.s32.totalorder %s291, %s292
      %p306 = scmp.eq.s32.totalorder %s29, 1
      %p307 = por %p305, %p306
      %p309 = scmp.ne.s32.totalorder %s292, %s308
      %p310 = scmp.eq.s32.totalorder %s29, 0
      %p311 = por %p309, %p310
      %s312 = ssub.s32 %s23, %s30
      %p313 = scmp.eq.s32.totalorder %s312, 0
      %s315 = sadd.s32 %s314, 1
      %s316 = scalar_select %p313, %s314, %s315
      %p319 = pneg %p313
      %p320 = scmp.eq.s32.totalorder %s23, 1
      %p321 = por %p319, %p320
      %p322 = scmp.ne.s32.totalorder %s314, %s317
      %p323 = scmp.eq.s32.totalorder %s23, 0
      %p324 = por %p322, %p323
      %p325 = scmp.ne.s32.totalorder %s314, %s317
      %p326 = scmp.eq.s32.totalorder %s28, 1
      %p327 = por %p325, %p326
      %p328 = scmp.ne.s32.totalorder %s317, %s318
      %p329 = scmp.eq.s32.totalorder %s28, 0
      %p330 = por %p328, %p329
      %p331 = scmp.ne.s32.totalorder %s317, %s318
      %p332 = scmp.eq.s32.totalorder %s29, 1
      %p333 = por %p331, %p332
      %p335 = scmp.ne.s32.totalorder %s318, %s334
      %p336 = scmp.eq.s32.totalorder %s29, 0
      %p337 = por %p335, %p336
      %s338 = ssub.s32 %s23, %s30
      %p339 = scmp.eq.s32.totalorder %s338, 0
      %s341 = sadd.s32 %s340, 1
      %s342 = scalar_select %p339, %s340, %s341
      %p345 = pneg %p339
      %p346 = scmp.eq.s32.totalorder %s23, 1
      %p347 = por %p345, %p346
      %p348 = scmp.ne.s32.totalorder %s340, %s343
      %p349 = scmp.eq.s32.totalorder %s23, 0
      %p350 = por %p348, %p349
      %p351 = scmp.ne.s32.totalorder %s340, %s343
      %p352 = scmp.eq.s32.totalorder %s28, 1
      %p353 = por %p351, %p352
      %p354 = scmp.ne.s32.totalorder %s343, %s344
      %p355 = scmp.eq.s32.totalorder %s28, 0
      %p356 = por %p354, %p355
      %p357 = scmp.ne.s32.totalorder %s343, %s344
      %p358 = scmp.eq.s32.totalorder %s29, 1
      %p359 = por %p357, %p358
      %p361 = scmp.ne.s32.totalorder %s344, %s360
      %p362 = scmp.eq.s32.totalorder %s29, 0
      %p363 = por %p361, %p362
      %s365 = sadd.s32 %s364, 1
      %p368 = scmp.eq.s32.totalorder %s23, 1
      %p369 = scmp.ne.s32.totalorder %s364, %s366
      %p370 = scmp.eq.s32.totalorder %s23, 0
      %p371 = por %p369, %p370
      %p372 = scmp.ne.s32.totalorder %s364, %s366
      %p373 = scmp.eq.s32.totalorder %s28, 1
      %p374 = por %p372, %p373
      %p375 = scmp.ne.s32.totalorder %s366, %s367
      %p376 = scmp.eq.s32.totalorder %s28, 0
      %p377 = por %p375, %p376
      %p378 = scmp.ne.s32.totalorder %s366, %s367
      %p379 = scmp.eq.s32.totalorder %s29, 1
      %p380 = por %p378, %p379
      %p382 = scmp.ne.s32.totalorder %s367, %s381
      %p383 = scmp.eq.s32.totalorder %s29, 0
      %p384 = por %p382, %p383
      %s386 = sadd.s32 %s385, 1
      %p389 = scmp.eq.s32.totalorder %s23, 1
      %p390 = scmp.ne.s32.totalorder %s385, %s387
      %p391 = scmp.eq.s32.totalorder %s23, 0
      %p392 = por %p390, %p391
      %p393 = scmp.ne.s32.totalorder %s385, %s387
      %p394 = scmp.eq.s32.totalorder %s28, 1
      %p395 = por %p393, %p394
      %p396 = scmp.ne.s32.totalorder %s387, %s388
      %p397 = scmp.eq.s32.totalorder %s28, 0
      %p398 = por %p396, %p397
      %p399 = scmp.ne.s32.totalorder %s387, %s388
      %p400 = scmp.eq.s32.totalorder %s29, 1
      %p401 = por %p399, %p400
      %p403 = scmp.ne.s32.totalorder %s388, %s402
      %p404 = scmp.eq.s32.totalorder %s29, 0
      %p405 = por %p403, %p404
      %s407 = sadd.s32 %s406, 1
      %p410 = scmp.eq.s32.totalorder %s23, 1
      %p411 = scmp.ne.s32.totalorder %s406, %s408
      %p412 = scmp.eq.s32.totalorder %s23, 0
      %p413 = por %p411, %p412
      %p414 = scmp.ne.s32.totalorder %s406, %s408
      %p415 = scmp.eq.s32.totalorder %s28, 1
      %p416 = por %p414, %p415
      %p417 = scmp.ne.s32.totalorder %s408, %s409
      %p418 = scmp.eq.s32.totalorder %s28, 0
      %p419 = por %p417, %p418
      %p420 = scmp.ne.s32.totalorder %s408, %s409
      %p421 = scmp.eq.s32.totalorder %s29, 1
      %p422 = por %p420, %p421
      %p424 = scmp.ne.s32.totalorder %s409, %s423
      %p425 = scmp.eq.s32.totalorder %s29, 0
      %p426 = por %p424, %p425
      %p427 = scmp.le.s32.totalorder 1, %s23
      %p428 = scmp.lt.s32.totalorder %s23, 3
      %p429 = pnand %p427, %p428
      %p430 = pneg %p429
      // Predicated region
      $region9: #{tpu_custom_call.1} parent=5 // pred_check
        _
      $region10: #{tpu_custom_call.1} parent=5 // pred_check_branch
        %432 = sbr.rel (%p429) target = $region12
      $region11: #{tpu_custom_call.1} parent=5 // pred_region
        %s433 = ssub.s32 %s23, 1
        // Predicated region
        $region13: #{tpu_custom_call.1} parent=11 // pred_check
          %p434 = pneg %p44
        $region14: #{tpu_custom_call.1} parent=11 // pred_check_branch
          %436 = sbr.rel (%p434) target = $region16
        $region15: #{tpu_custom_call.1} parent=11 // pred_region
          %s438 = ssub.s32 384, 384
          %439 = vsyncadd [#allocation4], %s438
          %s440 = sshll.u32 [#allocation3], 4
          %s441 = int_to_ptr.vmem [resolvable:$true] %s440
          %446 = dma.hbm_to_vmem [thread:$0]  %s0, 384, %s441, [#allocation4], 128, 128, 8
        $region16: #{tpu_custom_call.1} parent=11 // pred_fallthru
          _
        // Predicated region
        $region17: #{tpu_custom_call.1} parent=11 // pred_check
          %p447 = pneg %p377
        $region18: #{tpu_custom_call.1} parent=11 // pred_check_branch
          %449 = sbr.rel (%p447) target = $region20
        $region19: #{tpu_custom_call.1} parent=11 // pred_region
          _
        $region20: #{tpu_custom_call.1} parent=11 // pred_fallthru
          _
        // Predicated region
        $region21: #{tpu_custom_call.1} parent=11 // pred_check
          %p450 = pneg %p398
        $region22: #{tpu_custom_call.1} parent=11 // pred_check_branch
          %452 = sbr.rel (%p450) target = $region24
        $region23: #{tpu_custom_call.1} parent=11 // pred_region
          _
        $region24: #{tpu_custom_call.1} parent=11 // pred_fallthru
          _
      $region12: #{tpu_custom_call.1} parent=5 // pred_fallthru
        _
      %p453 = scmp.lt.s32.totalorder %s23, 2
      // Predicated region
      $region25: #{tpu_custom_call.1} parent=5 // pred_check
        %p454 = pneg %p453
      $region26: #{tpu_custom_call.1} parent=5 // pred_check_branch
        %456 = sbr.rel (%p454) target = $region28
      $region27: #{tpu_custom_call.1} parent=5 // pred_region
        // Predicated region
        $region29: #{tpu_custom_call.1} parent=27 // pred_check
          %p457 = pneg %p64
        $region30: #{tpu_custom_call.1} parent=27 // pred_check_branch
          %459 = sbr.rel (%p457) target = $region32
        $region31: #{tpu_custom_call.1} parent=27 // pred_region
          %p460 = scmp.lt.s32.totalorder %s23, 1
          %s461 = scalar_select %p460, %s23, 1
          %s462 = smul.addr %s461, 4
          %s463 = smul.addr %s462, 4
          %s464 = scalar_lea.vmem %s1, %s463
        $region32: #{tpu_custom_call.1} parent=27 // pred_fallthru
          _
        // Predicated region
        $region33: #{tpu_custom_call.1} parent=27 // pred_check
          %p465 = pneg %p90
        $region34: #{tpu_custom_call.1} parent=27 // pred_check_branch
          %467 = sbr.rel (%p465) target = $region36
        $region35: #{tpu_custom_call.1} parent=27 // pred_region
          %p468 = scmp.lt.s32.totalorder %s23, 1
          %s469 = scalar_select %p468, %s23, 1
          %s470 = scalar_lea.vmem %s2, %s469
        $region36: #{tpu_custom_call.1} parent=27 // pred_fallthru
          _
        // Predicated region
        $region37: #{tpu_custom_call.1} parent=27 // pred_check
          %p471 = pneg %p116
        $region38: #{tpu_custom_call.1} parent=27 // pred_check_branch
          %473 = sbr.rel (%p471) target = $region40
        $region39: #{tpu_custom_call.1} parent=27 // pred_region
          %p474 = scmp.lt.s32.totalorder %s23, 1
          %s475 = scalar_select %p474, %s23, 1
          %s476 = smul.addr %s475, 4
          %s477 = smul.addr %s476, 4
          %s478 = scalar_lea.vmem %s3, %s477
        $region40: #{tpu_custom_call.1} parent=27 // pred_fallthru
          _
        // Predicated region
        $region41: #{tpu_custom_call.1} parent=27 // pred_check
          %p479 = pneg %p142
        $region42: #{tpu_custom_call.1} parent=27 // pred_check_branch
          %481 = sbr.rel (%p479) target = $region44
        $region43: #{tpu_custom_call.1} parent=27 // pred_region
          %p482 = scmp.lt.s32.totalorder %s23, 1
          %s483 = scalar_select %p482, %s23, 1
          %s484 = scalar_lea.vmem %s4, %s483
        $region44: #{tpu_custom_call.1} parent=27 // pred_fallthru
          _
        // Predicated region
        $region45: #{tpu_custom_call.1} parent=27 // pred_check
          %p485 = pneg %p168
        $region46: #{tpu_custom_call.1} parent=27 // pred_check_branch
          %487 = sbr.rel (%p485) target = $region48
        $region47: #{tpu_custom_call.1} parent=27 // pred_region
          %p488 = scmp.lt.s32.totalorder %s23, 1
          %s489 = scalar_select %p488, %s23, 1
          %s490 = scalar_lea.vmem %s5, %s489
        $region48: #{tpu_custom_call.1} parent=27 // pred_fallthru
          _
        // Predicated region
        $region49: #{tpu_custom_call.1} parent=27 // pred_check
          %p491 = pneg %p194
        $region50: #{tpu_custom_call.1} parent=27 // pred_check_branch
          %493 = sbr.rel (%p491) target = $region52
        $region51: #{tpu_custom_call.1} parent=27 // pred_region
          %p494 = scmp.lt.s32.totalorder %s23, 1
          %s495 = scalar_select %p494, %s23, 1
          %s496 = scalar_lea.vmem %s6, %s495
        $region52: #{tpu_custom_call.1} parent=27 // pred_fallthru
          _
        // Predicated region
        $region53: #{tpu_custom_call.1} parent=27 // pred_check
          %p497 = pneg %p220
        $region54: #{tpu_custom_call.1} parent=27 // pred_check_branch
          %499 = sbr.rel (%p497) target = $region56
        $region55: #{tpu_custom_call.1} parent=27 // pred_region
          %p500 = scmp.lt.s32.totalorder %s23, 1
          %s501 = scalar_select %p500, %s23, 1
          %s502 = smul.addr %s501, 4
          %s503 = smul.addr %s502, 4
          %s504 = scalar_lea.vmem %s7, %s503
        $region56: #{tpu_custom_call.1} parent=27 // pred_fallthru
          _
        // Predicated region
        $region57: #{tpu_custom_call.1} parent=27 // pred_check
          %p505 = pneg %p246
        $region58: #{tpu_custom_call.1} parent=27 // pred_check_branch
          %507 = sbr.rel (%p505) target = $region60
        $region59: #{tpu_custom_call.1} parent=27 // pred_region
          %p508 = scmp.lt.s32.totalorder %s23, 1
          %s509 = scalar_select %p508, %s23, 1
          %s510 = scalar_lea.vmem %s8, %s509
        $region60: #{tpu_custom_call.1} parent=27 // pred_fallthru
          _
        // Predicated region
        $region61: #{tpu_custom_call.1} parent=27 // pred_check
          %p511 = pneg %p272
        $region62: #{tpu_custom_call.1} parent=27 // pred_check_branch
          %513 = sbr.rel (%p511) target = $region64
        $region63: #{tpu_custom_call.1} parent=27 // pred_region
          %p514 = scmp.lt.s32.totalorder %s23, 1
          %s515 = scalar_select %p514, %s23, 1
          %s516 = smul.addr %s515, 8
          %s517 = smul.addr %s516, 4
          %s518 = scalar_lea.vmem %s9, %s517
        $region64: #{tpu_custom_call.1} parent=27 // pred_fallthru
          _
        // Predicated region
        $region65: #{tpu_custom_call.1} parent=27 // pred_check
          %p519 = pneg %p298
        $region66: #{tpu_custom_call.1} parent=27 // pred_check_branch
          %521 = sbr.rel (%p519) target = $region68
        $region67: #{tpu_custom_call.1} parent=27 // pred_region
          %p522 = scmp.lt.s32.totalorder %s23, 1
          %s523 = scalar_select %p522, %s23, 1
          %s524 = scalar_lea.vmem %s10, %s523
        $region68: #{tpu_custom_call.1} parent=27 // pred_fallthru
          _
        // Predicated region
        $region69: #{tpu_custom_call.1} parent=27 // pred_check
          %p525 = pneg %p324
        $region70: #{tpu_custom_call.1} parent=27 // pred_check_branch
          %527 = sbr.rel (%p525) target = $region72
        $region71: #{tpu_custom_call.1} parent=27 // pred_region
          %p528 = scmp.lt.s32.totalorder %s23, 1
          %s529 = scalar_select %p528, %s23, 1
          %s530 = scalar_lea.vmem %s11, %s529
        $region72: #{tpu_custom_call.1} parent=27 // pred_fallthru
          _
        // Predicated region
        $region73: #{tpu_custom_call.1} parent=27 // pred_check
          %p531 = pneg %p350
        $region74: #{tpu_custom_call.1} parent=27 // pred_check_branch
          %533 = sbr.rel (%p531) target = $region76
        $region75: #{tpu_custom_call.1} parent=27 // pred_region
          %p534 = scmp.lt.s32.totalorder %s23, 1
          %s535 = scalar_select %p534, %s23, 1
          %s536 = scalar_lea.vmem %s12, %s535
        $region76: #{tpu_custom_call.1} parent=27 // pred_fallthru
          _
      $region28: #{tpu_custom_call.1} parent=5 // pred_fallthru
        _
      %p537 = scmp.le.s32.totalorder 1, %s23
      %p538 = scmp.lt.s32.totalorder %s23, 3
      %p539 = pnand %p537, %p538
      %p540 = pneg %p539
      // Predicated region
      $region77: #{tpu_custom_call.1} parent=5 // pred_check
        _
      $region78: #{tpu_custom_call.1} parent=5 // pred_check_branch
        %542 = sbr.rel (%p539) target = $region80
      $region79: #{tpu_custom_call.1} parent=5 // pred_region
        %s543 = ssub.s32 %s23, 1
        // Predicated region
        $region81: #{tpu_custom_call.1} parent=79 // pred_check
          %p544 = pneg %p44
        $region82: #{tpu_custom_call.1} parent=79 // pred_check_branch
          %546 = sbr.rel (%p544) target = $region84
        $region83: #{tpu_custom_call.1} parent=79 // pred_region
          %547 = dma.done [#allocation4], 384
        $region84: #{tpu_custom_call.1} parent=79 // pred_fallthru
          _
        %p548 = pneg %p44
        %p549 = pneg %p41
        %p550 = scmp.lt.s32.totalorder %s28, 1
        %s551 = scalar_select %p550, %s28, 1
        %s552 = smul.addr %s551, 4
        %s553 = smul.addr %s552, 4
        %s554 = scalar_lea.vmem %s1, %s553
        %p555 = pneg %p70
        %p556 = pneg %p67
        %p557 = scmp.lt.s32.totalorder %s28, 1
        %s558 = scalar_select %p557, %s28, 1
        %s559 = scalar_lea.vmem %s2, %s558
        %p560 = pneg %p96
        %p561 = pneg %p93
        %p562 = scmp.lt.s32.totalorder %s28, 1
        %s563 = scalar_select %p562, %s28, 1
        %s564 = smul.addr %s563, 4
        %s565 = smul.addr %s564, 4
        %s566 = scalar_lea.vmem %s3, %s565
        %p567 = pneg %p122
        %p568 = pneg %p119
        %p569 = scmp.lt.s32.totalorder %s28, 1
        %s570 = scalar_select %p569, %s28, 1
        %s571 = scalar_lea.vmem %s4, %s570
        %p572 = pneg %p148
        %p573 = pneg %p145
        %p574 = scmp.lt.s32.totalorder %s28, 1
        %s575 = scalar_select %p574, %s28, 1
        %s576 = scalar_lea.vmem %s5, %s575
        %p577 = pneg %p174
        %p578 = pneg %p171
        %p579 = scmp.lt.s32.totalorder %s28, 1
        %s580 = scalar_select %p579, %s28, 1
        %s581 = scalar_lea.vmem %s6, %s580
        %p582 = pneg %p200
        %p583 = pneg %p197
        %p584 = scmp.lt.s32.totalorder %s28, 1
        %s585 = scalar_select %p584, %s28, 1
        %s586 = smul.addr %s585, 4
        %s587 = smul.addr %s586, 4
        %s588 = scalar_lea.vmem %s7, %s587
        %p589 = pneg %p226
        %p590 = pneg %p223
        %p591 = scmp.lt.s32.totalorder %s28, 1
        %s592 = scalar_select %p591, %s28, 1
        %s593 = scalar_lea.vmem %s8, %s592
        %p594 = pneg %p252
        %p595 = pneg %p249
        %p596 = scmp.lt.s32.totalorder %s28, 1
        %s597 = scalar_select %p596, %s28, 1
        %s598 = smul.addr %s597, 8
        %s599 = smul.addr %s598, 4
        %s600 = scalar_lea.vmem %s9, %s599
        %p601 = pneg %p278
        %p602 = pneg %p275
        %p603 = scmp.lt.s32.totalorder %s28, 1
        %s604 = scalar_select %p603, %s28, 1
        %s605 = scalar_lea.vmem %s10, %s604
        %p606 = pneg %p304
        %p607 = pneg %p301
        %p608 = scmp.lt.s32.totalorder %s28, 1
        %s609 = scalar_select %p608, %s28, 1
        %s610 = scalar_lea.vmem %s11, %s609
        %p611 = pneg %p330
        %p612 = pneg %p327
        %p613 = scmp.lt.s32.totalorder %s28, 1
        %s614 = scalar_select %p613, %s28, 1
        %s615 = scalar_lea.vmem %s12, %s614
        %p616 = pneg %p356
        %p617 = pneg %p353
        %p618 = pneg %p377
        %p619 = pneg %p374
        %p620 = pneg %p398
        %p621 = pneg %p395
        %p622 = pneg %p419
        %p623 = pneg %p416
        %p624 = scmp.lt.s32.totalorder %s28, 1
        %s625 = scalar_select %p624, %s28, 1
        %s626 = smul.addr %s625, 4
        %s627 = smul.addr %s626, 4
        %s628 = scalar_lea.vmem %s1, %s627
        %p629 = scmp.lt.s32.totalorder %s28, 1
        %s630 = scalar_select %p629, %s28, 1
        %s631 = scalar_lea.vmem %s2, %s630
        %p632 = scmp.lt.s32.totalorder %s28, 1
        %s633 = scalar_select %p632, %s28, 1
        %s634 = smul.addr %s633, 4
        %s635 = smul.addr %s634, 4
        %s636 = scalar_lea.vmem %s3, %s635
        %p637 = scmp.lt.s32.totalorder %s28, 1
        %s638 = scalar_select %p637, %s28, 1
        %s639 = scalar_lea.vmem %s4, %s638
        %p640 = scmp.lt.s32.totalorder %s28, 1
        %s641 = scalar_select %p640, %s28, 1
        %s642 = scalar_lea.vmem %s5, %s641
        %p643 = scmp.lt.s32.totalorder %s28, 1
        %s644 = scalar_select %p643, %s28, 1
        %s645 = scalar_lea.vmem %s6, %s644
        %p646 = scmp.lt.s32.totalorder %s28, 1
        %s647 = scalar_select %p646, %s28, 1
        %s648 = smul.addr %s647, 4
        %s649 = smul.addr %s648, 4
        %s650 = scalar_lea.vmem %s7, %s649
        %p651 = scmp.lt.s32.totalorder %s28, 1
        %s652 = scalar_select %p651, %s28, 1
        %s653 = scalar_lea.vmem %s8, %s652
        %p654 = scmp.lt.s32.totalorder %s28, 1
        %s655 = scalar_select %p654, %s28, 1
        %s656 = smul.addr %s655, 8
        %s657 = smul.addr %s656, 4
        %s658 = scalar_lea.vmem %s9, %s657
        %p659 = scmp.lt.s32.totalorder %s28, 1
        %s660 = scalar_select %p659, %s28, 1
        %s661 = scalar_lea.vmem %s10, %s660
        %p662 = scmp.lt.s32.totalorder %s28, 1
        %s663 = scalar_select %p662, %s28, 1
        %s664 = scalar_lea.vmem %s11, %s663
        %p665 = scmp.lt.s32.totalorder %s28, 1
        %s666 = scalar_select %p665, %s28, 1
        %s667 = scalar_lea.vmem %s12, %s666
        %p669 = scmp.eq.s32.totalorder %s28, 0
        // Predicated region
        $region85: #{tpu_custom_call.1} parent=79 // pred_check
          %p670 = pneg %p669
        $region86: #{tpu_custom_call.1} parent=79 // pred_check_branch
          %672 = sbr.rel (%p670) target = $region88
        $region87: #{tpu_custom_call.1} parent=79 // pred_region
          %v673 = vld [vmem:[#allocation3] sm:$0xff]
          %v674 = vld [vmem:[#allocation3 + $0x8] sm:$0xff]
          %v675 = vld [vmem:[#allocation3 + $0x10] sm:$0xf]
          %vm676 = vcmask 261120
          %677 = vst.msk [vmem:[#allocation2] sm:$0xff] %vm676, %v673
          %678 = vst.msk [vmem:[#allocation2 + $0x8] sm:$0xff] %vm676, %v674
          %vm679 = vcmask 257024
          %680 = vst.msk [vmem:[#allocation2 + $0x10] sm:$0xf] %vm679, %v675
        $region88: #{tpu_custom_call.1} parent=79 // pred_fallthru
          _
        %v681 = vld [vmem:[#allocation2] sm:$0xff]
        %v682 = vld [vmem:[#allocation2 + $0x8] sm:$0xff]
        %v683 = vld [vmem:[#allocation2 + $0x10] sm:$0xf]
        %v684 = vpack.c.bf16 %v682, %v681
        %v685 = vpack.c.bf16 %v683, %v683
        %v686 = vld [vmem:[%s628] sm:$0xf]
        %v687 = vld [vmem:[%s628 + $0x4] sm:$0xf]
        %v688 = vld [vmem:[%s628 + $0x8] sm:$0xf]
        %v689 = vld [vmem:[%s628 + $0xc] sm:$0xf]
        %v690 = vld [vmem:[%s631] sm:$0x1]
        %v692 = vlaneseq
        %v693 = vshrl.u32 %v692, 7
        %v694 = vsub.s32 0, %v693
        %v695 = vrot.slane %v690, %v694
        %v701 = vunpack.c.l.b16 %v686
        %v702 = vunpack.c.l.b16 %v687
        %v703 = vunpack.c.l.b16 %v688
        %v704 = vunpack.c.l.b16 %v689
        %v705 = vpack.c.b16 %v702, %v701
        %v706 = vpack.c.b16 %v704, %v703
        %vm709 = vcmask 261120
        %v711 = vsel %vm709, %v684, 0
        %v714 = vsel %vm709, %v685, 0
        %716 = vmatprep.subr.bf16.mxu0 0
        %717 = vmatpush1.bf16.msra.mxu0 0
        %718 = vmatprep.subr.bf16.mxu0 0
        %719 = vmatpush1.bf16.msra.mxu0 0
        %720 = vmatprep.subr.bf16.mxu0 0
        %721 = vmatpush1.bf16.msra.mxu0 0
        %722 = vmatprep.subr.bf16.mxu0 0
        %723 = vmatpush1.bf16.msra.mxu0 0
        %724 = vmatprep.subr.bf16.mxu0 0
        %725 = vmatpush1.bf16.msra.mxu0 0
        %726 = vmatprep.subr.bf16.mxu0 0
        %727 = vmatpush1.bf16.msra.mxu0 0
        %728 = vmatprep.subr.bf16.mxu0 0
        %729 = vmatpush1.bf16.msra.mxu0 %v706
        %730 = vmatprep.subr.bf16.mxu0 0
        %731 = vmatpush1.bf16.msra.mxu0 %v705
        %732 = vmatprep.subr.bf16.mxu0 0
        %733 = vmatpush2.bf16.msra.mxu0 0
        %734 = vmatprep.subr.bf16.mxu0 0
        %735 = vmatpush2.bf16.msra.mxu0 0
        %736 = vmatprep.subr.bf16.mxu0 0
        %737 = vmatpush2.bf16.msra.mxu0 0
        %738 = vmatprep.subr.bf16.mxu0 0
        %739 = vmatpush2.bf16.msra.mxu0 0
        %740 = vmatprep.subr.bf16.mxu0 0
        %741 = vmatpush2.bf16.msra.mxu0 0
        %742 = vmatprep.subr.bf16.mxu0 0
        %743 = vmatpush2.bf16.msra.mxu0 0
        %744 = vmatprep.subr.bf16.mxu0 0
        %745 = vmatpush2.bf16.msra.mxu0 0
        %746 = vmatprep.subr.bf16.mxu0 0
        %747 = vmatpush2.bf16.msra.mxu0 0
        %748 = vmatprep.mubr.bf16.mxu0 0
        %749 = vmatmul.mubr.bf16.gmra.mxu0 %v711
        %v750 = vpop.f32.mrf.mxu0
        %v751 = vadd.f32 %v695, %v750
        %v752 = vpop.f32.mrf.mxu0
        %v753 = vpop.f32.mrf.mxu0
        %v754 = vadd.f32 %v695, %v753
        %v755 = vpop.f32.mrf.mxu0
        %756 = vmatprep.mubr.bf16.mxu0 0
        %757 = vmatmul.mubr.bf16.gmra.mxu0 %v714
        %v758 = vpop.f32.mrf.mxu0
        %v759 = vadd.f32 %v695, %v758
        %v760 = vpop.f32.mrf.mxu0
        %v761 = vpop.f32.mrf.mxu0
        %v762 = vpop.f32.mrf.mxu0
        %763 = vdwg.mxu0
        %v764 = vld [vmem:[%s636] sm:$0xf]
        %v765 = vld [vmem:[%s636 + $0x4] sm:$0xf]
        %v766 = vld [vmem:[%s636 + $0x8] sm:$0xf]
        %v767 = vld [vmem:[%s636 + $0xc] sm:$0xf]
        %v768 = vld [vmem:[%s639] sm:$0x1]
        %v769 = vpack.c.bf16 %v754, %v751
        %771 = vrot.lane.b32.xlu0 %v769, 96
        %v772 = vpop.permute.xlu0 %771
        %vm773 = vcmask 64512
        %v775 = vsel %vm773, %v769, 0
        %v778 = vsel %vm773, %v772, 0
        %780 = vmatprep.subr.bf16.mxu0 0
        %781 = vmatpush1.bf16.xpose.msra.mxu0 0
        %782 = vmatprep.subr.bf16.mxu0 0
        %783 = vmatpush1.bf16.xpose.msra.mxu0 0
        %784 = vmatprep.subr.bf16.mxu0 0
        %785 = vmatpush1.bf16.xpose.msra.mxu0 0
        %786 = vmatprep.subr.bf16.mxu0 0
        %787 = vmatpush1.bf16.xpose.msra.mxu0 0
        %788 = vmatprep.subr.bf16.mxu0 0
        %789 = vmatpush1.bf16.xpose.msra.mxu0 0
        %790 = vmatprep.subr.bf16.mxu0 0
        %791 = vmatpush1.bf16.xpose.msra.mxu0 0
        %792 = vmatprep.subr.bf16.mxu0 0
        %793 = vmatpush1.bf16.xpose.msra.mxu0 0
        %794 = vmatprep.subr.bf16.mxu0 0
        %795 = vmatpush1.bf16.xpose.msra.mxu0 %v778
        %796 = vmatprep.subr.bf16.mxu0 0
        %797 = vmatpush2.bf16.xpose.msra.mxu0 0
        %798 = vmatprep.subr.bf16.mxu0 0
        %799 = vmatpush2.bf16.xpose.msra.mxu0 0
        %800 = vmatprep.subr.bf16.mxu0 0
        %801 = vmatpush2.bf16.xpose.msra.mxu0 0
        %802 = vmatprep.subr.bf16.mxu0 0
        %803 = vmatpush2.bf16.xpose.msra.mxu0 0
        %804 = vmatprep.subr.bf16.mxu0 0
        %805 = vmatpush2.bf16.xpose.msra.mxu0 0
        %806 = vmatprep.subr.bf16.mxu0 0
        %807 = vmatpush2.bf16.xpose.msra.mxu0 0
        %808 = vmatprep.subr.bf16.mxu0 0
        %809 = vmatpush2.bf16.xpose.msra.mxu0 0
        %810 = vmatprep.subr.bf16.mxu0 0
        %811 = vmatpush2.bf16.xpose.msra.mxu0 0
        %812 = vmatprep.mubr.bf16.mxu0 0
        %813 = vmatmul.mubr.bf16.gmra.mxu0 %v775
        %v814 = vpop.f32.mrf.mxu0
        %v815 = vadd.f32 0.0, %v814
        %v816 = vpop.f32.mrf.mxu0
        %v817 = vpop.f32.mrf.mxu0
        %v818 = vadd.f32 0.0, %v817
        %v819 = vpop.f32.mrf.mxu0
        %820 = vdwg.mxu0
        %v821 = vmul.f32 %v815, 0.35355338
        %v822 = vmul.f32 %v818, 0.35355338
        %vm823 = vcmask 80896
        %v824 = vsel %vm823, %v821, -inf
        %825 = vmax.xlane.f32.xlu0 %v824
        %v826 = vpop.xlane.xlu0 %825
        %vm827 = vcmask 74752
        %v828 = vsel %vm827, %v822, -inf
        %829 = vmax.xlane.f32.xlu0 %v828
        %v830 = vpop.xlane.xlu0 %829
        %v831 = vsub.f32 %v821, %v826
        %v832 = vsub.f32 %v822, %v830
        %v833 = vmul.f32 %v831, 1.442695
        %v834 = vpow.pop %v833
        %v835 = vmul.f32 %v832, 1.442695
        %v836 = vpow.pop %v835
        %v837 = vsel %vm823, %v834, 0.0
        %838 = vadd.xlane.f32.xlu0 %v837
        %v839 = vpop.xlane.xlu0 %838
        %v840 = vsel %vm827, %v836, 0.0
        %841 = vadd.xlane.f32.xlu0 %v840
        %v842 = vpop.xlane.xlu0 %841
        %v843 = vrcp.pop %v839
        %v844 = vrcp.pop %v842
        %v845 = vmul.f32 %v834, %v843
        %v846 = vmul.f32 %v836, %v844
        %v847 = vpack.c.bf16 %v846, %v845
        %848 = vrot.lane.b32.xlu0 %v769, 64
        %v849 = vpop.permute.xlu0 %848
        %v851 = vsel %vm823, %v847, 0
        %vm853 = vcmask 1044480
        %v855 = vsel %vm853, %v849, 0
        %857 = vmatprep.subr.bf16.mxu0 0
        %858 = vmatpush1.bf16.msra.mxu0 0
        %859 = vmatprep.subr.bf16.mxu0 0
        %860 = vmatpush1.bf16.msra.mxu0 0
        %861 = vmatprep.subr.bf16.mxu0 0
        %862 = vmatpush1.bf16.msra.mxu0 0
        %863 = vmatprep.subr.bf16.mxu0 0
        %864 = vmatpush1.bf16.msra.mxu0 0
        %865 = vmatprep.subr.bf16.mxu0 0
        %866 = vmatpush1.bf16.msra.mxu0 0
        %867 = vmatprep.subr.bf16.mxu0 0
        %868 = vmatpush1.bf16.msra.mxu0 0
        %869 = vmatprep.subr.bf16.mxu0 0
        %870 = vmatpush1.bf16.msra.mxu0 0
        %871 = vmatprep.subr.bf16.mxu0 0
        %872 = vmatpush1.bf16.msra.mxu0 %v855
        %873 = vmatprep.subr.bf16.mxu0 0
        %874 = vmatpush2.bf16.msra.mxu0 0
        %875 = vmatprep.subr.bf16.mxu0 0
        %876 = vmatpush2.bf16.msra.mxu0 0
        %877 = vmatprep.subr.bf16.mxu0 0
        %878 = vmatpush2.bf16.msra.mxu0 0
        %879 = vmatprep.subr.bf16.mxu0 0
        %880 = vmatpush2.bf16.msra.mxu0 0
        %881 = vmatprep.subr.bf16.mxu0 0
        %882 = vmatpush2.bf16.msra.mxu0 0
        %883 = vmatprep.subr.bf16.mxu0 0
        %884 = vmatpush2.bf16.msra.mxu0 0
        %885 = vmatprep.subr.bf16.mxu0 0
        %886 = vmatpush2.bf16.msra.mxu0 0
        %887 = vmatprep.subr.bf16.mxu0 0
        %888 = vmatpush2.bf16.msra.mxu0 0
        %889 = vmatprep.mubr.bf16.mxu0 0
        %890 = vmatmul.mubr.bf16.gmra.mxu0 %v851
        %v891 = vpop.f32.mrf.mxu0
        %v892 = vadd.f32 0.0, %v891
        %v893 = vpop.f32.mrf.mxu0
        %v894 = vpop.f32.mrf.mxu0
        %v895 = vadd.f32 0.0, %v894
        %v896 = vpop.f32.mrf.mxu0
        %897 = vdwg.mxu0
        %898 = vrot.lane.b32.xlu0 %v769, 120
        %v899 = vpop.permute.xlu0 %898
        %900 = vrot.lane.b32.xlu0 %v769, 88
        %v901 = vpop.permute.xlu0 %900
        %v903 = vsel %vm773, %v899, 0
        %v906 = vsel %vm773, %v901, 0
        %908 = vmatprep.subr.bf16.mxu0 0
        %909 = vmatpush1.bf16.xpose.msra.mxu0 0
        %910 = vmatprep.subr.bf16.mxu0 0
        %911 = vmatpush1.bf16.xpose.msra.mxu0 0
        %912 = vmatprep.subr.bf16.mxu0 0
        %913 = vmatpush1.bf16.xpose.msra.mxu0 0
        %914 = vmatprep.subr.bf16.mxu0 0
        %915 = vmatpush1.bf16.xpose.msra.mxu0 0
        %916 = vmatprep.subr.bf16.mxu0 0
        %917 = vmatpush1.bf16.xpose.msra.mxu0 0
        %918 = vmatprep.subr.bf16.mxu0 0
        %919 = vmatpush1.bf16.xpose.msra.mxu0 0
        %920 = vmatprep.subr.bf16.mxu0 0
        %921 = vmatpush1.bf16.xpose.msra.mxu0 0
        %922 = vmatprep.subr.bf16.mxu0 0
        %923 = vmatpush1.bf16.xpose.msra.mxu0 %v906
        %924 = vmatprep.subr.bf16.mxu0 0
        %925 = vmatpush2.bf16.xpose.msra.mxu0 0
        %926 = vmatprep.subr.bf16.mxu0 0
        %927 = vmatpush2.bf16.xpose.msra.mxu0 0
        %928 = vmatprep.subr.bf16.mxu0 0
        %929 = vmatpush2.bf16.xpose.msra.mxu0 0
        %930 = vmatprep.subr.bf16.mxu0 0
        %931 = vmatpush2.bf16.xpose.msra.mxu0 0
        %932 = vmatprep.subr.bf16.mxu0 0
        %933 = vmatpush2.bf16.xpose.msra.mxu0 0
        %934 = vmatprep.subr.bf16.mxu0 0
        %935 = vmatpush2.bf16.xpose.msra.mxu0 0
        %936 = vmatprep.subr.bf16.mxu0 0
        %937 = vmatpush2.bf16.xpose.msra.mxu0 0
        %938 = vmatprep.subr.bf16.mxu0 0
        %939 = vmatpush2.bf16.xpose.msra.mxu0 0
        %940 = vmatprep.mubr.bf16.mxu0 0
        %941 = vmatmul.mubr.bf16.gmra.mxu0 %v903
        %v942 = vpop.f32.mrf.mxu0
        %v943 = vadd.f32 0.0, %v942
        %v944 = vpop.f32.mrf.mxu0
        %v945 = vpop.f32.mrf.mxu0
        %v946 = vadd.f32 0.0, %v945
        %v947 = vpop.f32.mrf.mxu0
        %948 = vdwg.mxu0
        %v949 = vmul.f32 %v943, 0.35355338
        %v950 = vmul.f32 %v946, 0.35355338
        %v951 = vsel %vm823, %v949, -inf
        %952 = vmax.xlane.f32.xlu0 %v951
        %v953 = vpop.xlane.xlu0 %952
        %v954 = vsel %vm827, %v950, -inf
        %955 = vmax.xlane.f32.xlu0 %v954
        %v956 = vpop.xlane.xlu0 %955
        %v957 = vsub.f32 %v949, %v953
        %v958 = vsub.f32 %v950, %v956
        %v959 = vmul.f32 %v957, 1.442695
        %v960 = vpow.pop %v959
        %v961 = vmul.f32 %v958, 1.442695
        %v962 = vpow.pop %v961
        %v963 = vsel %vm823, %v960, 0.0
        %964 = vadd.xlane.f32.xlu0 %v963
        %v965 = vpop.xlane.xlu0 %964
        %v966 = vsel %vm827, %v962, 0.0
        %967 = vadd.xlane.f32.xlu0 %v966
        %v968 = vpop.xlane.xlu0 %967
        %v969 = vrcp.pop %v965
        %v970 = vrcp.pop %v968
        %v971 = vmul.f32 %v960, %v969
        %v972 = vmul.f32 %v962, %v970
        %v973 = vpack.c.bf16 %v972, %v971
        %974 = vrot.lane.b32.xlu0 %v769, 56
        %v975 = vpop.permute.xlu0 %974
        %v977 = vsel %vm823, %v973, 0
        %v980 = vsel %vm853, %v975, 0
        %982 = vmatprep.subr.bf16.mxu0 0
        %983 = vmatpush1.bf16.msra.mxu0 0
        %984 = vmatprep.subr.bf16.mxu0 0
        %985 = vmatpush1.bf16.msra.mxu0 0
        %986 = vmatprep.subr.bf16.mxu0 0
        %987 = vmatpush1.bf16.msra.mxu0 0
        %988 = vmatprep.subr.bf16.mxu0 0
        %989 = vmatpush1.bf16.msra.mxu0 0
        %990 = vmatprep.subr.bf16.mxu0 0
        %991 = vmatpush1.bf16.msra.mxu0 0
        %992 = vmatprep.subr.bf16.mxu0 0
        %993 = vmatpush1.bf16.msra.mxu0 0
        %994 = vmatprep.subr.bf16.mxu0 0
        %995 = vmatpush1.bf16.msra.mxu0 0
        %996 = vmatprep.subr.bf16.mxu0 0
        %997 = vmatpush1.bf16.msra.mxu0 %v980
        %998 = vmatprep.subr.bf16.mxu0 0
        %999 = vmatpush2.bf16.msra.mxu0 0
        %1000 = vmatprep.subr.bf16.mxu0 0
        %1001 = vmatpush2.bf16.msra.mxu0 0
        %1002 = vmatprep.subr.bf16.mxu0 0
        %1003 = vmatpush2.bf16.msra.mxu0 0
        %1004 = vmatprep.subr.bf16.mxu0 0
        %1005 = vmatpush2.bf16.msra.mxu0 0
        %1006 = vmatprep.subr.bf16.mxu0 0
        %1007 = vmatpush2.bf16.msra.mxu0 0
        %1008 = vmatprep.subr.bf16.mxu0 0
        %1009 = vmatpush2.bf16.msra.mxu0 0
        %1010 = vmatprep.subr.bf16.mxu0 0
        %1011 = vmatpush2.bf16.msra.mxu0 0
        %1012 = vmatprep.subr.bf16.mxu0 0
        %1013 = vmatpush2.bf16.msra.mxu0 0
        %1014 = vmatprep.mubr.bf16.mxu0 0
        %1015 = vmatmul.mubr.bf16.gmra.mxu0 %v977
        %v1016 = vpop.f32.mrf.mxu0
        %v1017 = vadd.f32 0.0, %v1016
        %v1018 = vpop.f32.mrf.mxu0
        %v1019 = vpop.f32.mrf.mxu0
        %v1020 = vadd.f32 0.0, %v1019
        %v1021 = vpop.f32.mrf.mxu0
        %1022 = vdwg.mxu0
        %1023 = vrot.lane.b32.xlu0 %v769, 112
        %v1024 = vpop.permute.xlu0 %1023
        %1025 = vrot.lane.b32.xlu0 %v769, 80
        %v1026 = vpop.permute.xlu0 %1025
        %v1028 = vsel %vm773, %v1024, 0
        %v1031 = vsel %vm773, %v1026, 0
        %1033 = vmatprep.subr.bf16.mxu0 0
        %1034 = vmatpush1.bf16.xpose.msra.mxu0 0
        %1035 = vmatprep.subr.bf16.mxu0 0
        %1036 = vmatpush1.bf16.xpose.msra.mxu0 0
        %1037 = vmatprep.subr.bf16.mxu0 0
        %1038 = vmatpush1.bf16.xpose.msra.mxu0 0
        %1039 = vmatprep.subr.bf16.mxu0 0
        %1040 = vmatpush1.bf16.xpose.msra.mxu0 0
        %1041 = vmatprep.subr.bf16.mxu0 0
        %1042 = vmatpush1.bf16.xpose.msra.mxu0 0
        %1043 = vmatprep.subr.bf16.mxu0 0
        %1044 = vmatpush1.bf16.xpose.msra.mxu0 0
        %1045 = vmatprep.subr.bf16.mxu0 0
        %1046 = vmatpush1.bf16.xpose.msra.mxu0 0
        %1047 = vmatprep.subr.bf16.mxu0 0
        %1048 = vmatpush1.bf16.xpose.msra.mxu0 %v1031
        %1049 = vmatprep.subr.bf16.mxu0 0
        %1050 = vmatpush2.bf16.xpose.msra.mxu0 0
        %1051 = vmatprep.subr.bf16.mxu0 0
        %1052 = vmatpush2.bf16.xpose.msra.mxu0 0
        %1053 = vmatprep.subr.bf16.mxu0 0
        %1054 = vmatpush2.bf16.xpose.msra.mxu0 0
        %1055 = vmatprep.subr.bf16.mxu0 0
        %1056 = vmatpush2.bf16.xpose.msra.mxu0 0
        %1057 = vmatprep.subr.bf16.mxu0 0
        %1058 = vmatpush2.bf16.xpose.msra.mxu0 0
        %1059 = vmatprep.subr.bf16.mxu0 0
        %1060 = vmatpush2.bf16.xpose.msra.mxu0 0
        %1061 = vmatprep.subr.bf16.mxu0 0
        %1062 = vmatpush2.bf16.xpose.msra.mxu0 0
        %1063 = vmatprep.subr.bf16.mxu0 0
        %1064 = vmatpush2.bf16.xpose.msra.mxu0 0
        %1065 = vmatprep.mubr.bf16.mxu0 0
        %1066 = vmatmul.mubr.bf16.gmra.mxu0 %v1028
        %v1067 = vpop.f32.mrf.mxu0
        %v1068 = vadd.f32 0.0, %v1067
        %v1069 = vpop.f32.mrf.mxu0
        %v1070 = vpop.f32.mrf.mxu0
        %v1071 = vadd.f32 0.0, %v1070
        %v1072 = vpop.f32.mrf.mxu0
        %1073 = vdwg.mxu0
        %v1074 = vmul.f32 %v1068, 0.35355338
        %v1075 = vmul.f32 %v1071, 0.35355338
        %v1076 = vsel %vm823, %v1074, -inf
        %1077 = vmax.xlane.f32.xlu0 %v1076
        %v1078 = vpop.xlane.xlu0 %1077
        %v1079 = vsel %vm827, %v1075, -inf
        %1080 = vmax.xlane.f32.xlu0 %v1079
        %v1081 = vpop.xlane.xlu0 %1080
        %v1082 = vsub.f32 %v1074, %v1078
        %v1083 = vsub.f32 %v1075, %v1081
        %v1084 = vmul.f32 %v1082, 1.442695
        %v1085 = vpow.pop %v1084
        %v1086 = vmul.f32 %v1083, 1.442695
        %v1087 = vpow.pop %v1086
        %v1088 = vsel %vm823, %v1085, 0.0
        %1089 = vadd.xlane.f32.xlu0 %v1088
        %v1090 = vpop.xlane.xlu0 %1089
        %v1091 = vsel %vm827, %v1087, 0.0
        %1092 = vadd.xlane.f32.xlu0 %v1091
        %v1093 = vpop.xlane.xlu0 %1092
        %v1094 = vrcp.pop %v1090
        %v1095 = vrcp.pop %v1093
        %v1096 = vmul.f32 %v1085, %v1094
        %v1097 = vmul.f32 %v1087, %v1095
        %v1098 = vpack.c.bf16 %v1097, %v1096
        %1099 = vrot.lane.b32.xlu0 %v769, 48
        %v1100 = vpop.permute.xlu0 %1099
        %v1102 = vsel %vm823, %v1098, 0
        %v1105 = vsel %vm853, %v1100, 0
        %1107 = vmatprep.subr.bf16.mxu0 0
        %1108 = vmatpush1.bf16.msra.mxu0 0
        %1109 = vmatprep.subr.bf16.mxu0 0
        %1110 = vmatpush1.bf16.msra.mxu0 0
        %1111 = vmatprep.subr.bf16.mxu0 0
        %1112 = vmatpush1.bf16.msra.mxu0 0
        %1113 = vmatprep.subr.bf16.mxu0 0
        %1114 = vmatpush1.bf16.msra.mxu0 0
        %1115 = vmatprep.subr.bf16.mxu0 0
        %1116 = vmatpush1.bf16.msra.mxu0 0
        %1117 = vmatprep.subr.bf16.mxu0 0
        %1118 = vmatpush1.bf16.msra.mxu0 0
        %1119 = vmatprep.subr.bf16.mxu0 0
        %1120 = vmatpush1.bf16.msra.mxu0 0
        %1121 = vmatprep.subr.bf16.mxu0 0
        %1122 = vmatpush1.bf16.msra.mxu0 %v1105
        %1123 = vmatprep.subr.bf16.mxu0 0
        %1124 = vmatpush2.bf16.msra.mxu0 0
        %1125 = vmatprep.subr.bf16.mxu0 0
        %1126 = vmatpush2.bf16.msra.mxu0 0
        %1127 = vmatprep.subr.bf16.mxu0 0
        %1128 = vmatpush2.bf16.msra.mxu0 0
        %1129 = vmatprep.subr.bf16.mxu0 0
        %1130 = vmatpush2.bf16.msra.mxu0 0
        %1131 = vmatprep.subr.bf16.mxu0 0
        %1132 = vmatpush2.bf16.msra.mxu0 0
        %1133 = vmatprep.subr.bf16.mxu0 0
        %1134 = vmatpush2.bf16.msra.mxu0 0
        %1135 = vmatprep.subr.bf16.mxu0 0
        %1136 = vmatpush2.bf16.msra.mxu0 0
        %1137 = vmatprep.subr.bf16.mxu0 0
        %1138 = vmatpush2.bf16.msra.mxu0 0
        %1139 = vmatprep.mubr.bf16.mxu0 0
        %1140 = vmatmul.mubr.bf16.gmra.mxu0 %v1102
        %v1141 = vpop.f32.mrf.mxu0
        %v1142 = vadd.f32 0.0, %v1141
        %v1143 = vpop.f32.mrf.mxu0
        %v1144 = vpop.f32.mrf.mxu0
        %v1145 = vadd.f32 0.0, %v1144
        %v1146 = vpop.f32.mrf.mxu0
        %1147 = vdwg.mxu0
        %1148 = vrot.lane.b32.xlu0 %v769, 104
        %v1149 = vpop.permute.xlu0 %1148
        %1150 = vrot.lane.b32.xlu0 %v769, 72
        %v1151 = vpop.permute.xlu0 %1150
        %v1153 = vsel %vm773, %v1149, 0
        %v1156 = vsel %vm773, %v1151, 0
        %1158 = vmatprep.subr.bf16.mxu0 0
        %1159 = vmatpush1.bf16.xpose.msra.mxu0 0
        %1160 = vmatprep.subr.bf16.mxu0 0
        %1161 = vmatpush1.bf16.xpose.msra.mxu0 0
        %1162 = vmatprep.subr.bf16.mxu0 0
        %1163 = vmatpush1.bf16.xpose.msra.mxu0 0
        %1164 = vmatprep.subr.bf16.mxu0 0
        %1165 = vmatpush1.bf16.xpose.msra.mxu0 0
        %1166 = vmatprep.subr.bf16.mxu0 0
        %1167 = vmatpush1.bf16.xpose.msra.mxu0 0
        %1168 = vmatprep.subr.bf16.mxu0 0
        %1169 = vmatpush1.bf16.xpose.msra.mxu0 0
        %1170 = vmatprep.subr.bf16.mxu0 0
        %1171 = vmatpush1.bf16.xpose.msra.mxu0 0
        %1172 = vmatprep.subr.bf16.mxu0 0
        %1173 = vmatpush1.bf16.xpose.msra.mxu0 %v1156
        %1174 = vmatprep.subr.bf16.mxu0 0
        %1175 = vmatpush2.bf16.xpose.msra.mxu0 0
        %1176 = vmatprep.subr.bf16.mxu0 0
        %1177 = vmatpush2.bf16.xpose.msra.mxu0 0
        %1178 = vmatprep.subr.bf16.mxu0 0
        %1179 = vmatpush2.bf16.xpose.msra.mxu0 0
        %1180 = vmatprep.subr.bf16.mxu0 0
        %1181 = vmatpush2.bf16.xpose.msra.mxu0 0
        %1182 = vmatprep.subr.bf16.mxu0 0
        %1183 = vmatpush2.bf16.xpose.msra.mxu0 0
        %1184 = vmatprep.subr.bf16.mxu0 0
        %1185 = vmatpush2.bf16.xpose.msra.mxu0 0
        %1186 = vmatprep.subr.bf16.mxu0 0
        %1187 = vmatpush2.bf16.xpose.msra.mxu0 0
        %1188 = vmatprep.subr.bf16.mxu0 0
        %1189 = vmatpush2.bf16.xpose.msra.mxu0 0
        %1190 = vmatprep.mubr.bf16.mxu0 0
        %1191 = vmatmul.mubr.bf16.gmra.mxu0 %v1153
        %v1192 = vpop.f32.mrf.mxu0
        %v1193 = vadd.f32 0.0, %v1192
        %v1194 = vpop.f32.mrf.mxu0
        %v1195 = vpop.f32.mrf.mxu0
        %v1196 = vadd.f32 0.0, %v1195
        %v1197 = vpop.f32.mrf.mxu0
        %1198 = vdwg.mxu0
        %v1199 = vmul.f32 %v1193, 0.35355338
        %v1200 = vmul.f32 %v1196, 0.35355338
        %v1201 = vsel %vm823, %v1199, -inf
        %1202 = vmax.xlane.f32.xlu0 %v1201
        %v1203 = vpop.xlane.xlu0 %1202
        %v1204 = vsel %vm827, %v1200, -inf
        %1205 = vmax.xlane.f32.xlu0 %v1204
        %v1206 = vpop.xlane.xlu0 %1205
        %v1207 = vsub.f32 %v1199, %v1203
        %v1208 = vsub.f32 %v1200, %v1206
        %v1209 = vmul.f32 %v1207, 1.442695
        %v1210 = vpow.pop %v1209
        %v1211 = vmul.f32 %v1208, 1.442695
        %v1212 = vpow.pop %v1211
        %v1213 = vsel %vm823, %v1210, 0.0
        %1214 = vadd.xlane.f32.xlu0 %v1213
        %v1215 = vpop.xlane.xlu0 %1214
        %v1216 = vsel %vm827, %v1212, 0.0
        %1217 = vadd.xlane.f32.xlu0 %v1216
        %v1218 = vpop.xlane.xlu0 %1217
        %v1219 = vrcp.pop %v1215
        %v1220 = vrcp.pop %v1218
        %v1221 = vmul.f32 %v1210, %v1219
        %v1222 = vmul.f32 %v1212, %v1220
        %v1223 = vpack.c.bf16 %v1222, %v1221
        %1224 = vrot.lane.b32.xlu0 %v769, 40
        %v1225 = vpop.permute.xlu0 %1224
        %v1227 = vsel %vm823, %v1223, 0
        %v1230 = vsel %vm853, %v1225, 0
        %1232 = vmatprep.subr.bf16.mxu0 0
        %1233 = vmatpush1.bf16.msra.mxu0 0
        %1234 = vmatprep.subr.bf16.mxu0 0
        %1235 = vmatpush1.bf16.msra.mxu0 0
        %1236 = vmatprep.subr.bf16.mxu0 0
        %1237 = vmatpush1.bf16.msra.mxu0 0
        %1238 = vmatprep.subr.bf16.mxu0 0
        %1239 = vmatpush1.bf16.msra.mxu0 0
        %1240 = vmatprep.subr.bf16.mxu0 0
        %1241 = vmatpush1.bf16.msra.mxu0 0
        %1242 = vmatprep.subr.bf16.mxu0 0
        %1243 = vmatpush1.bf16.msra.mxu0 0
        %1244 = vmatprep.subr.bf16.mxu0 0
        %1245 = vmatpush1.bf16.msra.mxu0 0
        %1246 = vmatprep.subr.bf16.mxu0 0
        %1247 = vmatpush1.bf16.msra.mxu0 %v1230
        %1248 = vmatprep.subr.bf16.mxu0 0
        %1249 = vmatpush2.bf16.msra.mxu0 0
        %1250 = vmatprep.subr.bf16.mxu0 0
        %1251 = vmatpush2.bf16.msra.mxu0 0
        %1252 = vmatprep.subr.bf16.mxu0 0
        %1253 = vmatpush2.bf16.msra.mxu0 0
        %1254 = vmatprep.subr.bf16.mxu0 0
        %1255 = vmatpush2.bf16.msra.mxu0 0
        %1256 = vmatprep.subr.bf16.mxu0 0
        %1257 = vmatpush2.bf16.msra.mxu0 0
        %1258 = vmatprep.subr.bf16.mxu0 0
        %1259 = vmatpush2.bf16.msra.mxu0 0
        %1260 = vmatprep.subr.bf16.mxu0 0
        %1261 = vmatpush2.bf16.msra.mxu0 0
        %1262 = vmatprep.subr.bf16.mxu0 0
        %1263 = vmatpush2.bf16.msra.mxu0 0
        %1264 = vmatprep.mubr.bf16.mxu0 0
        %1265 = vmatmul.mubr.bf16.gmra.mxu0 %v1227
        %v1266 = vpop.f32.mrf.mxu0
        %v1267 = vadd.f32 0.0, %v1266
        %v1268 = vpop.f32.mrf.mxu0
        %v1269 = vpop.f32.mrf.mxu0
        %v1270 = vadd.f32 0.0, %v1269
        %v1271 = vpop.f32.mrf.mxu0
        %1272 = vdwg.mxu0
        %1275 = vrot.lane.b32.xlu0 %v1017, 8
        %v1276 = vpop.permute.xlu0 %1275
        %1277 = vrot.lane.b32.xlu0 %v1020, 8
        %v1278 = vpop.permute.xlu0 %1277
        %1283 = vrot.lane.b32.xlu0 %v1142, 16
        %v1284 = vpop.permute.xlu0 %1283
        %1285 = vrot.lane.b32.xlu0 %v1145, 16
        %v1286 = vpop.permute.xlu0 %1285
        %1291 = vrot.lane.b32.xlu0 %v1267, 24
        %v1292 = vpop.permute.xlu0 %1291
        %1293 = vrot.lane.b32.xlu0 %v1270, 24
        %v1294 = vpop.permute.xlu0 %1293
        %v1297 = vsel %vm773, %v892, %v1276
        %v1298 = vsel %vm773, %v895, %v1278
        %vm1299 = vcmask 130048
        %v1300 = vsel %vm1299, %v1297, %v1284
        %v1301 = vsel %vm1299, %v1298, %v1286
        %vm1302 = vcmask 195584
        %v1303 = vsel %vm1302, %v1300, %v1292
        %v1304 = vsel %vm1302, %v1301, %v1294
        %v1305 = vpack.c.bf16 %v759, %v754
        %v1307 = vrot.slane %v1305, 1
        %1308 = vrot.lane.b32.xlu0 %v1307, 96
        %v1309 = vpop.permute.xlu0 %1308
        %v1311 = vsel %vm773, %v1307, 0
        %v1314 = vsel %vm773, %v1309, 0
        %1316 = vmatprep.subr.bf16.mxu0 0
        %1317 = vmatpush1.bf16.xpose.msra.mxu0 0
        %1318 = vmatprep.subr.bf16.mxu0 0
        %1319 = vmatpush1.bf16.xpose.msra.mxu0 0
        %1320 = vmatprep.subr.bf16.mxu0 0
        %1321 = vmatpush1.bf16.xpose.msra.mxu0 0
        %1322 = vmatprep.subr.bf16.mxu0 0
        %1323 = vmatpush1.bf16.xpose.msra.mxu0 0
        %1324 = vmatprep.subr.bf16.mxu0 0
        %1325 = vmatpush1.bf16.xpose.msra.mxu0 0
        %1326 = vmatprep.subr.bf16.mxu0 0
        %1327 = vmatpush1.bf16.xpose.msra.mxu0 0
        %1328 = vmatprep.subr.bf16.mxu0 0
        %1329 = vmatpush1.bf16.xpose.msra.mxu0 0
        %1330 = vmatprep.subr.bf16.mxu0 0
        %1331 = vmatpush1.bf16.xpose.msra.mxu0 %v1314
        %1332 = vmatprep.subr.bf16.mxu0 0
        %1333 = vmatpush2.bf16.xpose.msra.mxu0 0
        %1334 = vmatprep.subr.bf16.mxu0 0
        %1335 = vmatpush2.bf16.xpose.msra.mxu0 0
        %1336 = vmatprep.subr.bf16.mxu0 0
        %1337 = vmatpush2.bf16.xpose.msra.mxu0 0
        %1338 = vmatprep.subr.bf16.mxu0 0
        %1339 = vmatpush2.bf16.xpose.msra.mxu0 0
        %1340 = vmatprep.subr.bf16.mxu0 0
        %1341 = vmatpush2.bf16.xpose.msra.mxu0 0
        %1342 = vmatprep.subr.bf16.mxu0 0
        %1343 = vmatpush2.bf16.xpose.msra.mxu0 0
        %1344 = vmatprep.subr.bf16.mxu0 0
        %1345 = vmatpush2.bf16.xpose.msra.mxu0 0
        %1346 = vmatprep.subr.bf16.mxu0 0
        %1347 = vmatpush2.bf16.xpose.msra.mxu0 0
        %1348 = vmatprep.mubr.bf16.mxu0 0
        %1349 = vmatmul.mubr.bf16.gmra.mxu0 %v1311
        %v1350 = vpop.f32.mrf.mxu0
        %v1351 = vadd.f32 0.0, %v1350
        %v1352 = vpop.f32.mrf.mxu0
        %v1353 = vpop.f32.mrf.mxu0
        %v1354 = vadd.f32 0.0, %v1353
        %v1355 = vpop.f32.mrf.mxu0
        %1356 = vdwg.mxu0
        %v1357 = vmul.f32 %v1351, 0.35355338
        %v1358 = vmul.f32 %v1354, 0.35355338
        %v1359 = vsel %vm823, %v1357, -inf
        %1360 = vmax.xlane.f32.xlu0 %v1359
        %v1361 = vpop.xlane.xlu0 %1360
        %v1362 = vsel %vm827, %v1358, -inf
        %1363 = vmax.xlane.f32.xlu0 %v1362
        %v1364 = vpop.xlane.xlu0 %1363
        %v1365 = vsub.f32 %v1357, %v1361
        %v1366 = vsub.f32 %v1358, %v1364
        %v1367 = vmul.f32 %v1365, 1.442695
        %v1368 = vpow.pop %v1367
        %v1369 = vmul.f32 %v1366, 1.442695
        %v1370 = vpow.pop %v1369
        %v1371 = vsel %vm823, %v1368, 0.0
        %1372 = vadd.xlane.f32.xlu0 %v1371
        %v1373 = vpop.xlane.xlu0 %1372
        %v1374 = vsel %vm827, %v1370, 0.0
        %1375 = vadd.xlane.f32.xlu0 %v1374
        %v1376 = vpop.xlane.xlu0 %1375
        %v1377 = vrcp.pop %v1373
        %v1378 = vrcp.pop %v1376
        %v1379 = vmul.f32 %v1368, %v1377
        %v1380 = vmul.f32 %v1370, %v1378
        %v1381 = vpack.c.bf16 %v1380, %v1379
        %1382 = vrot.lane.b32.xlu0 %v1307, 64
        %v1383 = vpop.permute.xlu0 %1382
        %v1385 = vsel %vm823, %v1381, 0
        %v1388 = vsel %vm853, %v1383, 0
        %1390 = vmatprep.subr.bf16.mxu0 0
        %1391 = vmatpush1.bf16.msra.mxu0 0
        %1392 = vmatprep.subr.bf16.mxu0 0
        %1393 = vmatpush1.bf16.msra.mxu0 0
        %1394 = vmatprep.subr.bf16.mxu0 0
        %1395 = vmatpush1.bf16.msra.mxu0 0
        %1396 = vmatprep.subr.bf16.mxu0 0
        %1397 = vmatpush1.bf16.msra.mxu0 0
        %1398 = vmatprep.subr.bf16.mxu0 0
        %1399 = vmatpush1.bf16.msra.mxu0 0
        %1400 = vmatprep.subr.bf16.mxu0 0
        %1401 = vmatpush1.bf16.msra.mxu0 0
        %1402 = vmatprep.subr.bf16.mxu0 0
        %1403 = vmatpush1.bf16.msra.mxu0 0
        %1404 = vmatprep.subr.bf16.mxu0 0
        %1405 = vmatpush1.bf16.msra.mxu0 %v1388
        %1406 = vmatprep.subr.bf16.mxu0 0
        %1407 = vmatpush2.bf16.msra.mxu0 0
        %1408 = vmatprep.subr.bf16.mxu0 0
        %1409 = vmatpush2.bf16.msra.mxu0 0
        %1410 = vmatprep.subr.bf16.mxu0 0
        %1411 = vmatpush2.bf16.msra.mxu0 0
        %1412 = vmatprep.subr.bf16.mxu0 0
        %1413 = vmatpush2.bf16.msra.mxu0 0
        %1414 = vmatprep.subr.bf16.mxu0 0
        %1415 = vmatpush2.bf16.msra.mxu0 0
        %1416 = vmatprep.subr.bf16.mxu0 0
        %1417 = vmatpush2.bf16.msra.mxu0 0
        %1418 = vmatprep.subr.bf16.mxu0 0
        %1419 = vmatpush2.bf16.msra.mxu0 0
        %1420 = vmatprep.subr.bf16.mxu0 0
        %1421 = vmatpush2.bf16.msra.mxu0 0
        %1422 = vmatprep.mubr.bf16.mxu0 0
        %1423 = vmatmul.mubr.bf16.gmra.mxu0 %v1385
        %v1424 = vpop.f32.mrf.mxu0
        %v1425 = vadd.f32 0.0, %v1424
        %v1426 = vpop.f32.mrf.mxu0
        %v1427 = vpop.f32.mrf.mxu0
        %v1428 = vadd.f32 0.0, %v1427
        %v1429 = vpop.f32.mrf.mxu0
        %1430 = vdwg.mxu0
        %1431 = vrot.lane.b32.xlu0 %v1307, 120
        %v1432 = vpop.permute.xlu0 %1431
        %1433 = vrot.lane.b32.xlu0 %v1307, 88
        %v1434 = vpop.permute.xlu0 %1433
        %v1436 = vsel %vm773, %v1432, 0
        %v1439 = vsel %vm773, %v1434, 0
        %1441 = vmatprep.subr.bf16.mxu0 0
        %1442 = vmatpush1.bf16.xpose.msra.mxu0 0
        %1443 = vmatprep.subr.bf16.mxu0 0
        %1444 = vmatpush1.bf16.xpose.msra.mxu0 0
        %1445 = vmatprep.subr.bf16.mxu0 0
        %1446 = vmatpush1.bf16.xpose.msra.mxu0 0
        %1447 = vmatprep.subr.bf16.mxu0 0
        %1448 = vmatpush1.bf16.xpose.msra.mxu0 0
        %1449 = vmatprep.subr.bf16.mxu0 0
        %1450 = vmatpush1.bf16.xpose.msra.mxu0 0
        %1451 = vmatprep.subr.bf16.mxu0 0
        %1452 = vmatpush1.bf16.xpose.msra.mxu0 0
        %1453 = vmatprep.subr.bf16.mxu0 0
        %1454 = vmatpush1.bf16.xpose.msra.mxu0 0
        %1455 = vmatprep.subr.bf16.mxu0 0
        %1456 = vmatpush1.bf16.xpose.msra.mxu0 %v1439
        %1457 = vmatprep.subr.bf16.mxu0 0
        %1458 = vmatpush2.bf16.xpose.msra.mxu0 0
        %1459 = vmatprep.subr.bf16.mxu0 0
        %1460 = vmatpush2.bf16.xpose.msra.mxu0 0
        %1461 = vmatprep.subr.bf16.mxu0 0
        %1462 = vmatpush2.bf16.xpose.msra.mxu0 0
        %1463 = vmatprep.subr.bf16.mxu0 0
        %1464 = vmatpush2.bf16.xpose.msra.mxu0 0
        %1465 = vmatprep.subr.bf16.mxu0 0
        %1466 = vmatpush2.bf16.xpose.msra.mxu0 0
        %1467 = vmatprep.subr.bf16.mxu0 0
        %1468 = vmatpush2.bf16.xpose.msra.mxu0 0
        %1469 = vmatprep.subr.bf16.mxu0 0
        %1470 = vmatpush2.bf16.xpose.msra.mxu0 0
        %1471 = vmatprep.subr.bf16.mxu0 0
        %1472 = vmatpush2.bf16.xpose.msra.mxu0 0
        %1473 = vmatprep.mubr.bf16.mxu0 0
        %1474 = vmatmul.mubr.bf16.gmra.mxu0 %v1436
        %v1475 = vpop.f32.mrf.mxu0
        %v1476 = vadd.f32 0.0, %v1475
        %v1477 = vpop.f32.mrf.mxu0
        %v1478 = vpop.f32.mrf.mxu0
        %v1479 = vadd.f32 0.0, %v1478
        %v1480 = vpop.f32.mrf.mxu0
        %1481 = vdwg.mxu0
        %v1482 = vmul.f32 %v1476, 0.35355338
        %v1483 = vmul.f32 %v1479, 0.35355338
        %v1484 = vsel %vm823, %v1482, -inf
        %1485 = vmax.xlane.f32.xlu0 %v1484
        %v1486 = vpop.xlane.xlu0 %1485
        %v1487 = vsel %vm827, %v1483, -inf
        %1488 = vmax.xlane.f32.xlu0 %v1487
        %v1489 = vpop.xlane.xlu0 %1488
        %v1490 = vsub.f32 %v1482, %v1486
        %v1491 = vsub.f32 %v1483, %v1489
        %v1492 = vmul.f32 %v1490, 1.442695
        %v1493 = vpow.pop %v1492
        %v1494 = vmul.f32 %v1491, 1.442695
        %v1495 = vpow.pop %v1494
        %v1496 = vsel %vm823, %v1493, 0.0
        %1497 = vadd.xlane.f32.xlu0 %v1496
        %v1498 = vpop.xlane.xlu0 %1497
        %v1499 = vsel %vm827, %v1495, 0.0
        %1500 = vadd.xlane.f32.xlu0 %v1499
        %v1501 = vpop.xlane.xlu0 %1500
        %v1502 = vrcp.pop %v1498
        %v1503 = vrcp.pop %v1501
        %v1504 = vmul.f32 %v1493, %v1502
        %v1505 = vmul.f32 %v1495, %v1503
        %v1506 = vpack.c.bf16 %v1505, %v1504
        %1507 = vrot.lane.b32.xlu0 %v1307, 56
        %v1508 = vpop.permute.xlu0 %1507
        %v1510 = vsel %vm823, %v1506, 0
        %v1513 = vsel %vm853, %v1508, 0
        %1515 = vmatprep.subr.bf16.mxu0 0
        %1516 = vmatpush1.bf16.msra.mxu0 0
        %1517 = vmatprep.subr.bf16.mxu0 0
        %1518 = vmatpush1.bf16.msra.mxu0 0
        %1519 = vmatprep.subr.bf16.mxu0 0
        %1520 = vmatpush1.bf16.msra.mxu0 0
        %1521 = vmatprep.subr.bf16.mxu0 0
        %1522 = vmatpush1.bf16.msra.mxu0 0
        %1523 = vmatprep.subr.bf16.mxu0 0
        %1524 = vmatpush1.bf16.msra.mxu0 0
        %1525 = vmatprep.subr.bf16.mxu0 0
        %1526 = vmatpush1.bf16.msra.mxu0 0
        %1527 = vmatprep.subr.bf16.mxu0 0
        %1528 = vmatpush1.bf16.msra.mxu0 0
        %1529 = vmatprep.subr.bf16.mxu0 0
        %1530 = vmatpush1.bf16.msra.mxu0 %v1513
        %1531 = vmatprep.subr.bf16.mxu0 0
        %1532 = vmatpush2.bf16.msra.mxu0 0
        %1533 = vmatprep.subr.bf16.mxu0 0
        %1534 = vmatpush2.bf16.msra.mxu0 0
        %1535 = vmatprep.subr.bf16.mxu0 0
        %1536 = vmatpush2.bf16.msra.mxu0 0
        %1537 = vmatprep.subr.bf16.mxu0 0
        %1538 = vmatpush2.bf16.msra.mxu0 0
        %1539 = vmatprep.subr.bf16.mxu0 0
        %1540 = vmatpush2.bf16.msra.mxu0 0
        %1541 = vmatprep.subr.bf16.mxu0 0
        %1542 = vmatpush2.bf16.msra.mxu0 0
        %1543 = vmatprep.subr.bf16.mxu0 0
        %1544 = vmatpush2.bf16.msra.mxu0 0
        %1545 = vmatprep.subr.bf16.mxu0 0
        %1546 = vmatpush2.bf16.msra.mxu0 0
        %1547 = vmatprep.mubr.bf16.mxu0 0
        %1548 = vmatmul.mubr.bf16.gmra.mxu0 %v1510
        %v1549 = vpop.f32.mrf.mxu0
        %v1550 = vadd.f32 0.0, %v1549
        %v1551 = vpop.f32.mrf.mxu0
        %v1552 = vpop.f32.mrf.mxu0
        %v1553 = vadd.f32 0.0, %v1552
        %v1554 = vpop.f32.mrf.mxu0
        %1555 = vdwg.mxu0
        %1556 = vrot.lane.b32.xlu0 %v1307, 112
        %v1557 = vpop.permute.xlu0 %1556
        %1558 = vrot.lane.b32.xlu0 %v1307, 80
        %v1559 = vpop.permute.xlu0 %1558
        %v1561 = vsel %vm773, %v1557, 0
        %v1564 = vsel %vm773, %v1559, 0
        %1566 = vmatprep.subr.bf16.mxu0 0
        %1567 = vmatpush1.bf16.xpose.msra.mxu0 0
        %1568 = vmatprep.subr.bf16.mxu0 0
        %1569 = vmatpush1.bf16.xpose.msra.mxu0 0
        %1570 = vmatprep.subr.bf16.mxu0 0
        %1571 = vmatpush1.bf16.xpose.msra.mxu0 0
        %1572 = vmatprep.subr.bf16.mxu0 0
        %1573 = vmatpush1.bf16.xpose.msra.mxu0 0
        %1574 = vmatprep.subr.bf16.mxu0 0
        %1575 = vmatpush1.bf16.xpose.msra.mxu0 0
        %1576 = vmatprep.subr.bf16.mxu0 0
        %1577 = vmatpush1.bf16.xpose.msra.mxu0 0
        %1578 = vmatprep.subr.bf16.mxu0 0
        %1579 = vmatpush1.bf16.xpose.msra.mxu0 0
        %1580 = vmatprep.subr.bf16.mxu0 0
        %1581 = vmatpush1.bf16.xpose.msra.mxu0 %v1564
        %1582 = vmatprep.subr.bf16.mxu0 0
        %1583 = vmatpush2.bf16.xpose.msra.mxu0 0
        %1584 = vmatprep.subr.bf16.mxu0 0
        %1585 = vmatpush2.bf16.xpose.msra.mxu0 0
        %1586 = vmatprep.subr.bf16.mxu0 0
        %1587 = vmatpush2.bf16.xpose.msra.mxu0 0
        %1588 = vmatprep.subr.bf16.mxu0 0
        %1589 = vmatpush2.bf16.xpose.msra.mxu0 0
        %1590 = vmatprep.subr.bf16.mxu0 0
        %1591 = vmatpush2.bf16.xpose.msra.mxu0 0
        %1592 = vmatprep.subr.bf16.mxu0 0
        %1593 = vmatpush2.bf16.xpose.msra.mxu0 0
        %1594 = vmatprep.subr.bf16.mxu0 0
        %1595 = vmatpush2.bf16.xpose.msra.mxu0 0
        %1596 = vmatprep.subr.bf16.mxu0 0
        %1597 = vmatpush2.bf16.xpose.msra.mxu0 0
        %1598 = vmatprep.mubr.bf16.mxu0 0
        %1599 = vmatmul.mubr.bf16.gmra.mxu0 %v1561
        %v1600 = vpop.f32.mrf.mxu0
        %v1601 = vadd.f32 0.0, %v1600
        %v1602 = vpop.f32.mrf.mxu0
        %v1603 = vpop.f32.mrf.mxu0
        %v1604 = vadd.f32 0.0, %v1603
        %v1605 = vpop.f32.mrf.mxu0
        %1606 = vdwg.mxu0
        %v1607 = vmul.f32 %v1601, 0.35355338
        %v1608 = vmul.f32 %v1604, 0.35355338
        %v1609 = vsel %vm823, %v1607, -inf
        %1610 = vmax.xlane.f32.xlu0 %v1609
        %v1611 = vpop.xlane.xlu0 %1610
        %v1612 = vsel %vm827, %v1608, -inf
        %1613 = vmax.xlane.f32.xlu0 %v1612
        %v1614 = vpop.xlane.xlu0 %1613
        %v1615 = vsub.f32 %v1607, %v1611
        %v1616 = vsub.f32 %v1608, %v1614
        %v1617 = vmul.f32 %v1615, 1.442695
        %v1618 = vpow.pop %v1617
        %v1619 = vmul.f32 %v1616, 1.442695
        %v1620 = vpow.pop %v1619
        %v1621 = vsel %vm823, %v1618, 0.0
        %1622 = vadd.xlane.f32.xlu0 %v1621
        %v1623 = vpop.xlane.xlu0 %1622
        %v1624 = vsel %vm827, %v1620, 0.0
        %1625 = vadd.xlane.f32.xlu0 %v1624
        %v1626 = vpop.xlane.xlu0 %1625
        %v1627 = vrcp.pop %v1623
        %v1628 = vrcp.pop %v1626
        %v1629 = vmul.f32 %v1618, %v1627
        %v1630 = vmul.f32 %v1620, %v1628
        %v1631 = vpack.c.bf16 %v1630, %v1629
        %1632 = vrot.lane.b32.xlu0 %v1307, 48
        %v1633 = vpop.permute.xlu0 %1632
        %v1635 = vsel %vm823, %v1631, 0
        %v1638 = vsel %vm853, %v1633, 0
        %1640 = vmatprep.subr.bf16.mxu0 0
        %1641 = vmatpush1.bf16.msra.mxu0 0
        %1642 = vmatprep.subr.bf16.mxu0 0
        %1643 = vmatpush1.bf16.msra.mxu0 0
        %1644 = vmatprep.subr.bf16.mxu0 0
        %1645 = vmatpush1.bf16.msra.mxu0 0
        %1646 = vmatprep.subr.bf16.mxu0 0
        %1647 = vmatpush1.bf16.msra.mxu0 0
        %1648 = vmatprep.subr.bf16.mxu0 0
        %1649 = vmatpush1.bf16.msra.mxu0 0
        %1650 = vmatprep.subr.bf16.mxu0 0
        %1651 = vmatpush1.bf16.msra.mxu0 0
        %1652 = vmatprep.subr.bf16.mxu0 0
        %1653 = vmatpush1.bf16.msra.mxu0 0
        %1654 = vmatprep.subr.bf16.mxu0 0
        %1655 = vmatpush1.bf16.msra.mxu0 %v1638
        %1656 = vmatprep.subr.bf16.mxu0 0
        %1657 = vmatpush2.bf16.msra.mxu0 0
        %1658 = vmatprep.subr.bf16.mxu0 0
        %1659 = vmatpush2.bf16.msra.mxu0 0
        %1660 = vmatprep.subr.bf16.mxu0 0
        %1661 = vmatpush2.bf16.msra.mxu0 0
        %1662 = vmatprep.subr.bf16.mxu0 0
        %1663 = vmatpush2.bf16.msra.mxu0 0
        %1664 = vmatprep.subr.bf16.mxu0 0
        %1665 = vmatpush2.bf16.msra.mxu0 0
        %1666 = vmatprep.subr.bf16.mxu0 0
        %1667 = vmatpush2.bf16.msra.mxu0 0
        %1668 = vmatprep.subr.bf16.mxu0 0
        %1669 = vmatpush2.bf16.msra.mxu0 0
        %1670 = vmatprep.subr.bf16.mxu0 0
        %1671 = vmatpush2.bf16.msra.mxu0 0
        %1672 = vmatprep.mubr.bf16.mxu0 0
        %1673 = vmatmul.mubr.bf16.gmra.mxu0 %v1635
        %v1674 = vpop.f32.mrf.mxu0
        %v1675 = vadd.f32 0.0, %v1674
        %v1676 = vpop.f32.mrf.mxu0
        %v1677 = vpop.f32.mrf.mxu0
        %v1678 = vadd.f32 0.0, %v1677
        %v1679 = vpop.f32.mrf.mxu0
        %1680 = vdwg.mxu0
        %1681 = vrot.lane.b32.xlu0 %v1307, 104
        %v1682 = vpop.permute.xlu0 %1681
        %1683 = vrot.lane.b32.xlu0 %v1307, 72
        %v1684 = vpop.permute.xlu0 %1683
        %v1686 = vsel %vm773, %v1682, 0
        %v1689 = vsel %vm773, %v1684, 0
        %1691 = vmatprep.subr.bf16.mxu0 0
        %1692 = vmatpush1.bf16.xpose.msra.mxu0 0
        %1693 = vmatprep.subr.bf16.mxu0 0
        %1694 = vmatpush1.bf16.xpose.msra.mxu0 0
        %1695 = vmatprep.subr.bf16.mxu0 0
        %1696 = vmatpush1.bf16.xpose.msra.mxu0 0
        %1697 = vmatprep.subr.bf16.mxu0 0
        %1698 = vmatpush1.bf16.xpose.msra.mxu0 0
        %1699 = vmatprep.subr.bf16.mxu0 0
        %1700 = vmatpush1.bf16.xpose.msra.mxu0 0
        %1701 = vmatprep.subr.bf16.mxu0 0
        %1702 = vmatpush1.bf16.xpose.msra.mxu0 0
        %1703 = vmatprep.subr.bf16.mxu0 0
        %1704 = vmatpush1.bf16.xpose.msra.mxu0 0
        %1705 = vmatprep.subr.bf16.mxu0 0
        %1706 = vmatpush1.bf16.xpose.msra.mxu0 %v1689
        %1707 = vmatprep.subr.bf16.mxu0 0
        %1708 = vmatpush2.bf16.xpose.msra.mxu0 0
        %1709 = vmatprep.subr.bf16.mxu0 0
        %1710 = vmatpush2.bf16.xpose.msra.mxu0 0
        %1711 = vmatprep.subr.bf16.mxu0 0
        %1712 = vmatpush2.bf16.xpose.msra.mxu0 0
        %1713 = vmatprep.subr.bf16.mxu0 0
        %1714 = vmatpush2.bf16.xpose.msra.mxu0 0
        %1715 = vmatprep.subr.bf16.mxu0 0
        %1716 = vmatpush2.bf16.xpose.msra.mxu0 0
        %1717 = vmatprep.subr.bf16.mxu0 0
        %1718 = vmatpush2.bf16.xpose.msra.mxu0 0
        %1719 = vmatprep.subr.bf16.mxu0 0
        %1720 = vmatpush2.bf16.xpose.msra.mxu0 0
        %1721 = vmatprep.subr.bf16.mxu0 0
        %1722 = vmatpush2.bf16.xpose.msra.mxu0 0
        %1723 = vmatprep.mubr.bf16.mxu0 0
        %1724 = vmatmul.mubr.bf16.gmra.mxu0 %v1686
        %v1725 = vpop.f32.mrf.mxu0
        %v1726 = vadd.f32 0.0, %v1725
        %v1727 = vpop.f32.mrf.mxu0
        %v1728 = vpop.f32.mrf.mxu0
        %v1729 = vadd.f32 0.0, %v1728
        %v1730 = vpop.f32.mrf.mxu0
        %1731 = vdwg.mxu0
        %v1732 = vmul.f32 %v1726, 0.35355338
        %v1733 = vmul.f32 %v1729, 0.35355338
        %v1734 = vsel %vm823, %v1732, -inf
        %1735 = vmax.xlane.f32.xlu0 %v1734
        %v1736 = vpop.xlane.xlu0 %1735
        %v1737 = vsel %vm827, %v1733, -inf
        %1738 = vmax.xlane.f32.xlu0 %v1737
        %v1739 = vpop.xlane.xlu0 %1738
        %v1740 = vsub.f32 %v1732, %v1736
        %v1741 = vsub.f32 %v1733, %v1739
        %v1742 = vmul.f32 %v1740, 1.442695
        %v1743 = vpow.pop %v1742
        %v1744 = vmul.f32 %v1741, 1.442695
        %v1745 = vpow.pop %v1744
        %v1746 = vsel %vm823, %v1743, 0.0
        %1747 = vadd.xlane.f32.xlu0 %v1746
        %v1748 = vpop.xlane.xlu0 %1747
        %v1749 = vsel %vm827, %v1745, 0.0
        %1750 = vadd.xlane.f32.xlu0 %v1749
        %v1751 = vpop.xlane.xlu0 %1750
        %v1752 = vrcp.pop %v1748
        %v1753 = vrcp.pop %v1751
        %v1754 = vmul.f32 %v1743, %v1752
        %v1755 = vmul.f32 %v1745, %v1753
        %v1756 = vpack.c.bf16 %v1755, %v1754
        %1757 = vrot.lane.b32.xlu0 %v1307, 40
        %v1758 = vpop.permute.xlu0 %1757
        %v1760 = vsel %vm823, %v1756, 0
        %v1763 = vsel %vm853, %v1758, 0
        %1765 = vmatprep.subr.bf16.mxu0 0
        %1766 = vmatpush1.bf16.msra.mxu0 0
        %1767 = vmatprep.subr.bf16.mxu0 0
        %1768 = vmatpush1.bf16.msra.mxu0 0
        %1769 = vmatprep.subr.bf16.mxu0 0
        %1770 = vmatpush1.bf16.msra.mxu0 0
        %1771 = vmatprep.subr.bf16.mxu0 0
        %1772 = vmatpush1.bf16.msra.mxu0 0
        %1773 = vmatprep.subr.bf16.mxu0 0
        %1774 = vmatpush1.bf16.msra.mxu0 0
        %1775 = vmatprep.subr.bf16.mxu0 0
        %1776 = vmatpush1.bf16.msra.mxu0 0
        %1777 = vmatprep.subr.bf16.mxu0 0
        %1778 = vmatpush1.bf16.msra.mxu0 0
        %1779 = vmatprep.subr.bf16.mxu0 0
        %1780 = vmatpush1.bf16.msra.mxu0 %v1763
        %1781 = vmatprep.subr.bf16.mxu0 0
        %1782 = vmatpush2.bf16.msra.mxu0 0
        %1783 = vmatprep.subr.bf16.mxu0 0
        %1784 = vmatpush2.bf16.msra.mxu0 0
        %1785 = vmatprep.subr.bf16.mxu0 0
        %1786 = vmatpush2.bf16.msra.mxu0 0
        %1787 = vmatprep.subr.bf16.mxu0 0
        %1788 = vmatpush2.bf16.msra.mxu0 0
        %1789 = vmatprep.subr.bf16.mxu0 0
        %1790 = vmatpush2.bf16.msra.mxu0 0
        %1791 = vmatprep.subr.bf16.mxu0 0
        %1792 = vmatpush2.bf16.msra.mxu0 0
        %1793 = vmatprep.subr.bf16.mxu0 0
        %1794 = vmatpush2.bf16.msra.mxu0 0
        %1795 = vmatprep.subr.bf16.mxu0 0
        %1796 = vmatpush2.bf16.msra.mxu0 0
        %1797 = vmatprep.mubr.bf16.mxu0 0
        %1798 = vmatmul.mubr.bf16.gmra.mxu0 %v1760
        %v1799 = vpop.f32.mrf.mxu0
        %v1800 = vadd.f32 0.0, %v1799
        %v1801 = vpop.f32.mrf.mxu0
        %v1802 = vpop.f32.mrf.mxu0
        %v1803 = vadd.f32 0.0, %v1802
        %v1804 = vpop.f32.mrf.mxu0
        %1805 = vdwg.mxu0
        %1808 = vrot.lane.b32.xlu0 %v1550, 8
        %v1809 = vpop.permute.xlu0 %1808
        %1810 = vrot.lane.b32.xlu0 %v1553, 8
        %v1811 = vpop.permute.xlu0 %1810
        %1816 = vrot.lane.b32.xlu0 %v1675, 16
        %v1817 = vpop.permute.xlu0 %1816
        %1818 = vrot.lane.b32.xlu0 %v1678, 16
        %v1819 = vpop.permute.xlu0 %1818
        %1824 = vrot.lane.b32.xlu0 %v1800, 24
        %v1825 = vpop.permute.xlu0 %1824
        %1826 = vrot.lane.b32.xlu0 %v1803, 24
        %v1827 = vpop.permute.xlu0 %1826
        %v1830 = vsel %vm773, %v1425, %v1809
        %v1831 = vsel %vm773, %v1428, %v1811
        %v1832 = vsel %vm1299, %v1830, %v1817
        %v1833 = vsel %vm1299, %v1831, %v1819
        %v1834 = vsel %vm1302, %v1832, %v1825
        %v1835 = vsel %vm1302, %v1833, %v1827
        %vm1838 = vcmask 1041408
        %v1839 = vrot.slane %v1834, 6
        %v1840 = vrot.slane %v1835, 6
        %v1841 = vsel %vm1838, %v1839, %v1840
        %v1844 = vsel %vm1838, %v1304, %v1839
        %v1845 = vpack.c.bf16 %v1844, %v1303
        %v1846 = vpack.c.bf16 %v1841, %v1841
        %v1848 = vlaneseq
        %v1849 = vshrl.u32 %v1848, 7
        %v1850 = vsub.s32 0, %v1849
        %v1851 = vrot.slane %v768, %v1850
        %v1857 = vunpack.c.l.b16 %v764
        %v1858 = vunpack.c.l.b16 %v765
        %v1859 = vunpack.c.l.b16 %v766
        %v1860 = vunpack.c.l.b16 %v767
        %v1861 = vpack.c.b16 %v1858, %v1857
        %v1862 = vpack.c.b16 %v1860, %v1859
        %v1866 = vsel %vm709, %v1845, 0
        %v1869 = vsel %vm709, %v1846, 0
        %1871 = vmatprep.subr.bf16.mxu0 0
        %1872 = vmatpush1.bf16.msra.mxu0 0
        %1873 = vmatprep.subr.bf16.mxu0 0
        %1874 = vmatpush1.bf16.msra.mxu0 0
        %1875 = vmatprep.subr.bf16.mxu0 0
        %1876 = vmatpush1.bf16.msra.mxu0 0
        %1877 = vmatprep.subr.bf16.mxu0 0
        %1878 = vmatpush1.bf16.msra.mxu0 0
        %1879 = vmatprep.subr.bf16.mxu0 0
        %1880 = vmatpush1.bf16.msra.mxu0 0
        %1881 = vmatprep.subr.bf16.mxu0 0
        %1882 = vmatpush1.bf16.msra.mxu0 0
        %1883 = vmatprep.subr.bf16.mxu0 0
        %1884 = vmatpush1.bf16.msra.mxu0 %v1862
        %1885 = vmatprep.subr.bf16.mxu0 0
        %1886 = vmatpush1.bf16.msra.mxu0 %v1861
        %1887 = vmatprep.subr.bf16.mxu0 0
        %1888 = vmatpush2.bf16.msra.mxu0 0
        %1889 = vmatprep.subr.bf16.mxu0 0
        %1890 = vmatpush2.bf16.msra.mxu0 0
        %1891 = vmatprep.subr.bf16.mxu0 0
        %1892 = vmatpush2.bf16.msra.mxu0 0
        %1893 = vmatprep.subr.bf16.mxu0 0
        %1894 = vmatpush2.bf16.msra.mxu0 0
        %1895 = vmatprep.subr.bf16.mxu0 0
        %1896 = vmatpush2.bf16.msra.mxu0 0
        %1897 = vmatprep.subr.bf16.mxu0 0
        %1898 = vmatpush2.bf16.msra.mxu0 0
        %1899 = vmatprep.subr.bf16.mxu0 0
        %1900 = vmatpush2.bf16.msra.mxu0 0
        %1901 = vmatprep.subr.bf16.mxu0 0
        %1902 = vmatpush2.bf16.msra.mxu0 0
        %1903 = vmatprep.mubr.bf16.mxu0 0
        %1904 = vmatmul.mubr.bf16.gmra.mxu0 %v1866
        %v1905 = vpop.f32.mrf.mxu0
        %v1906 = vadd.f32 %v1851, %v1905
        %v1907 = vpop.f32.mrf.mxu0
        %v1908 = vpop.f32.mrf.mxu0
        %v1909 = vadd.f32 %v1851, %v1908
        %v1910 = vpop.f32.mrf.mxu0
        %1911 = vmatprep.mubr.bf16.mxu0 0
        %1912 = vmatmul.mubr.bf16.gmra.mxu0 %v1869
        %v1913 = vpop.f32.mrf.mxu0
        %v1914 = vadd.f32 %v1851, %v1913
        %v1915 = vpop.f32.mrf.mxu0
        %v1916 = vpop.f32.mrf.mxu0
        %v1917 = vpop.f32.mrf.mxu0
        %1918 = vdwg.mxu0
        %v1919 = vadd.f32 %v681, %v1906
        %v1920 = vadd.f32 %v682, %v1909
        %v1921 = vadd.f32 %v683, %v1914
        %v1922 = vld [vmem:[%s642] sm:$0x1]
        %v1923 = vld [vmem:[%s645] sm:$0x1]
        %v1924 = vsel %vm709, %v1919, 0.0
        %1925 = vadd.xlane.f32.xlu0 %v1924
        %v1926 = vpop.xlane.xlu0 %1925
        %v1927 = vsel %vm709, %v1920, 0.0
        %1928 = vadd.xlane.f32.xlu0 %v1927
        %v1929 = vpop.xlane.xlu0 %1928
        %vm1930 = vcmask 257024
        %v1931 = vsel %vm1930, %v1921, 0.0
        %1932 = vadd.xlane.f32.xlu0 %v1931
        %v1933 = vpop.xlane.xlu0 %1932
        %v1934 = vrcp.pop 32.0
        %v1935 = vmul.f32 %v1926, %v1934
        %v1936 = vmul.f32 %v1929, %v1934
        %v1937 = vmul.f32 %v1933, %v1934
        %v1938 = vsub.f32 %v1919, %v1935
        %v1939 = vsub.f32 %v1920, %v1936
        %v1940 = vsub.f32 %v1921, %v1937
        %v1941 = vmul.f32 %v1938, %v1938
        %v1942 = vmul.f32 %v1939, %v1939
        %v1943 = vmul.f32 %v1940, %v1940
        %v1944 = vsel %vm709, %v1941, 0.0
        %1945 = vadd.xlane.f32.xlu0 %v1944
        %v1946 = vpop.xlane.xlu0 %1945
        %v1947 = vsel %vm709, %v1942, 0.0
        %1948 = vadd.xlane.f32.xlu0 %v1947
        %v1949 = vpop.xlane.xlu0 %1948
        %v1950 = vsel %vm1930, %v1943, 0.0
        %1951 = vadd.xlane.f32.xlu0 %v1950
        %v1952 = vpop.xlane.xlu0 %1951
        %v1953 = vmul.f32 %v1946, %v1934
        %v1954 = vmul.f32 %v1949, %v1934
        %v1955 = vmul.f32 %v1952, %v1934
        %v1956 = vadd.f32 %v1953, 1e-05
        %v1957 = vadd.f32 %v1954, 1e-05
        %v1958 = vadd.f32 %v1955, 1e-05
        %v1959 = vrsqrt.pop %v1956
        %v1960 = vrsqrt.pop %v1957
        %v1961 = vrsqrt.pop %v1958
        %v1962 = vmul.f32 %v1938, %v1959
        %v1963 = vmul.f32 %v1939, %v1960
        %v1964 = vmul.f32 %v1940, %v1961
        %v1966 = vlaneseq
        %v1967 = vshrl.u32 %v1966, 7
        %v1968 = vsub.s32 0, %v1967
        %v1969 = vrot.slane %v1922, %v1968
        %v1971 = vmul.f32 %v1962, %v1969
        %v1972 = vmul.f32 %v1963, %v1969
        %v1973 = vmul.f32 %v1964, %v1969
        %v1975 = vlaneseq
        %v1976 = vshrl.u32 %v1975, 7
        %v1977 = vsub.s32 0, %v1976
        %v1978 = vrot.slane %v1923, %v1977
        %v1980 = vadd.f32 %v1971, %v1978
        %v1981 = vadd.f32 %v1972, %v1978
        %v1982 = vadd.f32 %v1973, %v1978
        %v1983 = vpack.c.bf16 %v1981, %v1980
        %v1984 = vpack.c.bf16 %v1982, %v1982
        %v1985 = vld [vmem:[%s650] sm:$0xf]
        %v1986 = vld [vmem:[%s650 + $0x4] sm:$0xf]
        %v1987 = vld [vmem:[%s650 + $0x8] sm:$0xf]
        %v1988 = vld [vmem:[%s650 + $0xc] sm:$0xf]
        %v1989 = vld [vmem:[%s653] sm:$0x1]
        %v1991 = vlaneseq
        %v1992 = vshrl.u32 %v1991, 7
        %v1993 = vsub.s32 0, %v1992
        %v1994 = vrot.slane %v1989, %v1993
        %v2000 = vunpack.c.l.b16 %v1985
        %v2001 = vunpack.c.l.b16 %v1986
        %v2002 = vunpack.c.l.b16 %v1987
        %v2003 = vunpack.c.l.b16 %v1988
        %v2004 = vpack.c.b16 %v2001, %v2000
        %v2005 = vpack.c.b16 %v2003, %v2002
        %v2009 = vsel %vm709, %v1983, 0
        %v2012 = vsel %vm709, %v1984, 0
        %2014 = vmatprep.subr.bf16.mxu0 0
        %2015 = vmatpush1.bf16.msra.mxu0 0
        %2016 = vmatprep.subr.bf16.mxu0 0
        %2017 = vmatpush1.bf16.msra.mxu0 0
        %2018 = vmatprep.subr.bf16.mxu0 0
        %2019 = vmatpush1.bf16.msra.mxu0 0
        %2020 = vmatprep.subr.bf16.mxu0 0
        %2021 = vmatpush1.bf16.msra.mxu0 0
        %2022 = vmatprep.subr.bf16.mxu0 0
        %2023 = vmatpush1.bf16.msra.mxu0 0
        %2024 = vmatprep.subr.bf16.mxu0 0
        %2025 = vmatpush1.bf16.msra.mxu0 0
        %2026 = vmatprep.subr.bf16.mxu0 0
        %2027 = vmatpush1.bf16.msra.mxu0 %v2005
        %2028 = vmatprep.subr.bf16.mxu0 0
        %2029 = vmatpush1.bf16.msra.mxu0 %v2004
        %2030 = vmatprep.subr.bf16.mxu0 0
        %2031 = vmatpush2.bf16.msra.mxu0 0
        %2032 = vmatprep.subr.bf16.mxu0 0
        %2033 = vmatpush2.bf16.msra.mxu0 0
        %2034 = vmatprep.subr.bf16.mxu0 0
        %2035 = vmatpush2.bf16.msra.mxu0 0
        %2036 = vmatprep.subr.bf16.mxu0 0
        %2037 = vmatpush2.bf16.msra.mxu0 0
        %2038 = vmatprep.subr.bf16.mxu0 0
        %2039 = vmatpush2.bf16.msra.mxu0 0
        %2040 = vmatprep.subr.bf16.mxu0 0
        %2041 = vmatpush2.bf16.msra.mxu0 0
        %2042 = vmatprep.subr.bf16.mxu0 0
        %2043 = vmatpush2.bf16.msra.mxu0 0
        %2044 = vmatprep.subr.bf16.mxu0 0
        %2045 = vmatpush2.bf16.msra.mxu0 0
        %2046 = vmatprep.mubr.bf16.mxu0 0
        %2047 = vmatmul.mubr.bf16.gmra.mxu0 %v2009
        %v2048 = vpop.f32.mrf.mxu0
        %v2049 = vadd.f32 %v1994, %v2048
        %v2050 = vpop.f32.mrf.mxu0
        %v2051 = vpop.f32.mrf.mxu0
        %v2052 = vadd.f32 %v1994, %v2051
        %v2053 = vpop.f32.mrf.mxu0
        %2054 = vmatprep.mubr.bf16.mxu0 0
        %2055 = vmatmul.mubr.bf16.gmra.mxu0 %v2012
        %v2056 = vpop.f32.mrf.mxu0
        %v2057 = vadd.f32 %v1994, %v2056
        %v2058 = vpop.f32.mrf.mxu0
        %v2059 = vpop.f32.mrf.mxu0
        %v2060 = vpop.f32.mrf.mxu0
        %2061 = vdwg.mxu0
        %v2062 = vmax.f32 %v2049, 0.0
        %v2063 = vmax.f32 %v2052, 0.0
        %v2064 = vmax.f32 %v2057, 0.0
        %v2065 = vpack.c.bf16 %v2063, %v2062
        %v2066 = vpack.c.bf16 %v2064, %v2064
        %v2067 = vld [vmem:[%s658] sm:$0xf]
        %v2068 = vld [vmem:[%s658 + $0x4] sm:$0xf]
        %v2069 = vld [vmem:[%s658 + $0x8] sm:$0xf]
        %v2070 = vld [vmem:[%s658 + $0xc] sm:$0xf]
        %v2071 = vld [vmem:[%s658 + $0x10] sm:$0xf]
        %v2072 = vld [vmem:[%s658 + $0x14] sm:$0xf]
        %v2073 = vld [vmem:[%s658 + $0x18] sm:$0xf]
        %v2074 = vld [vmem:[%s658 + $0x1c] sm:$0xf]
        %v2075 = vld [vmem:[%s661] sm:$0x1]
        %v2077 = vlaneseq
        %v2078 = vshrl.u32 %v2077, 7
        %v2079 = vsub.s32 0, %v2078
        %v2080 = vrot.slane %v2075, %v2079
        %v2090 = vunpack.c.l.b16 %v2067
        %v2091 = vunpack.c.l.b16 %v2068
        %v2092 = vunpack.c.l.b16 %v2069
        %v2093 = vunpack.c.l.b16 %v2070
        %v2094 = vunpack.c.l.b16 %v2071
        %v2095 = vunpack.c.l.b16 %v2072
        %v2096 = vunpack.c.l.b16 %v2073
        %v2097 = vunpack.c.l.b16 %v2074
        %v2098 = vpack.c.b16 %v2091, %v2090
        %v2099 = vpack.c.b16 %v2093, %v2092
        %v2100 = vpack.c.b16 %v2095, %v2094
        %v2101 = vpack.c.b16 %v2097, %v2096
        %vm2106 = vcmask 523264
        %v2108 = vsel %vm2106, %v2065, 0
        %v2111 = vsel %vm2106, %v2066, 0
        %2113 = vmatprep.subr.bf16.mxu0 0
        %2114 = vmatpush1.bf16.msra.mxu0 0
        %2115 = vmatprep.subr.bf16.mxu0 0
        %2116 = vmatpush1.bf16.msra.mxu0 0
        %2117 = vmatprep.subr.bf16.mxu0 0
        %2118 = vmatpush1.bf16.msra.mxu0 0
        %2119 = vmatprep.subr.bf16.mxu0 0
        %2120 = vmatpush1.bf16.msra.mxu0 0
        %2121 = vmatprep.subr.bf16.mxu0 0
        %2122 = vmatpush1.bf16.msra.mxu0 %v2101
        %2123 = vmatprep.subr.bf16.mxu0 0
        %2124 = vmatpush1.bf16.msra.mxu0 %v2100
        %2125 = vmatprep.subr.bf16.mxu0 0
        %2126 = vmatpush1.bf16.msra.mxu0 %v2099
        %2127 = vmatprep.subr.bf16.mxu0 0
        %2128 = vmatpush1.bf16.msra.mxu0 %v2098
        %2129 = vmatprep.subr.bf16.mxu0 0
        %2130 = vmatpush2.bf16.msra.mxu0 0
        %2131 = vmatprep.subr.bf16.mxu0 0
        %2132 = vmatpush2.bf16.msra.mxu0 0
        %2133 = vmatprep.subr.bf16.mxu0 0
        %2134 = vmatpush2.bf16.msra.mxu0 0
        %2135 = vmatprep.subr.bf16.mxu0 0
        %2136 = vmatpush2.bf16.msra.mxu0 0
        %2137 = vmatprep.subr.bf16.mxu0 0
        %2138 = vmatpush2.bf16.msra.mxu0 0
        %2139 = vmatprep.subr.bf16.mxu0 0
        %2140 = vmatpush2.bf16.msra.mxu0 0
        %2141 = vmatprep.subr.bf16.mxu0 0
        %2142 = vmatpush2.bf16.msra.mxu0 0
        %2143 = vmatprep.subr.bf16.mxu0 0
        %2144 = vmatpush2.bf16.msra.mxu0 0
        %2145 = vmatprep.mubr.bf16.mxu0 0
        %2146 = vmatmul.mubr.bf16.gmra.mxu0 %v2108
        %v2147 = vpop.f32.mrf.mxu0
        %v2148 = vadd.f32 %v2080, %v2147
        %v2149 = vpop.f32.mrf.mxu0
        %v2150 = vpop.f32.mrf.mxu0
        %v2151 = vadd.f32 %v2080, %v2150
        %v2152 = vpop.f32.mrf.mxu0
        %2153 = vmatprep.mubr.bf16.mxu0 0
        %2154 = vmatmul.mubr.bf16.gmra.mxu0 %v2111
        %v2155 = vpop.f32.mrf.mxu0
        %v2156 = vadd.f32 %v2080, %v2155
        %v2157 = vpop.f32.mrf.mxu0
        %v2158 = vpop.f32.mrf.mxu0
        %v2159 = vpop.f32.mrf.mxu0
        %2160 = vdwg.mxu0
        %v2161 = vadd.f32 %v1980, %v2148
        %v2162 = vadd.f32 %v1981, %v2151
        %v2163 = vadd.f32 %v1982, %v2156
        %v2164 = vld [vmem:[%s664] sm:$0x1]
        %v2165 = vld [vmem:[%s667] sm:$0x1]
        %v2166 = vsel %vm709, %v2161, 0.0
        %2167 = vadd.xlane.f32.xlu0 %v2166
        %v2168 = vpop.xlane.xlu0 %2167
        %v2169 = vsel %vm709, %v2162, 0.0
        %2170 = vadd.xlane.f32.xlu0 %v2169
        %v2171 = vpop.xlane.xlu0 %2170
        %v2172 = vsel %vm1930, %v2163, 0.0
        %2173 = vadd.xlane.f32.xlu0 %v2172
        %v2174 = vpop.xlane.xlu0 %2173
        %v2175 = vmul.f32 %v2168, %v1934
        %v2176 = vmul.f32 %v2171, %v1934
        %v2177 = vmul.f32 %v2174, %v1934
        %v2178 = vsub.f32 %v2161, %v2175
        %v2179 = vsub.f32 %v2162, %v2176
        %v2180 = vsub.f32 %v2163, %v2177
        %v2181 = vmul.f32 %v2178, %v2178
        %v2182 = vmul.f32 %v2179, %v2179
        %v2183 = vmul.f32 %v2180, %v2180
        %v2184 = vsel %vm709, %v2181, 0.0
        %2185 = vadd.xlane.f32.xlu0 %v2184
        %v2186 = vpop.xlane.xlu0 %2185
        %v2187 = vsel %vm709, %v2182, 0.0
        %2188 = vadd.xlane.f32.xlu0 %v2187
        %v2189 = vpop.xlane.xlu0 %2188
        %v2190 = vsel %vm1930, %v2183, 0.0
        %2191 = vadd.xlane.f32.xlu0 %v2190
        %v2192 = vpop.xlane.xlu0 %2191
        %v2193 = vmul.f32 %v2186, %v1934
        %v2194 = vmul.f32 %v2189, %v1934
        %v2195 = vmul.f32 %v2192, %v1934
        %v2196 = vadd.f32 %v2193, 1e-05
        %v2197 = vadd.f32 %v2194, 1e-05
        %v2198 = vadd.f32 %v2195, 1e-05
        %v2199 = vrsqrt.pop %v2196
        %v2200 = vrsqrt.pop %v2197
        %v2201 = vrsqrt.pop %v2198
        %v2202 = vmul.f32 %v2178, %v2199
        %v2203 = vmul.f32 %v2179, %v2200
        %v2204 = vmul.f32 %v2180, %v2201
        %v2206 = vlaneseq
        %v2207 = vshrl.u32 %v2206, 7
        %v2208 = vsub.s32 0, %v2207
        %v2209 = vrot.slane %v2164, %v2208
        %v2211 = vmul.f32 %v2202, %v2209
        %v2212 = vmul.f32 %v2203, %v2209
        %v2213 = vmul.f32 %v2204, %v2209
        %v2215 = vlaneseq
        %v2216 = vshrl.u32 %v2215, 7
        %v2217 = vsub.s32 0, %v2216
        %v2218 = vrot.slane %v2165, %v2217
        %v2220 = vadd.f32 %v2211, %v2218
        %v2221 = vadd.f32 %v2212, %v2218
        %v2222 = vadd.f32 %v2213, %v2218
        %2223 = vst.msk [vmem:[#allocation2] sm:$0xff] %vm709, %v2220
        %2224 = vst.msk [vmem:[#allocation2 + $0x8] sm:$0xff] %vm709, %v2221
        %2225 = vst.msk [vmem:[#allocation2 + $0x10] sm:$0xf] %vm1930, %v2222
        %p2226 = scmp.eq.s32.totalorder %s28, 1
        // Predicated region
        $region89: #{tpu_custom_call.1} parent=79 // pred_check
          %p2227 = pneg %p2226
        $region90: #{tpu_custom_call.1} parent=79 // pred_check_branch
          %2229 = sbr.rel (%p2227) target = $region92
        $region91: #{tpu_custom_call.1} parent=79 // pred_region
          %v2230 = vld [vmem:[%s13] sm:$0x1]
          %v2231 = vld [vmem:[%s14] sm:$0x1]
          %v2232 = vsel %vm709, %v2220, 0.0
          %2233 = vadd.xlane.f32.xlu0 %v2232
          %v2234 = vpop.xlane.xlu0 %2233
          %v2235 = vsel %vm709, %v2221, 0.0
          %2236 = vadd.xlane.f32.xlu0 %v2235
          %v2237 = vpop.xlane.xlu0 %2236
          %v2238 = vsel %vm1930, %v2222, 0.0
          %2239 = vadd.xlane.f32.xlu0 %v2238
          %v2240 = vpop.xlane.xlu0 %2239
          %v2241 = vmul.f32 %v2234, %v1934
          %v2242 = vmul.f32 %v2237, %v1934
          %v2243 = vmul.f32 %v2240, %v1934
          %v2244 = vsub.f32 %v2220, %v2241
          %v2245 = vsub.f32 %v2221, %v2242
          %v2246 = vsub.f32 %v2222, %v2243
          %v2247 = vmul.f32 %v2244, %v2244
          %v2248 = vmul.f32 %v2245, %v2245
          %v2249 = vmul.f32 %v2246, %v2246
          %v2250 = vsel %vm709, %v2247, 0.0
          %2251 = vadd.xlane.f32.xlu0 %v2250
          %v2252 = vpop.xlane.xlu0 %2251
          %v2253 = vsel %vm709, %v2248, 0.0
          %2254 = vadd.xlane.f32.xlu0 %v2253
          %v2255 = vpop.xlane.xlu0 %2254
          %v2256 = vsel %vm1930, %v2249, 0.0
          %2257 = vadd.xlane.f32.xlu0 %v2256
          %v2258 = vpop.xlane.xlu0 %2257
          %v2259 = vmul.f32 %v2252, %v1934
          %v2260 = vmul.f32 %v2255, %v1934
          %v2261 = vmul.f32 %v2258, %v1934
          %v2262 = vadd.f32 %v2259, 1e-05
          %v2263 = vadd.f32 %v2260, 1e-05
          %v2264 = vadd.f32 %v2261, 1e-05
          %v2265 = vrsqrt.pop %v2262
          %v2266 = vrsqrt.pop %v2263
          %v2267 = vrsqrt.pop %v2264
          %v2268 = vmul.f32 %v2244, %v2265
          %v2269 = vmul.f32 %v2245, %v2266
          %v2270 = vmul.f32 %v2246, %v2267
          %v2272 = vlaneseq
          %v2273 = vshrl.u32 %v2272, 7
          %v2274 = vsub.s32 0, %v2273
          %v2275 = vrot.slane %v2230, %v2274
          %v2277 = vmul.f32 %v2268, %v2275
          %v2278 = vmul.f32 %v2269, %v2275
          %v2279 = vmul.f32 %v2270, %v2275
          %v2281 = vlaneseq
          %v2282 = vshrl.u32 %v2281, 7
          %v2283 = vsub.s32 0, %v2282
          %v2284 = vrot.slane %v2231, %v2283
          %v2286 = vadd.f32 %v2277, %v2284
          %v2287 = vadd.f32 %v2278, %v2284
          %v2288 = vadd.f32 %v2279, %v2284
          %2289 = vst.msk [vmem:[#allocation6] sm:$0xff] %vm709, %v2286
          %2290 = vst.msk [vmem:[#allocation6 + $0x8] sm:$0xff] %vm709, %v2287
          %2291 = vst.msk [vmem:[#allocation6 + $0x10] sm:$0xf] %vm1930, %v2288
        $region92: #{tpu_custom_call.1} parent=79 // pred_fallthru
          _
        // Predicated region
        $region93: #{tpu_custom_call.1} parent=79 // pred_check
          %p2292 = pneg %p416
        $region94: #{tpu_custom_call.1} parent=79 // pred_check_branch
          %2294 = sbr.rel (%p2292) target = $region96
        $region95: #{tpu_custom_call.1} parent=79 // pred_region
          %s2296 = ssub.s32 384, 384
          %2297 = vsyncadd [#allocation5], %s2296
          %s2298 = sshll.u32 [#allocation6], 4
          %s2299 = int_to_ptr.vmem [resolvable:$true] %s2298
          %2304 = dma.vmem_to_hbm [thread:$0]  %s2299, 384, %s15, [#allocation5], 128, 128, 8
        $region96: #{tpu_custom_call.1} parent=79 // pred_fallthru
          _
        // Predicated region
        $region97: #{tpu_custom_call.1} parent=79 // pred_check
          %p2305 = pneg %p416
        $region98: #{tpu_custom_call.1} parent=79 // pred_check_branch
          %2307 = sbr.rel (%p2305) target = $region100
        $region99: #{tpu_custom_call.1} parent=79 // pred_region
          %2308 = dma.done [#allocation5], 384
        $region100: #{tpu_custom_call.1} parent=79 // pred_fallthru
          _
      $region80: #{tpu_custom_call.1} parent=5 // pred_fallthru
        _
      %p2309 = scmp.le.s32.totalorder 2, %s23
      // Predicated region
      $region101: #{tpu_custom_call.1} parent=5 // pred_check
        %p2310 = pneg %p2309
      $region102: #{tpu_custom_call.1} parent=5 // pred_check_branch
        %2312 = sbr.rel (%p2310) target = $region104
      $region103: #{tpu_custom_call.1} parent=5 // pred_region
        %s2313 = ssub.s32 %s23, 2
      $region104: #{tpu_custom_call.1} parent=5 // pred_fallthru
        _
    $region6: #{tpu_custom_call.1} parent=1 // loop_footer
      %s27 = sadd.s32 1, %s23
    $region7: #{tpu_custom_call.1} parent=1 // loop_footer_branch
      %22 = sbr.rel target = $region3
    $region8: #{tpu_custom_call.1} parent=1 // loop_exit
      _
    %2314 = vsyncpa [#allocation4], 1
    %s2315 = scalar_lea.sflag [#allocation4], 1
    %2316 = vsyncpa %s2315, 1
    %2317 = vsyncpa [#allocation5], 1
    %s2318 = scalar_lea.sflag [#allocation5], 1
    %2319 = vsyncpa %s2318, 1

</llo_original>
